<compile_context>
chip_gen: v7x
topology: tpu7x:2x2x1
jax: 0.10.0
libtpu: 0.0.40
codegen_flags: <defaults>
</compile_context>

<pallas_src>
import math
import functools

import jax
import jax.numpy as jnp
from jax import lax
from jax.experimental import pallas as pl
from jax.experimental.pallas import tpu as pltpu


_INV_SQRT2 = 1.0 / math.sqrt(2.0)
_VMEM_LIMIT = 40 * 1024 * 1024      # safe on v5e/v6e (128 MiB) and v7x (64 MiB)
_SIZE_BUDGET = 26 * 1024 * 1024     # what we actually try to occupy per step


def _round_up(a, m):
    return ((a + m - 1) // m) * m


def _gelu(y):
    # PyTorch F.gelu default: exact erf formulation.
    return 0.5 * y * (1.0 + lax.erf(y * _INV_SQRT2))


# --------------------------------------------------------------------------
# Layer 0: fused LayerNorm + GELU + per-direction input projection.
# x block (Tc, Bp, F) f32 -> stacked gi block (2, Tc, Bp, 3*Hp) bf16.
# --------------------------------------------------------------------------
def _ln_gelu_proj_kernel(x_ref, g_ref, b_ref, wf_ref, wb_ref, bf_ref, bb_ref,
                         gi_ref):
    tc, bp, f = x_ref.shape
    ncols = gi_ref.shape[-1]                       # 3*Hp (128-lane aligned)
    x = x_ref[...].reshape(tc * bp, f)
    mu = jnp.mean(x, axis=-1, keepdims=True)
    var = jnp.mean(jnp.square(x - mu), axis=-1, keepdims=True)
    xn = (x - mu) * lax.rsqrt(var + 1e-5)          # PyTorch LayerNorm eps=1e-5
    y = _gelu(xn * g_ref[...] + b_ref[...]).astype(wf_ref.dtype)
    # Two narrow dots writing directly into the two direction slots (no wide
    # 6*Hp temp, no lane-slice copies).
    gi_f = jnp.dot(y, wf_ref[...], preferred_element_type=jnp.float32) + bf_ref[...]
    gi_ref[0] = gi_f.reshape(tc, bp, ncols).astype(gi_ref.dtype)
    gi_b = jnp.dot(y, wb_ref[...], preferred_element_type=jnp.float32) + bb_ref[...]
    gi_ref[1] = gi_b.reshape(tc, bp, ncols).astype(gi_ref.dtype)


# --------------------------------------------------------------------------
# Layers >= 1: input projection from the previous layer's stacked output.
# prev block (2, Tc, Bp, Hp) bf16 -> stacked gi block (2, Tc, Bp, 3*Hp) bf16.
# The fwd/bwd halves are K-stacked into one K = 2*Hp contraction.
# --------------------------------------------------------------------------
def _proj2_kernel(x_ref, wf_ref, wb_ref, bf_ref, bb_ref, gi_ref):
    _, tc, bp, hp = x_ref.shape
    ncols = gi_ref.shape[-1]
    xa = x_ref[0].reshape(tc * bp, hp)
    xb = x_ref[1].reshape(tc * bp, hp)
    x2 = jnp.concatenate([xa, xb], axis=-1)        # (Tc*Bp, 2*Hp), lane-aligned
    gi_f = jnp.dot(x2, wf_ref[...], preferred_element_type=jnp.float32) + bf_ref[...]
    gi_ref[0] = gi_f.reshape(tc, bp, ncols).astype(gi_ref.dtype)
    gi_b = jnp.dot(x2, wb_ref[...], preferred_element_type=jnp.float32) + bb_ref[...]
    gi_ref[1] = gi_b.reshape(tc, bp, ncols).astype(gi_ref.dtype)


# --------------------------------------------------------------------------
# GRU recurrence, one direction per grid row.
#   grid = (2, nc): axis 0 = direction (parallel -> one per TC on v7x),
#   axis 1 = time chunk (arbitrary, sequential). Hidden state is carried in
#   f32 VMEM scratch across time chunks of the same direction.
# --------------------------------------------------------------------------
def _gru_dir_kernel(gi_ref, whh_ref, bhn_ref, out_ref, h_scr,
                    *, seq_len, tp_total, unroll):
    d = pl.program_id(0)
    c = pl.program_id(1)
    nc = pl.num_programs(1)
    tc = gi_ref.shape[0]
    bp, hp = h_scr.shape
    is_fwd = d == 0

    @pl.when(c == 0)
    def _():
        h_scr[...] = jnp.zeros_like(h_scr)

    whh = whh_ref[...]                                      # (Hp, 3Hp) bf16
    bhn = jnp.broadcast_to(bhn_ref[...], (bp, hp))          # hoisted broadcast

    def gru_step(gi_t, h_prev):
        # gi_t already contains b_ih (+ b_hh_r, b_hh_z folded in).
        gh = jnp.dot(h_prev.astype(whh.dtype), whh,
                     preferred_element_type=jnp.float32)
        gi = gi_t.astype(jnp.float32)
        r = jax.nn.sigmoid(gi[:, 0:hp] + gh[:, 0:hp])
        z = jax.nn.sigmoid(gi[:, hp:2 * hp] + gh[:, hp:2 * hp])
        n = jnp.tanh(gi[:, 2 * hp:3 * hp] + r * (gh[:, 2 * hp:3 * hp] + bhn))
        return (1.0 - z) * n + z * h_prev

    def make_body(masked):
        def body(s, h):
            # fwd: local step s; bwd: local step tc-1-s (reversed order).
            sl = jnp.where(is_fwd, s, tc - 1 - s)
            h_new = gru_step(gi_ref[sl], h)
            if masked:  # only emitted for the boundary chunk of a direction
                tblk = jnp.where(is_fwd, c, nc - 1 - c)
                h_new = jnp.where(tblk * tc + sl < seq_len, h_new, h)
            out_ref[sl] = h_new.astype(out_ref.dtype)
            return h_new
        return body

    if tp_total == seq_len:       # no time padding anywhere
        h = lax.fori_loop(0, tc, make_body(False), h_scr[...], unroll=unroll)
        h_scr[...] = h
    else:
        # Padding is appended at the end of the sequence and fits in one chunk,
        # so only the fwd last chunk / bwd first chunk ever need masking.
        boundary = jnp.where(is_fwd, c == nc - 1, c == 0)

        @pl.when(boundary)
        def _():
            h = lax.fori_loop(0, tc, make_body(True), h_scr[...], unroll=unroll)
            h_scr[...] = h

        @pl.when(jnp.logical_not(boundary))
        def _():
            h = lax.fori_loop(0, tc, make_body(False), h_scr[...], unroll=unroll)
            h_scr[...] = h


# --------------------------------------------------------------------------
# pallas_call wrappers
# --------------------------------------------------------------------------
def _layer0_gi(x_tbf, gamma, beta, wf, wb, bf, bb, *, tc):
    tp, bp, f = x_tbf.shape
    ncols = wf.shape[1]
    return pl.pallas_call(
        _ln_gelu_proj_kernel,
        out_shape=jax.ShapeDtypeStruct((2, tp, bp, ncols), jnp.bfloat16),
        grid=(tp // tc,),
        in_specs=[
            pl.BlockSpec((tc, bp, f), lambda c: (c, 0, 0)),
            pl.BlockSpec((1, f), lambda c: (0, 0)),
            pl.BlockSpec((1, f), lambda c: (0, 0)),
            pl.BlockSpec((f, ncols), lambda c: (0, 0)),
            pl.BlockSpec((f, ncols), lambda c: (0, 0)),
            pl.BlockSpec((1, ncols), lambda c: (0, 0)),
            pl.BlockSpec((1, ncols), lambda c: (0, 0)),
        ],
        out_specs=pl.BlockSpec((2, tc, bp, ncols), lambda c: (0, c, 0, 0)),
        compiler_params=pltpu.CompilerParams(
            dimension_semantics=("parallel",),
            vmem_limit_bytes=_VMEM_LIMIT),
    )(x_tbf, gamma.reshape(1, f), beta.reshape(1, f), wf, wb, bf, bb)


def _next_layer_gi(prev_out, wf, wb, bf, bb, *, tc):
    _, tp, bp, hp = prev_out.shape
    ncols = wf.shape[1]
    return pl.pallas_call(
        _proj2_kernel,
        out_shape=jax.ShapeDtypeStruct((2, tp, bp, ncols), jnp.bfloat16),
        grid=(tp // tc,),
        in_specs=[
            pl.BlockSpec((2, tc, bp, hp), lambda c: (0, c, 0, 0)),
            pl.BlockSpec((2 * hp, ncols), lambda c: (0, 0)),
            pl.BlockSpec((2 * hp, ncols), lambda c: (0, 0)),
            pl.BlockSpec((1, ncols), lambda c: (0, 0)),
            pl.BlockSpec((1, ncols), lambda c: (0, 0)),
        ],
        out_specs=pl.BlockSpec((2, tc, bp, ncols), lambda c: (0, c, 0, 0)),
        compiler_params=pltpu.CompilerParams(
            dimension_semantics=("parallel",),
            vmem_limit_bytes=_VMEM_LIMIT),
    )(prev_out, wf, wb, bf, bb)


def _bigru_layer(gi, whh, bhn, *, tc, seq_len):
    _, tp, bp, ncols = gi.shape
    hp = ncols // 3
    nc = tp // tc
    kernel = functools.partial(_gru_dir_kernel, seq_len=seq_len, tp_total=tp,
                               unroll=max(1, min(8, tc)))
    return pl.pallas_call(
        kernel,
        out_shape=jax.ShapeDtypeStruct((2, tp, bp, hp), jnp.bfloat16),
        grid_spec=pltpu.PrefetchScalarGridSpec(
            num_scalar_prefetch=0,
            grid=(2, nc),
            in_specs=[
                # fwd (d=0) reads time chunks 0..nc-1; bwd (d=1) reads nc-1..0.
                pl.BlockSpec((None, tc, bp, ncols),
                             lambda d, c: (d, c + d * (nc - 1 - 2 * c), 0, 0)),
                pl.BlockSpec((None, hp, ncols), lambda d, c: (d, 0, 0)),
                pl.BlockSpec((None, 1, hp), lambda d, c: (d, 0, 0)),
            ],
            out_specs=pl.BlockSpec((None, tc, bp, hp),
                                   lambda d, c: (d, c + d * (nc - 1 - 2 * c), 0, 0)),
            scratch_shapes=[pltpu.VMEM((bp, hp), jnp.float32)],
        ),
        compiler_params=pltpu.CompilerParams(
            dimension_semantics=("parallel", "arbitrary"),
            vmem_limit_bytes=_VMEM_LIMIT),
    )(gi, whh, bhn)


# --------------------------------------------------------------------------
# Tile-size selection from a VMEM budget (per generation safe: fits well under
# the v7x 64 MiB physical / 32 MiB scoped default).
# --------------------------------------------------------------------------
def _pick_tc_rec(T, Bp, Hp):
    fixed = 2 * (Hp * 3 * Hp * 2) + 2 * (Bp * Hp * 4) + 4 * Hp   # whh dbl-buf, h scratch, bhn
    per_t = 2 * (Bp * 3 * Hp * 2) + 2 * (Bp * Hp * 2)            # gi + out, dbl-buf bf16
    tc = (_SIZE_BUDGET - fixed) // per_t
    return int(max(1, min(tc, T, 256)))


def _pick_tc_proj(Tp, Bp, Hp, F):
    # worst case of layer-0 and deep-layer projections; generous temp margins.
    per_t0 = 2 * (Bp * F * 4) + 2 * (2 * Bp * 3 * Hp * 2) \
        + Bp * F * 4 + 2 * Bp * 3 * Hp * 4
    per_t1 = 2 * (2 * Bp * Hp * 2) + 2 * (2 * Bp * 3 * Hp * 2) \
        + Bp * 2 * Hp * 2 + 2 * Bp * 3 * Hp * 4
    per_t = max(per_t0, per_t1)
    fixed = 2 * (2 * F * 3 * Hp * 2) + 2 * (2 * 2 * Hp * 3 * Hp * 2)
    tc_max = max(1, (_SIZE_BUDGET - fixed) // per_t)
    divisors = [d for d in range(1, Tp + 1) if Tp % d == 0]
    ok = [d for d in divisors if d <= tc_max and d <= 512]
    if not ok:
        return 1
    if Tp >= 2:
        two_step = [d for d in ok if Tp // d >= 2]   # keep >=2 grid steps (v7x)
        if two_step:
            ok = two_step
    return max(ok)


# --------------------------------------------------------------------------
# Parameter packing (done ONCE at load time, outside the jitted forward):
# transpose, pad each gate to a 128-lane-aligned column block, fold biases,
# cast matmul operands to bf16.
# --------------------------------------------------------------------------
def _pack_gate_cols(w, H, Hp, rows_out):
    """w: (3H, R) gate-stacked rows -> (rows_out, 3*Hp) transposed, each gate at
    a 128-aligned column offset, zero padded."""
    R = w.shape[1]
    out = jnp.zeros((rows_out, 3 * Hp), jnp.float32)
    for g in range(3):
        out = out.at[:R, g * Hp:g * Hp + H].set(
            jnp.transpose(w[g * H:(g + 1) * H, :]))
    return out


def _pack_wih_deep(w_ih, H, Hp):
    """Layer>=1 w_ih: (3H, 2H) -> (2*Hp, 3*Hp); rows [0,Hp) multiply the
    previous layer's fwd half, rows [Hp,2Hp) the bwd half (K-stacked)."""
    out = jnp.zeros((2 * Hp, 3 * Hp), jnp.float32)
    for g in range(3):
        wg = w_ih[g * H:(g + 1) * H, :]
        out = out.at[0:H, g * Hp:g * Hp + H].set(jnp.transpose(wg[:, :H]))
        out = out.at[Hp:Hp + H, g * Hp:g * Hp + H].set(jnp.transpose(wg[:, H:]))
    return out


def _pack_gate_vec(v, H, Hp):
    out = jnp.zeros((3 * Hp,), jnp.float32)
    for g in range(3):
        out = out.at[g * Hp:g * Hp + H].set(v[g * H:(g + 1) * H])
    return out


def pack_params(params, *, input_size, hidden, num_layers,
                mxu_dtype=jnp.bfloat16):
    H = hidden
    Hp = _round_up(H, 128)
    packed = {"ln_gamma": params["ln_gamma"].astype(jnp.float32),
              "ln_beta": params["ln_beta"].astype(jnp.float32),
              "layers": []}
    for l in range(num_layers):
        wih, bvec, whh, bhn = [], [], [], []
        for suffix in ("", "_rev"):
            w_ih = params[f"w_ih_l{l}{suffix}"]
            w_hh = params[f"w_hh_l{l}{suffix}"]
            b_ih = params[f"b_ih_l{l}{suffix}"]
            b_hh = params[f"b_hh_l{l}{suffix}"]
            # fold b_ih fully and b_hh for the r/z gates; b_hh_n stays separate
            # (it sits inside r * (W_hn h + b_hn)).
            b_fold = b_ih + jnp.concatenate(
                [b_hh[:2 * H], jnp.zeros((H,), b_hh.dtype)])
            if l == 0:
                wih.append(_pack_gate_cols(w_ih, H, Hp, input_size).astype(mxu_dtype))
            else:
                wih.append(_pack_wih_deep(w_ih, H, Hp).astype(mxu_dtype))
            bvec.append(_pack_gate_vec(b_fold, H, Hp).reshape(1, -1))        # f32
            whh.append(_pack_gate_cols(w_hh, H, Hp, Hp).astype(mxu_dtype))
            bhn.append(jnp.zeros((1, Hp), jnp.float32).at[0, :H].set(b_hh[2 * H:]))
        packed["layers"].append({
            "w_in_f": wih[0], "w_in_b": wih[1],
            "b_f": bvec[0], "b_b": bvec[1],
            "whh": jnp.stack(whh),          # (2, Hp, 3Hp) bf16
            "bhn": jnp.stack(bhn),          # (2, 1, Hp) f32
        })
    return packed


# --------------------------------------------------------------------------
# Full module forward (packed params; nn.Dropout in eval mode is identity).
# --------------------------------------------------------------------------
def bidirectional_gru_forward(x, packed, *, hidden):
    B, T, F = x.shape
    H = hidden
    Hp = _round_up(H, 128)       # lane-aligned hidden: gate slices stay in-tile
    Bp = _round_up(B, 8)         # sublane-aligned batch

    tc_rec = _pick_tc_rec(T, Bp, Hp)
    Tp = _round_up(T, tc_rec)
    tc_proj = _pick_tc_proj(Tp, Bp, Hp, F)

    # one transpose in: time-major (T, B, F), padded once; padded timesteps
    # are masked inside the recurrence and sliced off at the end.
    xt = jnp.transpose(x, (1, 0, 2)).astype(jnp.float32)
    xt = jnp.pad(xt, ((0, Tp - T), (0, Bp - B), (0, 0)))

    out = None
    for l, lp in enumerate(packed["layers"]):
        if l == 0:
            gi = _layer0_gi(xt, packed["ln_gamma"], packed["ln_beta"],
                            lp["w_in_f"], lp["w_in_b"], lp["b_f"], lp["b_b"],
                            tc=tc_proj)
        else:
            gi = _next_layer_gi(out, lp["w_in_f"], lp["w_in_b"],
                                lp["b_f"], lp["b_b"], tc=tc_proj)
        out = _bigru_layer(gi, lp["whh"], lp["bhn"], tc=tc_rec, seq_len=T)

    res = jnp.concatenate([out[0, :T, :B, :H], out[1, :T, :B, :H]], axis=-1)
    # nn.Dropout in eval/inference mode is identity; no-op here.
    return jnp.transpose(res, (1, 0, 2)).astype(jnp.float32)   # (B, T, 2H)


def init_params(key, input_size, hidden, num_layers):
    params = {
        "ln_gamma": jnp.ones((input_size,), jnp.float32),
        "ln_beta": jnp.zeros((input_size,), jnp.float32),
    }
    k = 1.0 / math.sqrt(hidden)
    for l in range(num_layers):
        in_sz = input_size if l == 0 else 2 * hidden
        for suffix in ("", "_rev"):
            key, k0, k1, k2, k3 = jax.random.split(key, 5)
            params[f"w_ih_l{l}{suffix}"] = jax.random.uniform(
                k0, (3 * hidden, in_sz), jnp.float32, -k, k)
            params[f"w_hh_l{l}{suffix}"] = jax.random.uniform(
                k1, (3 * hidden, hidden), jnp.float32, -k, k)
            params[f"b_ih_l{l}{suffix}"] = jax.random.uniform(
                k2, (3 * hidden,), jnp.float32, -k, k)
            params[f"b_hh_l{l}{suffix}"] = jax.random.uniform(
                k3, (3 * hidden,), jnp.float32, -k, k)
    return params


if __name__ == "__main__":
    B, T = 2, 8
    input_size, hidden, num_layers = 32, 32, 2

    key = jax.random.PRNGKey(0)
    key, kx, kp = jax.random.split(key, 3)
    x = jax.random.normal(kx, (B, T, input_size), jnp.float32)
    raw_params = init_params(kp, input_size, hidden, num_layers)

    # Pack once at load time (transpose / pad / fold / bf16 cast), outside jit.
    packed = jax.tree.map(
        jax.block_until_ready,
        pack_params(raw_params, input_size=input_size, hidden=hidden,
                    num_layers=num_layers))

    fwd = jax.jit(functools.partial(bidirectional_gru_forward, hidden=hidden))
    out = jax.block_until_ready(fwd(x, packed))
    assert out.shape == (B, T, 2 * hidden), out.shape
    assert bool(jnp.all(jnp.isfinite(out)))
    print("KERNEL_OK")
</pallas_src>

<mosaic_0001>
module attributes {stable_mosaic.version = 11 : i64} {
  func.func @_ln_gelu_proj_kernel(%arg0: i32, %arg1: memref<4x8x32xf32, #tpu.memory_space<vmem>>, %arg2: memref<1x32xf32, #tpu.memory_space<vmem>>, %arg3: memref<1x32xf32, #tpu.memory_space<vmem>>, %arg4: memref<32x384xbf16, #tpu.memory_space<vmem>>, %arg5: memref<32x384xbf16, #tpu.memory_space<vmem>>, %arg6: memref<1x384xf32, #tpu.memory_space<vmem>>, %arg7: memref<1x384xf32, #tpu.memory_space<vmem>>, %arg8: memref<2x4x8x384xbf16, #tpu.memory_space<vmem>>) attributes {dimension_semantics = [#tpu.dimension_semantics<parallel>], iteration_bounds = array<i64: 2>, scalar_prefetch = 0 : i64, scratch_operands = 0 : i64, tpu.core_type = #tpu.core_type<tc>, window_params = [{transform_indices = @transform_0, window_bounds = array<i64: 4, 8, 32>}, {pipeline_mode = #tpu.pipeline_mode<synchronous>, transform_indices = @transform_1, window_bounds = array<i64: 1, 32>}, {pipeline_mode = #tpu.pipeline_mode<synchronous>, transform_indices = @transform_2, window_bounds = array<i64: 1, 32>}, {pipeline_mode = #tpu.pipeline_mode<synchronous>, transform_indices = @transform_3, window_bounds = array<i64: 32, 384>}, {pipeline_mode = #tpu.pipeline_mode<synchronous>, transform_indices = @transform_4, window_bounds = array<i64: 32, 384>}, {pipeline_mode = #tpu.pipeline_mode<synchronous>, transform_indices = @transform_5, window_bounds = array<i64: 1, 384>}, {pipeline_mode = #tpu.pipeline_mode<synchronous>, transform_indices = @transform_6, window_bounds = array<i64: 1, 384>}, {transform_indices = @transform_7, window_bounds = array<i64: 2, 4, 8, 384>}]} {
    %c0 = arith.constant 0 : index
    %c0_0 = arith.constant 0 : index
    %c0_1 = arith.constant 0 : index
    %0 = vector.load %arg1[%c0, %c0_0, %c0_1] : memref<4x8x32xf32, #tpu.memory_space<vmem>>, vector<4x8x32xf32>
    %1 = vector.shape_cast %0 : vector<4x8x32xf32> to vector<32x32xf32>
    %cst = arith.constant dense<0.000000e+00> : vector<32xf32>
    %2 = vector.multi_reduction <add>, %1, %cst [1] : vector<32x32xf32> to vector<32xf32>
    %3 = vector.shape_cast %2 : vector<32xf32> to vector<32x1xf32>
    %cst_2 = arith.constant 3.200000e+01 : f32
    %4 = vector.broadcast %cst_2 : f32 to vector<32x1xf32>
    %5 = arith.divf %3, %4 : vector<32x1xf32>
    %6 = vector.broadcast %5 : vector<32x1xf32> to vector<32x32xf32>
    %7 = arith.subf %1, %6 : vector<32x32xf32>
    %8 = arith.mulf %7, %7 : vector<32x32xf32>
    %cst_3 = arith.constant dense<0.000000e+00> : vector<32xf32>
    %9 = vector.multi_reduction <add>, %8, %cst_3 [1] : vector<32x32xf32> to vector<32xf32>
    %10 = vector.shape_cast %9 : vector<32xf32> to vector<32x1xf32>
    %cst_4 = arith.constant 3.200000e+01 : f32
    %11 = vector.broadcast %cst_4 : f32 to vector<32x1xf32>
    %12 = arith.divf %10, %11 : vector<32x1xf32>
    %13 = vector.broadcast %5 : vector<32x1xf32> to vector<32x32xf32>
    %14 = arith.subf %1, %13 : vector<32x32xf32>
    %cst_5 = arith.constant 9.99999974E-6 : f32
    %15 = vector.broadcast %cst_5 : f32 to vector<32x1xf32>
    %16 = arith.addf %12, %15 : vector<32x1xf32>
    %17 = math.rsqrt %16 : vector<32x1xf32>
    %18 = vector.broadcast %17 : vector<32x1xf32> to vector<32x32xf32>
    %19 = arith.mulf %14, %18 : vector<32x32xf32>
    %c0_6 = arith.constant 0 : index
    %c0_7 = arith.constant 0 : index
    %20 = vector.load %arg2[%c0_6, %c0_7] : memref<1x32xf32, #tpu.memory_space<vmem>>, vector<1x32xf32>
    %21 = vector.broadcast %20 : vector<1x32xf32> to vector<32x32xf32>
    %22 = arith.mulf %19, %21 : vector<32x32xf32>
    %c0_8 = arith.constant 0 : index
    %c0_9 = arith.constant 0 : index
    %23 = vector.load %arg3[%c0_8, %c0_9] : memref<1x32xf32, #tpu.memory_space<vmem>>, vector<1x32xf32>
    %24 = vector.broadcast %23 : vector<1x32xf32> to vector<32x32xf32>
    %25 = arith.addf %22, %24 : vector<32x32xf32>
    %cst_10 = arith.constant 5.000000e-01 : f32
    %26 = vector.broadcast %cst_10 : f32 to vector<32x32xf32>
    %27 = arith.mulf %26, %25 : vector<32x32xf32>
    %cst_11 = arith.constant 0.707106769 : f32
    %28 = vector.broadcast %cst_11 : f32 to vector<32x32xf32>
    %29 = arith.mulf %25, %28 : vector<32x32xf32>
    %30 = math.erf %29 : vector<32x32xf32>
    %cst_12 = arith.constant 1.000000e+00 : f32
    %31 = vector.broadcast %cst_12 : f32 to vector<32x32xf32>
    %32 = arith.addf %31, %30 : vector<32x32xf32>
    %33 = arith.mulf %27, %32 : vector<32x32xf32>
    %34 = arith.truncf %33 : vector<32x32xf32> to vector<32x32xbf16>
    %c0_13 = arith.constant 0 : index
    %c0_14 = arith.constant 0 : index
    %35 = vector.load %arg4[%c0_13, %c0_14] : memref<32x384xbf16, #tpu.memory_space<vmem>>, vector<32x384xbf16>
    %cst_15 = arith.constant dense<0.000000e+00> : vector<32x384xf32>
    %36 = tpu.matmul %34, %35, %cst_15 {dimension_numbers = #tpu.dot_dimension_numbers<[1], [0], [0], [1], [0, 0, 1, 1], [], []>} : vector<32x32xbf16>, vector<32x384xbf16>, vector<32x384xf32> -> vector<32x384xf32>
    %c0_16 = arith.constant 0 : index
    %c0_17 = arith.constant 0 : index
    %37 = vector.load %arg6[%c0_16, %c0_17] : memref<1x384xf32, #tpu.memory_space<vmem>>, vector<1x384xf32>
    %38 = vector.broadcast %37 : vector<1x384xf32> to vector<32x384xf32>
    %39 = arith.addf %36, %38 : vector<32x384xf32>
    %40 = vector.shape_cast %39 : vector<32x384xf32> to vector<4x8x384xf32>
    %41 = arith.truncf %40 : vector<4x8x384xf32> to vector<4x8x384xbf16>
    %c0_18 = arith.constant 0 : index
    %c0_19 = arith.constant 0 : index
    %c0_20 = arith.constant 0 : index
    %c0_21 = arith.constant 0 : index
    %42 = vector.load %arg8[%c0_18, %c0_19, %c0_20, %c0_21] : memref<2x4x8x384xbf16, #tpu.memory_space<vmem>>, vector<1x4x8x384xbf16>
    %43 = vector.shape_cast %42 : vector<1x4x8x384xbf16> to vector<4x8x384xbf16>
    %44 = vector.shape_cast %41 : vector<4x8x384xbf16> to vector<1x4x8x384xbf16>
    tpu.vector_store %arg8[%c0_18, %c0_19, %c0_20, %c0_21], %44 {strides = array<i32>} : memref<2x4x8x384xbf16, #tpu.memory_space<vmem>>, vector<1x4x8x384xbf16>,
    %c0_22 = arith.constant 0 : index
    %c0_23 = arith.constant 0 : index
    %45 = vector.load %arg5[%c0_22, %c0_23] : memref<32x384xbf16, #tpu.memory_space<vmem>>, vector<32x384xbf16>
    %cst_24 = arith.constant dense<0.000000e+00> : vector<32x384xf32>
    %46 = tpu.matmul %34, %45, %cst_24 {dimension_numbers = #tpu.dot_dimension_numbers<[1], [0], [0], [1], [0, 0, 1, 1], [], []>} : vector<32x32xbf16>, vector<32x384xbf16>, vector<32x384xf32> -> vector<32x384xf32>
    %c0_25 = arith.constant 0 : index
    %c0_26 = arith.constant 0 : index
    %47 = vector.load %arg7[%c0_25, %c0_26] : memref<1x384xf32, #tpu.memory_space<vmem>>, vector<1x384xf32>
    %48 = vector.broadcast %47 : vector<1x384xf32> to vector<32x384xf32>
    %49 = arith.addf %46, %48 : vector<32x384xf32>
    %50 = vector.shape_cast %49 : vector<32x384xf32> to vector<4x8x384xf32>
    %51 = arith.truncf %50 : vector<4x8x384xf32> to vector<4x8x384xbf16>
    %c1 = arith.constant 1 : index
    %c0_27 = arith.constant 0 : index
    %c0_28 = arith.constant 0 : index
    %c0_29 = arith.constant 0 : index
    %52 = vector.load %arg8[%c1, %c0_27, %c0_28, %c0_29] : memref<2x4x8x384xbf16, #tpu.memory_space<vmem>>, vector<1x4x8x384xbf16>
    %53 = vector.shape_cast %52 : vector<1x4x8x384xbf16> to vector<4x8x384xbf16>
    %54 = vector.shape_cast %51 : vector<4x8x384xbf16> to vector<1x4x8x384xbf16>
    tpu.vector_store %arg8[%c1, %c0_27, %c0_28, %c0_29], %54 {strides = array<i32>} : memref<2x4x8x384xbf16, #tpu.memory_space<vmem>>, vector<1x4x8x384xbf16>,
    return
  }
  func.func @transform_0(%arg0: i32) -> (i32, i32, i32) {
    %c0_i32 = arith.constant 0 : i32
    %c0_i32_0 = arith.constant 0 : i32
    %c0_i32_1 = arith.constant 0 : i32
    return %arg0, %c0_i32, %c0_i32_0 : i32, i32, i32
  }
  func.func @transform_1(%arg0: i32) -> (i32, i32) {
    %c0_i32 = arith.constant 0 : i32
    %c0_i32_0 = arith.constant 0 : i32
    %c0_i32_1 = arith.constant 0 : i32
    return %c0_i32, %c0_i32_0 : i32, i32
  }
  func.func @transform_2(%arg0: i32) -> (i32, i32) {
    %c0_i32 = arith.constant 0 : i32
    %c0_i32_0 = arith.constant 0 : i32
    %c0_i32_1 = arith.constant 0 : i32
    return %c0_i32, %c0_i32_0 : i32, i32
  }
  func.func @transform_3(%arg0: i32) -> (i32, i32) {
    %c0_i32 = arith.constant 0 : i32
    %c0_i32_0 = arith.constant 0 : i32
    %c0_i32_1 = arith.constant 0 : i32
    return %c0_i32, %c0_i32_0 : i32, i32
  }
  func.func @transform_4(%arg0: i32) -> (i32, i32) {
    %c0_i32 = arith.constant 0 : i32
    %c0_i32_0 = arith.constant 0 : i32
    %c0_i32_1 = arith.constant 0 : i32
    return %c0_i32, %c0_i32_0 : i32, i32
  }
  func.func @transform_5(%arg0: i32) -> (i32, i32) {
    %c0_i32 = arith.constant 0 : i32
    %c0_i32_0 = arith.constant 0 : i32
    %c0_i32_1 = arith.constant 0 : i32
    return %c0_i32, %c0_i32_0 : i32, i32
  }
  func.func @transform_6(%arg0: i32) -> (i32, i32) {
    %c0_i32 = arith.constant 0 : i32
    %c0_i32_0 = arith.constant 0 : i32
    %c0_i32_1 = arith.constant 0 : i32
    return %c0_i32, %c0_i32_0 : i32, i32
  }
  func.func @transform_7(%arg0: i32) -> (i32, i32, i32, i32) {
    %c0_i32 = arith.constant 0 : i32
    %c0_i32_0 = arith.constant 0 : i32
    %c0_i32_1 = arith.constant 0 : i32
    %c0_i32_2 = arith.constant 0 : i32
    return %c0_i32, %arg0, %c0_i32_0, %c0_i32_1 : i32, i32, i32, i32
  }
}

module attributes {stable_mosaic.version = 11 : i64} {
  func.func @_gru_dir_kernel(%arg0: i32, %arg1: i32, %arg2: memref<1x8x8x384xbf16, #tpu.memory_space<vmem>>, %arg3: memref<1x128x384xbf16, #tpu.memory_space<vmem>>, %arg4: memref<1x1x128xf32, #tpu.memory_space<vmem>>, %arg5: memref<1x8x8x128xbf16, #tpu.memory_space<vmem>>, %arg6: memref<8x128xf32, #tpu.memory_space<vmem>>) attributes {dimension_semantics = [#tpu.dimension_semantics<parallel>, #tpu.dimension_semantics<arbitrary>], iteration_bounds = array<i64: 2, 1>, scalar_prefetch = 0 : i64, scratch_operands = 1 : i64, tpu.core_type = #tpu.core_type<tc>, window_params = [{transform_indices = @transform_0, window_bounds = array<i64: 1, 8, 8, 384>}, {transform_indices = @transform_1, window_bounds = array<i64: 1, 128, 384>}, {transform_indices = @transform_2, window_bounds = array<i64: 1, 1, 128>}, {transform_indices = @transform_3, window_bounds = array<i64: 1, 8, 8, 128>}]} {
    %c0_i32 = arith.constant 0 : i32
    %0 = arith.cmpi eq, %arg0, %c0_i32 : i32
    %c0_i32_0 = arith.constant 0 : i32
    %1 = arith.cmpi eq, %arg1, %c0_i32_0 : i32
    %2 = arith.extui %1 : i1 to i32
    %c0_i32_1 = arith.constant 0 : i32
    %3 = arith.cmpi ne, %2, %c0_i32_1 : i32
    scf.if %3 {
      %cst_99 = arith.constant 0.000000e+00 : f32
      %332 = vector.broadcast %cst_99 : f32 to vector<8x128xf32>
      %c0_100 = arith.constant 0 : index
      %c0_101 = arith.constant 0 : index
      %333 = vector.load %arg6[%c0_100, %c0_101] : memref<8x128xf32, #tpu.memory_space<vmem>>, vector<8x128xf32>
      tpu.vector_store %arg6[%c0_100, %c0_101], %332 {strides = array<i32>} : memref<8x128xf32, #tpu.memory_space<vmem>>, vector<8x128xf32>,
    } else {
    }
    %c0 = arith.constant 0 : index
    %c0_2 = arith.constant 0 : index
    %c0_3 = arith.constant 0 : index
    %4 = vector.load %arg3[%c0, %c0_2, %c0_3] : memref<1x128x384xbf16, #tpu.memory_space<vmem>>, vector<1x128x384xbf16>
    %5 = vector.shape_cast %4 : vector<1x128x384xbf16> to vector<128x384xbf16>
    %c0_4 = arith.constant 0 : index
    %c0_5 = arith.constant 0 : index
    %c0_6 = arith.constant 0 : index
    %6 = vector.load %arg4[%c0_4, %c0_5, %c0_6] : memref<1x1x128xf32, #tpu.memory_space<vmem>>, vector<1x1x128xf32>
    %7 = vector.shape_cast %6 : vector<1x1x128xf32> to vector<1x128xf32>
    %8 = vector.shape_cast %7 : vector<1x128xf32> to vector<1x128xf32>
    %9 = vector.broadcast %8 : vector<1x128xf32> to vector<8x128xf32>
    %c0_7 = arith.constant 0 : index
    %c0_8 = arith.constant 0 : index
    %10 = vector.load %arg6[%c0_7, %c0_8] : memref<8x128xf32, #tpu.memory_space<vmem>>, vector<8x128xf32>
    %c0_i32_9 = arith.constant 0 : i32
    %c7_i32 = arith.constant 7 : i32
    %11 = arith.subi %c7_i32, %c0_i32_9 : i32
    %12 = arith.select %0, %c0_i32_9, %11 : i32
    %c0_10 = arith.constant 0 : index
    %13 = arith.index_cast %12 : i32 to index
    %c0_11 = arith.constant 0 : index
    %c0_12 = arith.constant 0 : index
    %14 = vector.load %arg2[%c0_10, %13, %c0_11, %c0_12] : memref<1x8x8x384xbf16, #tpu.memory_space<vmem>>, vector<1x1x8x384xbf16>
    %15 = vector.shape_cast %14 : vector<1x1x8x384xbf16> to vector<8x384xbf16>
    %16 = arith.truncf %10 : vector<8x128xf32> to vector<8x128xbf16>
    %cst = arith.constant dense<0.000000e+00> : vector<8x384xf32>
    %17 = tpu.matmul %16, %5, %cst {dimension_numbers = #tpu.dot_dimension_numbers<[1], [0], [0], [1], [0, 0, 1, 1], [], []>} : vector<8x128xbf16>, vector<128x384xbf16>, vector<8x384xf32> -> vector<8x384xf32>
    %18 = arith.extf %15 : vector<8x384xbf16> to vector<8x384xf32>
    %19 = vector.extract_strided_slice %18 {offsets = [0, 0], sizes = [8, 128], strides = [1, 1]} : vector<8x384xf32> to vector<8x128xf32>
    %20 = vector.extract_strided_slice %17 {offsets = [0, 0], sizes = [8, 128], strides = [1, 1]} : vector<8x384xf32> to vector<8x128xf32>
    %21 = arith.addf %19, %20 : vector<8x128xf32>
    %22 = arith.negf %21 : vector<8x128xf32>
    %23 = math.exp %22 : vector<8x128xf32>
    %cst_13 = arith.constant 1.000000e+00 : f32
    %24 = vector.broadcast %cst_13 : f32 to vector<8x128xf32>
    %25 = arith.addf %24, %23 : vector<8x128xf32>
    %26 = arith.divf %24, %25 : vector<8x128xf32>
    %27 = vector.extract_strided_slice %18 {offsets = [0, 128], sizes = [8, 128], strides = [1, 1]} : vector<8x384xf32> to vector<8x128xf32>
    %28 = vector.extract_strided_slice %17 {offsets = [0, 128], sizes = [8, 128], strides = [1, 1]} : vector<8x384xf32> to vector<8x128xf32>
    %29 = arith.addf %27, %28 : vector<8x128xf32>
    %30 = arith.negf %29 : vector<8x128xf32>
    %31 = math.exp %30 : vector<8x128xf32>
    %cst_14 = arith.constant 1.000000e+00 : f32
    %32 = vector.broadcast %cst_14 : f32 to vector<8x128xf32>
    %33 = arith.addf %32, %31 : vector<8x128xf32>
    %34 = arith.divf %32, %33 : vector<8x128xf32>
    %35 = vector.extract_strided_slice %18 {offsets = [0, 256], sizes = [8, 128], strides = [1, 1]} : vector<8x384xf32> to vector<8x128xf32>
    %36 = vector.extract_strided_slice %17 {offsets = [0, 256], sizes = [8, 128], strides = [1, 1]} : vector<8x384xf32> to vector<8x128xf32>
    %37 = arith.addf %36, %9 : vector<8x128xf32>
    %38 = arith.mulf %26, %37 : vector<8x128xf32>
    %39 = arith.addf %35, %38 : vector<8x128xf32>
    %40 = math.tanh %39 : vector<8x128xf32>
    %cst_15 = arith.constant 1.000000e+00 : f32
    %41 = vector.broadcast %cst_15 : f32 to vector<8x128xf32>
    %42 = arith.subf %41, %34 : vector<8x128xf32>
    %43 = arith.mulf %42, %40 : vector<8x128xf32>
    %44 = arith.mulf %34, %10 : vector<8x128xf32>
    %45 = arith.addf %43, %44 : vector<8x128xf32>
    %46 = arith.truncf %45 : vector<8x128xf32> to vector<8x128xbf16>
    %c0_16 = arith.constant 0 : index
    %47 = arith.index_cast %12 : i32 to index
    %c0_17 = arith.constant 0 : index
    %c0_18 = arith.constant 0 : index
    %48 = vector.load %arg5[%c0_16, %47, %c0_17, %c0_18] : memref<1x8x8x128xbf16, #tpu.memory_space<vmem>>, vector<1x1x8x128xbf16>
    %49 = vector.shape_cast %48 : vector<1x1x8x128xbf16> to vector<8x128xbf16>
    %50 = vector.shape_cast %46 : vector<8x128xbf16> to vector<1x1x8x128xbf16>
    tpu.vector_store %arg5[%c0_16, %47, %c0_17, %c0_18], %50 {strides = array<i32>} : memref<1x8x8x128xbf16, #tpu.memory_space<vmem>>, vector<1x1x8x128xbf16>,
    %c1_i32 = arith.constant 1 : i32
    %c7_i32_19 = arith.constant 7 : i32
    %51 = arith.subi %c7_i32_19, %c1_i32 : i32
    %52 = arith.select %0, %c1_i32, %51 : i32
    %c0_20 = arith.constant 0 : index
    %53 = arith.index_cast %52 : i32 to index
    %c0_21 = arith.constant 0 : index
    %c0_22 = arith.constant 0 : index
    %54 = vector.load %arg2[%c0_20, %53, %c0_21, %c0_22] : memref<1x8x8x384xbf16, #tpu.memory_space<vmem>>, vector<1x1x8x384xbf16>
    %55 = vector.shape_cast %54 : vector<1x1x8x384xbf16> to vector<8x384xbf16>
    %56 = arith.truncf %45 : vector<8x128xf32> to vector<8x128xbf16>
    %cst_23 = arith.constant dense<0.000000e+00> : vector<8x384xf32>
    %57 = tpu.matmul %56, %5, %cst_23 {dimension_numbers = #tpu.dot_dimension_numbers<[1], [0], [0], [1], [0, 0, 1, 1], [], []>} : vector<8x128xbf16>, vector<128x384xbf16>, vector<8x384xf32> -> vector<8x384xf32>
    %58 = arith.extf %55 : vector<8x384xbf16> to vector<8x384xf32>
    %59 = vector.extract_strided_slice %58 {offsets = [0, 0], sizes = [8, 128], strides = [1, 1]} : vector<8x384xf32> to vector<8x128xf32>
    %60 = vector.extract_strided_slice %57 {offsets = [0, 0], sizes = [8, 128], strides = [1, 1]} : vector<8x384xf32> to vector<8x128xf32>
    %61 = arith.addf %59, %60 : vector<8x128xf32>
    %62 = arith.negf %61 : vector<8x128xf32>
    %63 = math.exp %62 : vector<8x128xf32>
    %cst_24 = arith.constant 1.000000e+00 : f32
    %64 = vector.broadcast %cst_24 : f32 to vector<8x128xf32>
    %65 = arith.addf %64, %63 : vector<8x128xf32>
    %66 = arith.divf %64, %65 : vector<8x128xf32>
    %67 = vector.extract_strided_slice %58 {offsets = [0, 128], sizes = [8, 128], strides = [1, 1]} : vector<8x384xf32> to vector<8x128xf32>
    %68 = vector.extract_strided_slice %57 {offsets = [0, 128], sizes = [8, 128], strides = [1, 1]} : vector<8x384xf32> to vector<8x128xf32>
    %69 = arith.addf %67, %68 : vector<8x128xf32>
    %70 = arith.negf %69 : vector<8x128xf32>
    %71 = math.exp %70 : vector<8x128xf32>
    %cst_25 = arith.constant 1.000000e+00 : f32
    %72 = vector.broadcast %cst_25 : f32 to vector<8x128xf32>
    %73 = arith.addf %72, %71 : vector<8x128xf32>
    %74 = arith.divf %72, %73 : vector<8x128xf32>
    %75 = vector.extract_strided_slice %58 {offsets = [0, 256], sizes = [8, 128], strides = [1, 1]} : vector<8x384xf32> to vector<8x128xf32>
    %76 = vector.extract_strided_slice %57 {offsets = [0, 256], sizes = [8, 128], strides = [1, 1]} : vector<8x384xf32> to vector<8x128xf32>
    %77 = arith.addf %76, %9 : vector<8x128xf32>
    %78 = arith.mulf %66, %77 : vector<8x128xf32>
    %79 = arith.addf %75, %78 : vector<8x128xf32>
    %80 = math.tanh %79 : vector<8x128xf32>
    %cst_26 = arith.constant 1.000000e+00 : f32
    %81 = vector.broadcast %cst_26 : f32 to vector<8x128xf32>
    %82 = arith.subf %81, %74 : vector<8x128xf32>
    %83 = arith.mulf %82, %80 : vector<8x128xf32>
    %84 = arith.mulf %74, %45 : vector<8x128xf32>
    %85 = arith.addf %83, %84 : vector<8x128xf32>
    %86 = arith.truncf %85 : vector<8x128xf32> to vector<8x128xbf16>
    %c0_27 = arith.constant 0 : index
    %87 = arith.index_cast %52 : i32 to index
    %c0_28 = arith.constant 0 : index
    %c0_29 = arith.constant 0 : index
    %88 = vector.load %arg5[%c0_27, %87, %c0_28, %c0_29] : memref<1x8x8x128xbf16, #tpu.memory_space<vmem>>, vector<1x1x8x128xbf16>
    %89 = vector.shape_cast %88 : vector<1x1x8x128xbf16> to vector<8x128xbf16>
    %90 = vector.shape_cast %86 : vector<8x128xbf16> to vector<1x1x8x128xbf16>
    tpu.vector_store %arg5[%c0_27, %87, %c0_28, %c0_29], %90 {strides = array<i32>} : memref<1x8x8x128xbf16, #tpu.memory_space<vmem>>, vector<1x1x8x128xbf16>,
    %c2_i32 = arith.constant 2 : i32
    %c7_i32_30 = arith.constant 7 : i32
    %91 = arith.subi %c7_i32_30, %c2_i32 : i32
    %92 = arith.select %0, %c2_i32, %91 : i32
    %c0_31 = arith.constant 0 : index
    %93 = arith.index_cast %92 : i32 to index
    %c0_32 = arith.constant 0 : index
    %c0_33 = arith.constant 0 : index
    %94 = vector.load %arg2[%c0_31, %93, %c0_32, %c0_33] : memref<1x8x8x384xbf16, #tpu.memory_space<vmem>>, vector<1x1x8x384xbf16>
    %95 = vector.shape_cast %94 : vector<1x1x8x384xbf16> to vector<8x384xbf16>
    %96 = arith.truncf %85 : vector<8x128xf32> to vector<8x128xbf16>
    %cst_34 = arith.constant dense<0.000000e+00> : vector<8x384xf32>
    %97 = tpu.matmul %96, %5, %cst_34 {dimension_numbers = #tpu.dot_dimension_numbers<[1], [0], [0], [1], [0, 0, 1, 1], [], []>} : vector<8x128xbf16>, vector<128x384xbf16>, vector<8x384xf32> -> vector<8x384xf32>
    %98 = arith.extf %95 : vector<8x384xbf16> to vector<8x384xf32>
    %99 = vector.extract_strided_slice %98 {offsets = [0, 0], sizes = [8, 128], strides = [1, 1]} : vector<8x384xf32> to vector<8x128xf32>
    %100 = vector.extract_strided_slice %97 {offsets = [0, 0], sizes = [8, 128], strides = [1, 1]} : vector<8x384xf32> to vector<8x128xf32>
    %101 = arith.addf %99, %100 : vector<8x128xf32>
    %102 = arith.negf %101 : vector<8x128xf32>
    %103 = math.exp %102 : vector<8x128xf32>
    %cst_35 = arith.constant 1.000000e+00 : f32
    %104 = vector.broadcast %cst_35 : f32 to vector<8x128xf32>
    %105 = arith.addf %104, %103 : vector<8x128xf32>
    %106 = arith.divf %104, %105 : vector<8x128xf32>
    %107 = vector.extract_strided_slice %98 {offsets = [0, 128], sizes = [8, 128], strides = [1, 1]} : vector<8x384xf32> to vector<8x128xf32>
    %108 = vector.extract_strided_slice %97 {offsets = [0, 128], sizes = [8, 128], strides = [1, 1]} : vector<8x384xf32> to vector<8x128xf32>
    %109 = arith.addf %107, %108 : vector<8x128xf32>
    %110 = arith.negf %109 : vector<8x128xf32>
    %111 = math.exp %110 : vector<8x128xf32>
    %cst_36 = arith.constant 1.000000e+00 : f32
    %112 = vector.broadcast %cst_36 : f32 to vector<8x128xf32>
    %113 = arith.addf %112, %111 : vector<8x128xf32>
    %114 = arith.divf %112, %113 : vector<8x128xf32>
    %115 = vector.extract_strided_slice %98 {offsets = [0, 256], sizes = [8, 128], strides = [1, 1]} : vector<8x384xf32> to vector<8x128xf32>
    %116 = vector.extract_strided_slice %97 {offsets = [0, 256], sizes = [8, 128], strides = [1, 1]} : vector<8x384xf32> to vector<8x128xf32>
    %117 = arith.addf %116, %9 : vector<8x128xf32>
    %118 = arith.mulf %106, %117 : vector<8x128xf32>
    %119 = arith.addf %115, %118 : vector<8x128xf32>
    %120 = math.tanh %119 : vector<8x128xf32>
    %cst_37 = arith.constant 1.000000e+00 : f32
    %121 = vector.broadcast %cst_37 : f32 to vector<8x128xf32>
    %122 = arith.subf %121, %114 : vector<8x128xf32>
    %123 = arith.mulf %122, %120 : vector<8x128xf32>
    %124 = arith.mulf %114, %85 : vector<8x128xf32>
    %125 = arith.addf %123, %124 : vector<8x128xf32>
    %126 = arith.truncf %125 : vector<8x128xf32> to vector<8x128xbf16>
    %c0_38 = arith.constant 0 : index
    %127 = arith.index_cast %92 : i32 to index
    %c0_39 = arith.constant 0 : index
    %c0_40 = arith.constant 0 : index
    %128 = vector.load %arg5[%c0_38, %127, %c0_39, %c0_40] : memref<1x8x8x128xbf16, #tpu.memory_space<vmem>>, vector<1x1x8x128xbf16>
    %129 = vector.shape_cast %128 : vector<1x1x8x128xbf16> to vector<8x128xbf16>
    %130 = vector.shape_cast %126 : vector<8x128xbf16> to vector<1x1x8x128xbf16>
    tpu.vector_store %arg5[%c0_38, %127, %c0_39, %c0_40], %130 {strides = array<i32>} : memref<1x8x8x128xbf16, #tpu.memory_space<vmem>>, vector<1x1x8x128xbf16>,
    %c3_i32 = arith.constant 3 : i32
    %c7_i32_41 = arith.constant 7 : i32
    %131 = arith.subi %c7_i32_41, %c3_i32 : i32
    %132 = arith.select %0, %c3_i32, %131 : i32
    %c0_42 = arith.constant 0 : index
    %133 = arith.index_cast %132 : i32 to index
    %c0_43 = arith.constant 0 : index
    %c0_44 = arith.constant 0 : index
    %134 = vector.load %arg2[%c0_42, %133, %c0_43, %c0_44] : memref<1x8x8x384xbf16, #tpu.memory_space<vmem>>, vector<1x1x8x384xbf16>
    %135 = vector.shape_cast %134 : vector<1x1x8x384xbf16> to vector<8x384xbf16>
    %136 = arith.truncf %125 : vector<8x128xf32> to vector<8x128xbf16>
    %cst_45 = arith.constant dense<0.000000e+00> : vector<8x384xf32>
    %137 = tpu.matmul %136, %5, %cst_45 {dimension_numbers = #tpu.dot_dimension_numbers<[1], [0], [0], [1], [0, 0, 1, 1], [], []>} : vector<8x128xbf16>, vector<128x384xbf16>, vector<8x384xf32> -> vector<8x384xf32>
    %138 = arith.extf %135 : vector<8x384xbf16> to vector<8x384xf32>
    %139 = vector.extract_strided_slice %138 {offsets = [0, 0], sizes = [8, 128], strides = [1, 1]} : vector<8x384xf32> to vector<8x128xf32>
    %140 = vector.extract_strided_slice %137 {offsets = [0, 0], sizes = [8, 128], strides = [1, 1]} : vector<8x384xf32> to vector<8x128xf32>
    %141 = arith.addf %139, %140 : vector<8x128xf32>
    %142 = arith.negf %141 : vector<8x128xf32>
    %143 = math.exp %142 : vector<8x128xf32>
    %cst_46 = arith.constant 1.000000e+00 : f32
    %144 = vector.broadcast %cst_46 : f32 to vector<8x128xf32>
    %145 = arith.addf %144, %143 : vector<8x128xf32>
    %146 = arith.divf %144, %145 : vector<8x128xf32>
    %147 = vector.extract_strided_slice %138 {offsets = [0, 128], sizes = [8, 128], strides = [1, 1]} : vector<8x384xf32> to vector<8x128xf32>
    %148 = vector.extract_strided_slice %137 {offsets = [0, 128], sizes = [8, 128], strides = [1, 1]} : vector<8x384xf32> to vector<8x128xf32>
    %149 = arith.addf %147, %148 : vector<8x128xf32>
    %150 = arith.negf %149 : vector<8x128xf32>
    %151 = math.exp %150 : vector<8x128xf32>
    %cst_47 = arith.constant 1.000000e+00 : f32
    %152 = vector.broadcast %cst_47 : f32 to vector<8x128xf32>
    %153 = arith.addf %152, %151 : vector<8x128xf32>
    %154 = arith.divf %152, %153 : vector<8x128xf32>
    %155 = vector.extract_strided_slice %138 {offsets = [0, 256], sizes = [8, 128], strides = [1, 1]} : vector<8x384xf32> to vector<8x128xf32>
    %156 = vector.extract_strided_slice %137 {offsets = [0, 256], sizes = [8, 128], strides = [1, 1]} : vector<8x384xf32> to vector<8x128xf32>
    %157 = arith.addf %156, %9 : vector<8x128xf32>
    %158 = arith.mulf %146, %157 : vector<8x128xf32>
    %159 = arith.addf %155, %158 : vector<8x128xf32>
    %160 = math.tanh %159 : vector<8x128xf32>
    %cst_48 = arith.constant 1.000000e+00 : f32
    %161 = vector.broadcast %cst_48 : f32 to vector<8x128xf32>
    %162 = arith.subf %161, %154 : vector<8x128xf32>
    %163 = arith.mulf %162, %160 : vector<8x128xf32>
    %164 = arith.mulf %154, %125 : vector<8x128xf32>
    %165 = arith.addf %163, %164 : vector<8x128xf32>
    %166 = arith.truncf %165 : vector<8x128xf32> to vector<8x128xbf16>
    %c0_49 = arith.constant 0 : index
    %167 = arith.index_cast %132 : i32 to index
    %c0_50 = arith.constant 0 : index
    %c0_51 = arith.constant 0 : index
    %168 = vector.load %arg5[%c0_49, %167, %c0_50, %c0_51] : memref<1x8x8x128xbf16, #tpu.memory_space<vmem>>, vector<1x1x8x128xbf16>
    %169 = vector.shape_cast %168 : vector<1x1x8x128xbf16> to vector<8x128xbf16>
    %170 = vector.shape_cast %166 : vector<8x128xbf16> to vector<1x1x8x128xbf16>
    tpu.vector_store %arg5[%c0_49, %167, %c0_50, %c0_51], %170 {strides = array<i32>} : memref<1x8x8x128xbf16, #tpu.memory_space<vmem>>, vector<1x1x8x128xbf16>,
    %c4_i32 = arith.constant 4 : i32
    %c7_i32_52 = arith.constant 7 : i32
    %171 = arith.subi %c7_i32_52, %c4_i32 : i32
    %172 = arith.select %0, %c4_i32, %171 : i32
    %c0_53 = arith.constant 0 : index
    %173 = arith.index_cast %172 : i32 to index
    %c0_54 = arith.constant 0 : index
    %c0_55 = arith.constant 0 : index
    %174 = vector.load %arg2[%c0_53, %173, %c0_54, %c0_55] : memref<1x8x8x384xbf16, #tpu.memory_space<vmem>>, vector<1x1x8x384xbf16>
    %175 = vector.shape_cast %174 : vector<1x1x8x384xbf16> to vector<8x384xbf16>
    %176 = arith.truncf %165 : vector<8x128xf32> to vector<8x128xbf16>
    %cst_56 = arith.constant dense<0.000000e+00> : vector<8x384xf32>
    %177 = tpu.matmul %176, %5, %cst_56 {dimension_numbers = #tpu.dot_dimension_numbers<[1], [0], [0], [1], [0, 0, 1, 1], [], []>} : vector<8x128xbf16>, vector<128x384xbf16>, vector<8x384xf32> -> vector<8x384xf32>
    %178 = arith.extf %175 : vector<8x384xbf16> to vector<8x384xf32>
    %179 = vector.extract_strided_slice %178 {offsets = [0, 0], sizes = [8, 128], strides = [1, 1]} : vector<8x384xf32> to vector<8x128xf32>
    %180 = vector.extract_strided_slice %177 {offsets = [0, 0], sizes = [8, 128], strides = [1, 1]} : vector<8x384xf32> to vector<8x128xf32>
    %181 = arith.addf %179, %180 : vector<8x128xf32>
    %182 = arith.negf %181 : vector<8x128xf32>
    %183 = math.exp %182 : vector<8x128xf32>
    %cst_57 = arith.constant 1.000000e+00 : f32
    %184 = vector.broadcast %cst_57 : f32 to vector<8x128xf32>
    %185 = arith.addf %184, %183 : vector<8x128xf32>
    %186 = arith.divf %184, %185 : vector<8x128xf32>
    %187 = vector.extract_strided_slice %178 {offsets = [0, 128], sizes = [8, 128], strides = [1, 1]} : vector<8x384xf32> to vector<8x128xf32>
    %188 = vector.extract_strided_slice %177 {offsets = [0, 128], sizes = [8, 128], strides = [1, 1]} : vector<8x384xf32> to vector<8x128xf32>
    %189 = arith.addf %187, %188 : vector<8x128xf32>
    %190 = arith.negf %189 : vector<8x128xf32>
    %191 = math.exp %190 : vector<8x128xf32>
    %cst_58 = arith.constant 1.000000e+00 : f32
    %192 = vector.broadcast %cst_58 : f32 to vector<8x128xf32>
    %193 = arith.addf %192, %191 : vector<8x128xf32>
    %194 = arith.divf %192, %193 : vector<8x128xf32>
    %195 = vector.extract_strided_slice %178 {offsets = [0, 256], sizes = [8, 128], strides = [1, 1]} : vector<8x384xf32> to vector<8x128xf32>
    %196 = vector.extract_strided_slice %177 {offsets = [0, 256], sizes = [8, 128], strides = [1, 1]} : vector<8x384xf32> to vector<8x128xf32>
    %197 = arith.addf %196, %9 : vector<8x128xf32>
    %198 = arith.mulf %186, %197 : vector<8x128xf32>
    %199 = arith.addf %195, %198 : vector<8x128xf32>
    %200 = math.tanh %199 : vector<8x128xf32>
    %cst_59 = arith.constant 1.000000e+00 : f32
    %201 = vector.broadcast %cst_59 : f32 to vector<8x128xf32>
    %202 = arith.subf %201, %194 : vector<8x128xf32>
    %203 = arith.mulf %202, %200 : vector<8x128xf32>
    %204 = arith.mulf %194, %165 : vector<8x128xf32>
    %205 = arith.addf %203, %204 : vector<8x128xf32>
    %206 = arith.truncf %205 : vector<8x128xf32> to vector<8x128xbf16>
    %c0_60 = arith.constant 0 : index
    %207 = arith.index_cast %172 : i32 to index
    %c0_61 = arith.constant 0 : index
    %c0_62 = arith.constant 0 : index
    %208 = vector.load %arg5[%c0_60, %207, %c0_61, %c0_62] : memref<1x8x8x128xbf16, #tpu.memory_space<vmem>>, vector<1x1x8x128xbf16>
    %209 = vector.shape_cast %208 : vector<1x1x8x128xbf16> to vector<8x128xbf16>
    %210 = vector.shape_cast %206 : vector<8x128xbf16> to vector<1x1x8x128xbf16>
    tpu.vector_store %arg5[%c0_60, %207, %c0_61, %c0_62], %210 {strides = array<i32>} : memref<1x8x8x128xbf16, #tpu.memory_space<vmem>>, vector<1x1x8x128xbf16>,
    %c5_i32 = arith.constant 5 : i32
    %c7_i32_63 = arith.constant 7 : i32
    %211 = arith.subi %c7_i32_63, %c5_i32 : i32
    %212 = arith.select %0, %c5_i32, %211 : i32
    %c0_64 = arith.constant 0 : index
    %213 = arith.index_cast %212 : i32 to index
    %c0_65 = arith.constant 0 : index
    %c0_66 = arith.constant 0 : index
    %214 = vector.load %arg2[%c0_64, %213, %c0_65, %c0_66] : memref<1x8x8x384xbf16, #tpu.memory_space<vmem>>, vector<1x1x8x384xbf16>
    %215 = vector.shape_cast %214 : vector<1x1x8x384xbf16> to vector<8x384xbf16>
    %216 = arith.truncf %205 : vector<8x128xf32> to vector<8x128xbf16>
    %cst_67 = arith.constant dense<0.000000e+00> : vector<8x384xf32>
    %217 = tpu.matmul %216, %5, %cst_67 {dimension_numbers = #tpu.dot_dimension_numbers<[1], [0], [0], [1], [0, 0, 1, 1], [], []>} : vector<8x128xbf16>, vector<128x384xbf16>, vector<8x384xf32> -> vector<8x384xf32>
    %218 = arith.extf %215 : vector<8x384xbf16> to vector<8x384xf32>
    %219 = vector.extract_strided_slice %218 {offsets = [0, 0], sizes = [8, 128], strides = [1, 1]} : vector<8x384xf32> to vector<8x128xf32>
    %220 = vector.extract_strided_slice %217 {offsets = [0, 0], sizes = [8, 128], strides = [1, 1]} : vector<8x384xf32> to vector<8x128xf32>
    %221 = arith.addf %219, %220 : vector<8x128xf32>
    %222 = arith.negf %221 : vector<8x128xf32>
    %223 = math.exp %222 : vector<8x128xf32>
    %cst_68 = arith.constant 1.000000e+00 : f32
    %224 = vector.broadcast %cst_68 : f32 to vector<8x128xf32>
    %225 = arith.addf %224, %223 : vector<8x128xf32>
    %226 = arith.divf %224, %225 : vector<8x128xf32>
    %227 = vector.extract_strided_slice %218 {offsets = [0, 128], sizes = [8, 128], strides = [1, 1]} : vector<8x384xf32> to vector<8x128xf32>
    %228 = vector.extract_strided_slice %217 {offsets = [0, 128], sizes = [8, 128], strides = [1, 1]} : vector<8x384xf32> to vector<8x128xf32>
    %229 = arith.addf %227, %228 : vector<8x128xf32>
    %230 = arith.negf %229 : vector<8x128xf32>
    %231 = math.exp %230 : vector<8x128xf32>
    %cst_69 = arith.constant 1.000000e+00 : f32
    %232 = vector.broadcast %cst_69 : f32 to vector<8x128xf32>
    %233 = arith.addf %232, %231 : vector<8x128xf32>
    %234 = arith.divf %232, %233 : vector<8x128xf32>
    %235 = vector.extract_strided_slice %218 {offsets = [0, 256], sizes = [8, 128], strides = [1, 1]} : vector<8x384xf32> to vector<8x128xf32>
    %236 = vector.extract_strided_slice %217 {offsets = [0, 256], sizes = [8, 128], strides = [1, 1]} : vector<8x384xf32> to vector<8x128xf32>
    %237 = arith.addf %236, %9 : vector<8x128xf32>
    %238 = arith.mulf %226, %237 : vector<8x128xf32>
    %239 = arith.addf %235, %238 : vector<8x128xf32>
    %240 = math.tanh %239 : vector<8x128xf32>
    %cst_70 = arith.constant 1.000000e+00 : f32
    %241 = vector.broadcast %cst_70 : f32 to vector<8x128xf32>
    %242 = arith.subf %241, %234 : vector<8x128xf32>
    %243 = arith.mulf %242, %240 : vector<8x128xf32>
    %244 = arith.mulf %234, %205 : vector<8x128xf32>
    %245 = arith.addf %243, %244 : vector<8x128xf32>
    %246 = arith.truncf %245 : vector<8x128xf32> to vector<8x128xbf16>
    %c0_71 = arith.constant 0 : index
    %247 = arith.index_cast %212 : i32 to index
    %c0_72 = arith.constant 0 : index
    %c0_73 = arith.constant 0 : index
    %248 = vector.load %arg5[%c0_71, %247, %c0_72, %c0_73] : memref<1x8x8x128xbf16, #tpu.memory_space<vmem>>, vector<1x1x8x128xbf16>
    %249 = vector.shape_cast %248 : vector<1x1x8x128xbf16> to vector<8x128xbf16>
    %250 = vector.shape_cast %246 : vector<8x128xbf16> to vector<1x1x8x128xbf16>
    tpu.vector_store %arg5[%c0_71, %247, %c0_72, %c0_73], %250 {strides = array<i32>} : memref<1x8x8x128xbf16, #tpu.memory_space<vmem>>, vector<1x1x8x128xbf16>,
    %c6_i32 = arith.constant 6 : i32
    %c7_i32_74 = arith.constant 7 : i32
    %251 = arith.subi %c7_i32_74, %c6_i32 : i32
    %252 = arith.select %0, %c6_i32, %251 : i32
    %c0_75 = arith.constant 0 : index
    %253 = arith.index_cast %252 : i32 to index
    %c0_76 = arith.constant 0 : index
    %c0_77 = arith.constant 0 : index
    %254 = vector.load %arg2[%c0_75, %253, %c0_76, %c0_77] : memref<1x8x8x384xbf16, #tpu.memory_space<vmem>>, vector<1x1x8x384xbf16>
    %255 = vector.shape_cast %254 : vector<1x1x8x384xbf16> to vector<8x384xbf16>
    %256 = arith.truncf %245 : vector<8x128xf32> to vector<8x128xbf16>
    %cst_78 = arith.constant dense<0.000000e+00> : vector<8x384xf32>
    %257 = tpu.matmul %256, %5, %cst_78 {dimension_numbers = #tpu.dot_dimension_numbers<[1], [0], [0], [1], [0, 0, 1, 1], [], []>} : vector<8x128xbf16>, vector<128x384xbf16>, vector<8x384xf32> -> vector<8x384xf32>
    %258 = arith.extf %255 : vector<8x384xbf16> to vector<8x384xf32>
    %259 = vector.extract_strided_slice %258 {offsets = [0, 0], sizes = [8, 128], strides = [1, 1]} : vector<8x384xf32> to vector<8x128xf32>
    %260 = vector.extract_strided_slice %257 {offsets = [0, 0], sizes = [8, 128], strides = [1, 1]} : vector<8x384xf32> to vector<8x128xf32>
    %261 = arith.addf %259, %260 : vector<8x128xf32>
    %262 = arith.negf %261 : vector<8x128xf32>
    %263 = math.exp %262 : vector<8x128xf32>
    %cst_79 = arith.constant 1.000000e+00 : f32
    %264 = vector.broadcast %cst_79 : f32 to vector<8x128xf32>
    %265 = arith.addf %264, %263 : vector<8x128xf32>
    %266 = arith.divf %264, %265 : vector<8x128xf32>
    %267 = vector.extract_strided_slice %258 {offsets = [0, 128], sizes = [8, 128], strides = [1, 1]} : vector<8x384xf32> to vector<8x128xf32>
    %268 = vector.extract_strided_slice %257 {offsets = [0, 128], sizes = [8, 128], strides = [1, 1]} : vector<8x384xf32> to vector<8x128xf32>
    %269 = arith.addf %267, %268 : vector<8x128xf32>
    %270 = arith.negf %269 : vector<8x128xf32>
    %271 = math.exp %270 : vector<8x128xf32>
    %cst_80 = arith.constant 1.000000e+00 : f32
    %272 = vector.broadcast %cst_80 : f32 to vector<8x128xf32>
    %273 = arith.addf %272, %271 : vector<8x128xf32>
    %274 = arith.divf %272, %273 : vector<8x128xf32>
    %275 = vector.extract_strided_slice %258 {offsets = [0, 256], sizes = [8, 128], strides = [1, 1]} : vector<8x384xf32> to vector<8x128xf32>
    %276 = vector.extract_strided_slice %257 {offsets = [0, 256], sizes = [8, 128], strides = [1, 1]} : vector<8x384xf32> to vector<8x128xf32>
    %277 = arith.addf %276, %9 : vector<8x128xf32>
    %278 = arith.mulf %266, %277 : vector<8x128xf32>
    %279 = arith.addf %275, %278 : vector<8x128xf32>
    %280 = math.tanh %279 : vector<8x128xf32>
    %cst_81 = arith.constant 1.000000e+00 : f32
    %281 = vector.broadcast %cst_81 : f32 to vector<8x128xf32>
    %282 = arith.subf %281, %274 : vector<8x128xf32>
    %283 = arith.mulf %282, %280 : vector<8x128xf32>
    %284 = arith.mulf %274, %245 : vector<8x128xf32>
    %285 = arith.addf %283, %284 : vector<8x128xf32>
    %286 = arith.truncf %285 : vector<8x128xf32> to vector<8x128xbf16>
    %c0_82 = arith.constant 0 : index
    %287 = arith.index_cast %252 : i32 to index
    %c0_83 = arith.constant 0 : index
    %c0_84 = arith.constant 0 : index
    %288 = vector.load %arg5[%c0_82, %287, %c0_83, %c0_84] : memref<1x8x8x128xbf16, #tpu.memory_space<vmem>>, vector<1x1x8x128xbf16>
    %289 = vector.shape_cast %288 : vector<1x1x8x128xbf16> to vector<8x128xbf16>
    %290 = vector.shape_cast %286 : vector<8x128xbf16> to vector<1x1x8x128xbf16>
    tpu.vector_store %arg5[%c0_82, %287, %c0_83, %c0_84], %290 {strides = array<i32>} : memref<1x8x8x128xbf16, #tpu.memory_space<vmem>>, vector<1x1x8x128xbf16>,
    %c7_i32_85 = arith.constant 7 : i32
    %c7_i32_86 = arith.constant 7 : i32
    %291 = arith.subi %c7_i32_86, %c7_i32_85 : i32
    %292 = arith.select %0, %c7_i32_85, %291 : i32
    %c0_87 = arith.constant 0 : index
    %293 = arith.index_cast %292 : i32 to index
    %c0_88 = arith.constant 0 : index
    %c0_89 = arith.constant 0 : index
    %294 = vector.load %arg2[%c0_87, %293, %c0_88, %c0_89] : memref<1x8x8x384xbf16, #tpu.memory_space<vmem>>, vector<1x1x8x384xbf16>
    %295 = vector.shape_cast %294 : vector<1x1x8x384xbf16> to vector<8x384xbf16>
    %296 = arith.truncf %285 : vector<8x128xf32> to vector<8x128xbf16>
    %cst_90 = arith.constant dense<0.000000e+00> : vector<8x384xf32>
    %297 = tpu.matmul %296, %5, %cst_90 {dimension_numbers = #tpu.dot_dimension_numbers<[1], [0], [0], [1], [0, 0, 1, 1], [], []>} : vector<8x128xbf16>, vector<128x384xbf16>, vector<8x384xf32> -> vector<8x384xf32>
    %298 = arith.extf %295 : vector<8x384xbf16> to vector<8x384xf32>
    %299 = vector.extract_strided_slice %298 {offsets = [0, 0], sizes = [8, 128], strides = [1, 1]} : vector<8x384xf32> to vector<8x128xf32>
    %300 = vector.extract_strided_slice %297 {offsets = [0, 0], sizes = [8, 128], strides = [1, 1]} : vector<8x384xf32> to vector<8x128xf32>
    %301 = arith.addf %299, %300 : vector<8x128xf32>
    %302 = arith.negf %301 : vector<8x128xf32>
    %303 = math.exp %302 : vector<8x128xf32>
    %cst_91 = arith.constant 1.000000e+00 : f32
    %304 = vector.broadcast %cst_91 : f32 to vector<8x128xf32>
    %305 = arith.addf %304, %303 : vector<8x128xf32>
    %306 = arith.divf %304, %305 : vector<8x128xf32>
    %307 = vector.extract_strided_slice %298 {offsets = [0, 128], sizes = [8, 128], strides = [1, 1]} : vector<8x384xf32> to vector<8x128xf32>
    %308 = vector.extract_strided_slice %297 {offsets = [0, 128], sizes = [8, 128], strides = [1, 1]} : vector<8x384xf32> to vector<8x128xf32>
    %309 = arith.addf %307, %308 : vector<8x128xf32>
    %310 = arith.negf %309 : vector<8x128xf32>
    %311 = math.exp %310 : vector<8x128xf32>
    %cst_92 = arith.constant 1.000000e+00 : f32
    %312 = vector.broadcast %cst_92 : f32 to vector<8x128xf32>
    %313 = arith.addf %312, %311 : vector<8x128xf32>
    %314 = arith.divf %312, %313 : vector<8x128xf32>
    %315 = vector.extract_strided_slice %298 {offsets = [0, 256], sizes = [8, 128], strides = [1, 1]} : vector<8x384xf32> to vector<8x128xf32>
    %316 = vector.extract_strided_slice %297 {offsets = [0, 256], sizes = [8, 128], strides = [1, 1]} : vector<8x384xf32> to vector<8x128xf32>
    %317 = arith.addf %316, %9 : vector<8x128xf32>
    %318 = arith.mulf %306, %317 : vector<8x128xf32>
    %319 = arith.addf %315, %318 : vector<8x128xf32>
    %320 = math.tanh %319 : vector<8x128xf32>
    %cst_93 = arith.constant 1.000000e+00 : f32
    %321 = vector.broadcast %cst_93 : f32 to vector<8x128xf32>
    %322 = arith.subf %321, %314 : vector<8x128xf32>
    %323 = arith.mulf %322, %320 : vector<8x128xf32>
    %324 = arith.mulf %314, %285 : vector<8x128xf32>
    %325 = arith.addf %323, %324 : vector<8x128xf32>
    %326 = arith.truncf %325 : vector<8x128xf32> to vector<8x128xbf16>
    %c0_94 = arith.constant 0 : index
    %327 = arith.index_cast %292 : i32 to index
    %c0_95 = arith.constant 0 : index
    %c0_96 = arith.constant 0 : index
    %328 = vector.load %arg5[%c0_94, %327, %c0_95, %c0_96] : memref<1x8x8x128xbf16, #tpu.memory_space<vmem>>, vector<1x1x8x128xbf16>
    %329 = vector.shape_cast %328 : vector<1x1x8x128xbf16> to vector<8x128xbf16>
    %330 = vector.shape_cast %326 : vector<8x128xbf16> to vector<1x1x8x128xbf16>
    tpu.vector_store %arg5[%c0_94, %327, %c0_95, %c0_96], %330 {strides = array<i32>} : memref<1x8x8x128xbf16, #tpu.memory_space<vmem>>, vector<1x1x8x128xbf16>,
    %c8_i32 = arith.constant 8 : i32
    %c0_97 = arith.constant 0 : index
    %c0_98 = arith.constant 0 : index
    %331 = vector.load %arg6[%c0_97, %c0_98] : memref<8x128xf32, #tpu.memory_space<vmem>>, vector<8x128xf32>
    tpu.vector_store %arg6[%c0_97, %c0_98], %325 {strides = array<i32>} : memref<8x128xf32, #tpu.memory_space<vmem>>, vector<8x128xf32>,
    return
  }
  func.func @transform_0(%arg0: i32, %arg1: i32) -> (i32, i32, i32, i32) {
    %c2_i32 = arith.constant 2 : i32
    %0 = arith.muli %c2_i32, %arg1 : i32
    %c0_i32 = arith.constant 0 : i32
    %1 = arith.subi %c0_i32, %0 : i32
    %2 = arith.muli %arg0, %1 : i32
    %3 = arith.addi %arg1, %2 : i32
    %c0_i32_0 = arith.constant 0 : i32
    %c0_i32_1 = arith.constant 0 : i32
    %c0_i32_2 = arith.constant 0 : i32
    return %arg0, %3, %c0_i32_0, %c0_i32_1 : i32, i32, i32, i32
  }
  func.func @transform_1(%arg0: i32, %arg1: i32) -> (i32, i32, i32) {
    %c0_i32 = arith.constant 0 : i32
    %c0_i32_0 = arith.constant 0 : i32
    %c0_i32_1 = arith.constant 0 : i32
    return %arg0, %c0_i32, %c0_i32_0 : i32, i32, i32
  }
  func.func @transform_2(%arg0: i32, %arg1: i32) -> (i32, i32, i32) {
    %c0_i32 = arith.constant 0 : i32
    %c0_i32_0 = arith.constant 0 : i32
    %c0_i32_1 = arith.constant 0 : i32
    return %arg0, %c0_i32, %c0_i32_0 : i32, i32, i32
  }
  func.func @transform_3(%arg0: i32, %arg1: i32) -> (i32, i32, i32, i32) {
    %c2_i32 = arith.constant 2 : i32
    %0 = arith.muli %c2_i32, %arg1 : i32
    %c0_i32 = arith.constant 0 : i32
    %1 = arith.subi %c0_i32, %0 : i32
    %2 = arith.muli %arg0, %1 : i32
    %3 = arith.addi %arg1, %2 : i32
    %c0_i32_0 = arith.constant 0 : i32
    %c0_i32_1 = arith.constant 0 : i32
    %c0_i32_2 = arith.constant 0 : i32
    return %arg0, %3, %c0_i32_0, %c0_i32_1 : i32, i32, i32, i32
  }
}

module attributes {stable_mosaic.version = 11 : i64} {
  func.func @_proj2_kernel(%arg0: i32, %arg1: memref<2x4x8x128xbf16, #tpu.memory_space<vmem>>, %arg2: memref<256x384xbf16, #tpu.memory_space<vmem>>, %arg3: memref<256x384xbf16, #tpu.memory_space<vmem>>, %arg4: memref<1x384xf32, #tpu.memory_space<vmem>>, %arg5: memref<1x384xf32, #tpu.memory_space<vmem>>, %arg6: memref<2x4x8x384xbf16, #tpu.memory_space<vmem>>) attributes {dimension_semantics = [#tpu.dimension_semantics<parallel>], iteration_bounds = array<i64: 2>, scalar_prefetch = 0 : i64, scratch_operands = 0 : i64, tpu.core_type = #tpu.core_type<tc>, window_params = [{transform_indices = @transform_0, window_bounds = array<i64: 2, 4, 8, 128>}, {pipeline_mode = #tpu.pipeline_mode<synchronous>, transform_indices = @transform_1, window_bounds = array<i64: 256, 384>}, {pipeline_mode = #tpu.pipeline_mode<synchronous>, transform_indices = @transform_2, window_bounds = array<i64: 256, 384>}, {pipeline_mode = #tpu.pipeline_mode<synchronous>, transform_indices = @transform_3, window_bounds = array<i64: 1, 384>}, {pipeline_mode = #tpu.pipeline_mode<synchronous>, transform_indices = @transform_4, window_bounds = array<i64: 1, 384>}, {transform_indices = @transform_5, window_bounds = array<i64: 2, 4, 8, 384>}]} {
    %c0 = arith.constant 0 : index
    %c0_0 = arith.constant 0 : index
    %c0_1 = arith.constant 0 : index
    %c0_2 = arith.constant 0 : index
    %0 = vector.load %arg1[%c0, %c0_0, %c0_1, %c0_2] : memref<2x4x8x128xbf16, #tpu.memory_space<vmem>>, vector<1x4x8x128xbf16>
    %1 = vector.shape_cast %0 : vector<1x4x8x128xbf16> to vector<4x8x128xbf16>
    %2 = vector.shape_cast %1 : vector<4x8x128xbf16> to vector<32x128xbf16>
    %c1 = arith.constant 1 : index
    %c0_3 = arith.constant 0 : index
    %c0_4 = arith.constant 0 : index
    %c0_5 = arith.constant 0 : index
    %3 = vector.load %arg1[%c1, %c0_3, %c0_4, %c0_5] : memref<2x4x8x128xbf16, #tpu.memory_space<vmem>>, vector<1x4x8x128xbf16>
    %4 = vector.shape_cast %3 : vector<1x4x8x128xbf16> to vector<4x8x128xbf16>
    %5 = vector.shape_cast %4 : vector<4x8x128xbf16> to vector<32x128xbf16>
    %6 = tpu.concatenate %2, %5 in 1 : vector<32x128xbf16>, vector<32x128xbf16> -> vector<32x256xbf16>
    %c0_6 = arith.constant 0 : index
    %c0_7 = arith.constant 0 : index
    %7 = vector.load %arg2[%c0_6, %c0_7] : memref<256x384xbf16, #tpu.memory_space<vmem>>, vector<256x384xbf16>
    %cst = arith.constant dense<0.000000e+00> : vector<32x384xf32>
    %8 = tpu.matmul %6, %7, %cst {dimension_numbers = #tpu.dot_dimension_numbers<[1], [0], [0], [1], [0, 0, 1, 1], [], []>} : vector<32x256xbf16>, vector<256x384xbf16>, vector<32x384xf32> -> vector<32x384xf32>
    %c0_8 = arith.constant 0 : index
    %c0_9 = arith.constant 0 : index
    %9 = vector.load %arg4[%c0_8, %c0_9] : memref<1x384xf32, #tpu.memory_space<vmem>>, vector<1x384xf32>
    %10 = vector.broadcast %9 : vector<1x384xf32> to vector<32x384xf32>
    %11 = arith.addf %8, %10 : vector<32x384xf32>
    %12 = vector.shape_cast %11 : vector<32x384xf32> to vector<4x8x384xf32>
    %13 = arith.truncf %12 : vector<4x8x384xf32> to vector<4x8x384xbf16>
    %c0_10 = arith.constant 0 : index
    %c0_11 = arith.constant 0 : index
    %c0_12 = arith.constant 0 : index
    %c0_13 = arith.constant 0 : index
    %14 = vector.load %arg6[%c0_10, %c0_11, %c0_12, %c0_13] : memref<2x4x8x384xbf16, #tpu.memory_space<vmem>>, vector<1x4x8x384xbf16>
    %15 = vector.shape_cast %14 : vector<1x4x8x384xbf16> to vector<4x8x384xbf16>
    %16 = vector.shape_cast %13 : vector<4x8x384xbf16> to vector<1x4x8x384xbf16>
    tpu.vector_store %arg6[%c0_10, %c0_11, %c0_12, %c0_13], %16 {strides = array<i32>} : memref<2x4x8x384xbf16, #tpu.memory_space<vmem>>, vector<1x4x8x384xbf16>,
    %c0_14 = arith.constant 0 : index
    %c0_15 = arith.constant 0 : index
    %17 = vector.load %arg3[%c0_14, %c0_15] : memref<256x384xbf16, #tpu.memory_space<vmem>>, vector<256x384xbf16>
    %cst_16 = arith.constant dense<0.000000e+00> : vector<32x384xf32>
    %18 = tpu.matmul %6, %17, %cst_16 {dimension_numbers = #tpu.dot_dimension_numbers<[1], [0], [0], [1], [0, 0, 1, 1], [], []>} : vector<32x256xbf16>, vector<256x384xbf16>, vector<32x384xf32> -> vector<32x384xf32>
    %c0_17 = arith.constant 0 : index
    %c0_18 = arith.constant 0 : index
    %19 = vector.load %arg5[%c0_17, %c0_18] : memref<1x384xf32, #tpu.memory_space<vmem>>, vector<1x384xf32>
    %20 = vector.broadcast %19 : vector<1x384xf32> to vector<32x384xf32>
    %21 = arith.addf %18, %20 : vector<32x384xf32>
    %22 = vector.shape_cast %21 : vector<32x384xf32> to vector<4x8x384xf32>
    %23 = arith.truncf %22 : vector<4x8x384xf32> to vector<4x8x384xbf16>
    %c1_19 = arith.constant 1 : index
    %c0_20 = arith.constant 0 : index
    %c0_21 = arith.constant 0 : index
    %c0_22 = arith.constant 0 : index
    %24 = vector.load %arg6[%c1_19, %c0_20, %c0_21, %c0_22] : memref<2x4x8x384xbf16, #tpu.memory_space<vmem>>, vector<1x4x8x384xbf16>
    %25 = vector.shape_cast %24 : vector<1x4x8x384xbf16> to vector<4x8x384xbf16>
    %26 = vector.shape_cast %23 : vector<4x8x384xbf16> to vector<1x4x8x384xbf16>
    tpu.vector_store %arg6[%c1_19, %c0_20, %c0_21, %c0_22], %26 {strides = array<i32>} : memref<2x4x8x384xbf16, #tpu.memory_space<vmem>>, vector<1x4x8x384xbf16>,
    return
  }
  func.func @transform_0(%arg0: i32) -> (i32, i32, i32, i32) {
    %c0_i32 = arith.constant 0 : i32
    %c0_i32_0 = arith.constant 0 : i32
    %c0_i32_1 = arith.constant 0 : i32
    %c0_i32_2 = arith.constant 0 : i32
    return %c0_i32, %arg0, %c0_i32_0, %c0_i32_1 : i32, i32, i32, i32
  }
  func.func @transform_1(%arg0: i32) -> (i32, i32) {
    %c0_i32 = arith.constant 0 : i32
    %c0_i32_0 = arith.constant 0 : i32
    %c0_i32_1 = arith.constant 0 : i32
    return %c0_i32, %c0_i32_0 : i32, i32
  }
  func.func @transform_2(%arg0: i32) -> (i32, i32) {
    %c0_i32 = arith.constant 0 : i32
    %c0_i32_0 = arith.constant 0 : i32
    %c0_i32_1 = arith.constant 0 : i32
    return %c0_i32, %c0_i32_0 : i32, i32
  }
  func.func @transform_3(%arg0: i32) -> (i32, i32) {
    %c0_i32 = arith.constant 0 : i32
    %c0_i32_0 = arith.constant 0 : i32
    %c0_i32_1 = arith.constant 0 : i32
    return %c0_i32, %c0_i32_0 : i32, i32
  }
  func.func @transform_4(%arg0: i32) -> (i32, i32) {
    %c0_i32 = arith.constant 0 : i32
    %c0_i32_0 = arith.constant 0 : i32
    %c0_i32_1 = arith.constant 0 : i32
    return %c0_i32, %c0_i32_0 : i32, i32
  }
  func.func @transform_5(%arg0: i32) -> (i32, i32, i32, i32) {
    %c0_i32 = arith.constant 0 : i32
    %c0_i32_0 = arith.constant 0 : i32
    %c0_i32_1 = arith.constant 0 : i32
    %c0_i32_2 = arith.constant 0 : i32
    return %c0_i32, %arg0, %c0_i32_0, %c0_i32_1 : i32, i32, i32, i32
  }
}

</mosaic_0001>

<llo_original>
// kernel: bidirectional_gru_forward.4
$region0: #{bidirectional_gru_forward.4}
  #allocation0 [shape = 'u32[]', space=smem, size = 0x4, offset = 0x4, fixed_abs, tag = 'smem constant byte address 0x4 - core index']
  #allocation1 [shape = 'u32[144,128]{1,0:T(1,128)}', space=vmem, size = 0x12000, scoped, tag = 'internal scratch']
  %s0 = inlined_call_operand.vmem [shape: f32[8,8,32], index: 0, kind: input, shape index: {}]
  %s1 = inlined_call_operand.vmem [shape: f32[1,32], index: 1, kind: input, shape index: {}]
  %s2 = inlined_call_operand.vmem [shape: f32[1,32], index: 2, kind: input, shape index: {}]
  %s3 = inlined_call_operand.hbm [shape: bf16[32,384], index: 3, kind: input, shape index: {}]
  %s4 = inlined_call_operand.hbm [shape: bf16[32,384], index: 4, kind: input, shape index: {}]
  %s5 = inlined_call_operand.hbm [shape: f32[1,384], index: 5, kind: input, shape index: {}]
  %s6 = inlined_call_operand.hbm [shape: f32[1,384], index: 6, kind: input, shape index: {}]
  %s7 = inlined_call_operand.vmem [shape: bf16[2,8,8,384], index: 7, kind: output, shape index: {}]
  %s8 = sld [smem:[#allocation0]]
  $region99: #{bidirectional_gru_forward.4} parent=0
    _
  %s10 = ssub.s32 1, %s8
  %s11 = scalar_select 0, %s10, %s8
  $region1: #{bidirectional_gru_forward.4} parent=0
    #allocation2 [shape = 'u8[24576]{0}', space=vmem, size = 0x6000, scoped, tag = 'input window, operand 3, single buffered']
    #allocation3 [shape = 's32[2]{0}', space=sflag, size = 0x8, scoped, tag = 'scoped memory for bidirectional_gru_forward.4']
    #allocation4 [shape = 'u8[24576]{0}', space=vmem, size = 0x6000, scoped, tag = 'input window, operand 4, single buffered']
    #allocation5 [shape = 's32[1]{0}', space=sflag, size = 0x4, scoped, tag = 'scoped memory for bidirectional_gru_forward.4']
    #allocation6 [shape = 'u8[1536]{0}', space=vmem, size = 0x800, scoped, tag = 'input window, operand 5, single buffered']
    #allocation7 [shape = 'u8[1536]{0}', space=vmem, size = 0x800, scoped, tag = 'input window, operand 6, single buffered']
    #allocation8 [shape = 's32[1]{0}', space=sflag, size = 0x4, scoped, tag = 'scoped memory for bidirectional_gru_forward.4']
    #allocation9 [shape = 'u8[98304]{0}', space=vmem, size = 0x18000, scoped, tag = 'output window, operand 0']
    %12 = vsyncpa [#allocation3], 0
    %13 = vsyncpa [#allocation5], 0
    %14 = vsyncpa [#allocation8], 0
    loop: start=0, step=1, limit=4
    $region2: #{bidirectional_gru_forward.4} parent=1 // loop_pre_header
      _
    $region3: #{bidirectional_gru_forward.4} parent=1 // loop_header
      %s16 = sphi 0, %s20
      %p17 = scmp.ge.s32.totalorder %s16, 4
      %s26 = sphi 0, %s28
      %s29 = sphi 0, %s26
      %s30 = sphi 0, %s29
      %s46 = sphi 0, %s30
      %s50 = sphi 0, %s50
      %s52 = sphi 0, %s50
      %s53 = sphi 0, %s52
      %s67 = sphi 0, %s53
      %s71 = sphi 0, %s71
      %s73 = sphi 0, %s71
      %s74 = sphi 0, %s73
      %s88 = sphi 0, %s74
      %s92 = sphi 0, %s92
      %s94 = sphi 0, %s92
      %s95 = sphi 0, %s94
      %s109 = sphi 0, %s95
      %s113 = sphi 0, %s113
      %s115 = sphi 0, %s113
      %s116 = sphi 0, %s115
      %s130 = sphi 0, %s116
      %s134 = sphi 0, %s134
      %s136 = sphi 0, %s134
      %s137 = sphi 0, %s136
      %s151 = sphi 0, %s137
      %s155 = sphi 0, %s155
      %s157 = sphi 0, %s155
      %s158 = sphi 0, %s157
      %s172 = sphi 0, %s158
      %s178 = sphi 0, %s180
      %s181 = sphi 0, %s178
      %s182 = sphi 0, %s181
      %s198 = sphi 0, %s182
    $region4: #{bidirectional_gru_forward.4} parent=1 // loop_header_branch
      %19 = sbr.rel (%p17) target = $region8
    $region5: #{bidirectional_gru_forward.4} parent=1 // loop_body
      %s21 = ssub.s32 %s16, 1
      %s22 = ssub.s32 %s16, 2
      %s23 = sadd.s32 %s16, 1
      %s24 = ssub.s32 %s16, %s23
      %p25 = scmp.eq.s32.totalorder %s24, 0
      %s27 = sadd.s32 %s26, 1
      %s28 = scalar_select %p25, %s26, %s27
      %p31 = pneg %p25
      %p32 = scmp.eq.s32.totalorder %s16, 1
      %p33 = por %p31, %p32
      %p34 = scmp.ne.s32.totalorder %s26, %s29
      %p35 = scmp.eq.s32.totalorder %s16, 0
      %p36 = por %p34, %p35
      %p37 = scmp.ne.s32.totalorder %s26, %s29
      %p38 = scmp.eq.s32.totalorder %s21, 1
      %p39 = por %p37, %p38
      %p40 = scmp.ne.s32.totalorder %s29, %s30
      %p41 = scmp.eq.s32.totalorder %s21, 0
      %p42 = por %p40, %p41
      %p43 = scmp.ne.s32.totalorder %s29, %s30
      %p44 = scmp.eq.s32.totalorder %s22, 1
      %p45 = por %p43, %p44
      %p47 = scmp.ne.s32.totalorder %s30, %s46
      %p48 = scmp.eq.s32.totalorder %s22, 0
      %p49 = por %p47, %p48
      %s51 = sadd.s32 %s50, 1
      %p54 = scmp.eq.s32.totalorder %s16, 1
      %p55 = scmp.ne.s32.totalorder %s50, %s52
      %p56 = scmp.eq.s32.totalorder %s16, 0
      %p57 = por %p55, %p56
      %p58 = scmp.ne.s32.totalorder %s50, %s52
      %p59 = scmp.eq.s32.totalorder %s21, 1
      %p60 = por %p58, %p59
      %p61 = scmp.ne.s32.totalorder %s52, %s53
      %p62 = scmp.eq.s32.totalorder %s21, 0
      %p63 = por %p61, %p62
      %p64 = scmp.ne.s32.totalorder %s52, %s53
      %p65 = scmp.eq.s32.totalorder %s22, 1
      %p66 = por %p64, %p65
      %p68 = scmp.ne.s32.totalorder %s53, %s67
      %p69 = scmp.eq.s32.totalorder %s22, 0
      %p70 = por %p68, %p69
      %s72 = sadd.s32 %s71, 1
      %p75 = scmp.eq.s32.totalorder %s16, 1
      %p76 = scmp.ne.s32.totalorder %s71, %s73
      %p77 = scmp.eq.s32.totalorder %s16, 0
      %p78 = por %p76, %p77
      %p79 = scmp.ne.s32.totalorder %s71, %s73
      %p80 = scmp.eq.s32.totalorder %s21, 1
      %p81 = por %p79, %p80
      %p82 = scmp.ne.s32.totalorder %s73, %s74
      %p83 = scmp.eq.s32.totalorder %s21, 0
      %p84 = por %p82, %p83
      %p85 = scmp.ne.s32.totalorder %s73, %s74
      %p86 = scmp.eq.s32.totalorder %s22, 1
      %p87 = por %p85, %p86
      %p89 = scmp.ne.s32.totalorder %s74, %s88
      %p90 = scmp.eq.s32.totalorder %s22, 0
      %p91 = por %p89, %p90
      %s93 = sadd.s32 %s92, 1
      %p96 = scmp.eq.s32.totalorder %s16, 1
      %p97 = scmp.ne.s32.totalorder %s92, %s94
      %p98 = scmp.eq.s32.totalorder %s16, 0
      %p99 = por %p97, %p98
      %p100 = scmp.ne.s32.totalorder %s92, %s94
      %p101 = scmp.eq.s32.totalorder %s21, 1
      %p102 = por %p100, %p101
      %p103 = scmp.ne.s32.totalorder %s94, %s95
      %p104 = scmp.eq.s32.totalorder %s21, 0
      %p105 = por %p103, %p104
      %p106 = scmp.ne.s32.totalorder %s94, %s95
      %p107 = scmp.eq.s32.totalorder %s22, 1
      %p108 = por %p106, %p107
      %p110 = scmp.ne.s32.totalorder %s95, %s109
      %p111 = scmp.eq.s32.totalorder %s22, 0
      %p112 = por %p110, %p111
      %s114 = sadd.s32 %s113, 1
      %p117 = scmp.eq.s32.totalorder %s16, 1
      %p118 = scmp.ne.s32.totalorder %s113, %s115
      %p119 = scmp.eq.s32.totalorder %s16, 0
      %p120 = por %p118, %p119
      %p121 = scmp.ne.s32.totalorder %s113, %s115
      %p122 = scmp.eq.s32.totalorder %s21, 1
      %p123 = por %p121, %p122
      %p124 = scmp.ne.s32.totalorder %s115, %s116
      %p125 = scmp.eq.s32.totalorder %s21, 0
      %p126 = por %p124, %p125
      %p127 = scmp.ne.s32.totalorder %s115, %s116
      %p128 = scmp.eq.s32.totalorder %s22, 1
      %p129 = por %p127, %p128
      %p131 = scmp.ne.s32.totalorder %s116, %s130
      %p132 = scmp.eq.s32.totalorder %s22, 0
      %p133 = por %p131, %p132
      %s135 = sadd.s32 %s134, 1
      %p138 = scmp.eq.s32.totalorder %s16, 1
      %p139 = scmp.ne.s32.totalorder %s134, %s136
      %p140 = scmp.eq.s32.totalorder %s16, 0
      %p141 = por %p139, %p140
      %p142 = scmp.ne.s32.totalorder %s134, %s136
      %p143 = scmp.eq.s32.totalorder %s21, 1
      %p144 = por %p142, %p143
      %p145 = scmp.ne.s32.totalorder %s136, %s137
      %p146 = scmp.eq.s32.totalorder %s21, 0
      %p147 = por %p145, %p146
      %p148 = scmp.ne.s32.totalorder %s136, %s137
      %p149 = scmp.eq.s32.totalorder %s22, 1
      %p150 = por %p148, %p149
      %p152 = scmp.ne.s32.totalorder %s137, %s151
      %p153 = scmp.eq.s32.totalorder %s22, 0
      %p154 = por %p152, %p153
      %s156 = sadd.s32 %s155, 1
      %p159 = scmp.eq.s32.totalorder %s16, 1
      %p160 = scmp.ne.s32.totalorder %s155, %s157
      %p161 = scmp.eq.s32.totalorder %s16, 0
      %p162 = por %p160, %p161
      %p163 = scmp.ne.s32.totalorder %s155, %s157
      %p164 = scmp.eq.s32.totalorder %s21, 1
      %p165 = por %p163, %p164
      %p166 = scmp.ne.s32.totalorder %s157, %s158
      %p167 = scmp.eq.s32.totalorder %s21, 0
      %p168 = por %p166, %p167
      %p169 = scmp.ne.s32.totalorder %s157, %s158
      %p170 = scmp.eq.s32.totalorder %s22, 1
      %p171 = por %p169, %p170
      %p173 = scmp.ne.s32.totalorder %s158, %s172
      %p174 = scmp.eq.s32.totalorder %s22, 0
      %p175 = por %p173, %p174
      %s176 = ssub.s32 %s16, %s23
      %p177 = scmp.eq.s32.totalorder %s176, 0
      %s179 = sadd.s32 %s178, 1
      %s180 = scalar_select %p177, %s178, %s179
      %p183 = pneg %p177
      %p184 = scmp.eq.s32.totalorder %s16, 1
      %p185 = por %p183, %p184
      %p186 = scmp.ne.s32.totalorder %s178, %s181
      %p187 = scmp.eq.s32.totalorder %s16, 0
      %p188 = por %p186, %p187
      %p189 = scmp.ne.s32.totalorder %s178, %s181
      %p190 = scmp.eq.s32.totalorder %s21, 1
      %p191 = por %p189, %p190
      %p192 = scmp.ne.s32.totalorder %s181, %s182
      %p193 = scmp.eq.s32.totalorder %s21, 0
      %p194 = por %p192, %p193
      %p195 = scmp.ne.s32.totalorder %s181, %s182
      %p196 = scmp.eq.s32.totalorder %s22, 1
      %p197 = por %p195, %p196
      %p199 = scmp.ne.s32.totalorder %s182, %s198
      %p200 = scmp.eq.s32.totalorder %s22, 0
      %p201 = por %p199, %p200
      %p202 = scmp.le.s32.totalorder 1, %s16
      %p203 = scmp.lt.s32.totalorder %s16, 3
      %p204 = pnand %p202, %p203
      %p205 = pneg %p204
      // Predicated region
      $region9: #{bidirectional_gru_forward.4} parent=5 // pred_check
        _
      $region10: #{bidirectional_gru_forward.4} parent=5 // pred_check_branch
        %207 = sbr.rel (%p204) target = $region12
      $region11: #{bidirectional_gru_forward.4} parent=5 // pred_region
        %s208 = ssub.s32 %s16, 1
        // Predicated region
        $region13: #{bidirectional_gru_forward.4} parent=11 // pred_check
          %p209 = pneg %p63
        $region14: #{bidirectional_gru_forward.4} parent=11 // pred_check_branch
          %211 = sbr.rel (%p209) target = $region16
        $region15: #{bidirectional_gru_forward.4} parent=11 // pred_region
          _
        $region16: #{bidirectional_gru_forward.4} parent=11 // pred_fallthru
          _
        // Predicated region
        $region17: #{bidirectional_gru_forward.4} parent=11 // pred_check
          %p212 = pneg %p84
        $region18: #{bidirectional_gru_forward.4} parent=11 // pred_check_branch
          %214 = sbr.rel (%p212) target = $region20
        $region19: #{bidirectional_gru_forward.4} parent=11 // pred_region
          _
        $region20: #{bidirectional_gru_forward.4} parent=11 // pred_fallthru
          _
        // Predicated region
        $region21: #{bidirectional_gru_forward.4} parent=11 // pred_check
          %p215 = pneg %p105
        $region22: #{bidirectional_gru_forward.4} parent=11 // pred_check_branch
          %217 = sbr.rel (%p215) target = $region24
        $region23: #{bidirectional_gru_forward.4} parent=11 // pred_region
          %s219 = ssub.s32 768, 768
          %220 = vsyncadd [#allocation3], %s219
          %s221 = sshll.u32 [#allocation2], 4
          %s222 = int_to_ptr.vmem [resolvable:$true] %s221
          %227 = dma.hbm_to_vmem [thread:$0]  %s3, 768, %s222, [#allocation3], 192, 192, 12
        $region24: #{bidirectional_gru_forward.4} parent=11 // pred_fallthru
          _
        // Predicated region
        $region25: #{bidirectional_gru_forward.4} parent=11 // pred_check
          %p228 = pneg %p126
        $region26: #{bidirectional_gru_forward.4} parent=11 // pred_check_branch
          %230 = sbr.rel (%p228) target = $region28
        $region27: #{bidirectional_gru_forward.4} parent=11 // pred_region
          %s232 = ssub.s32 768, 768
          %233 = vsyncadd [#allocation5], %s232
          %s234 = sshll.u32 [#allocation4], 4
          %s235 = int_to_ptr.vmem [resolvable:$true] %s234
          %240 = dma.hbm_to_vmem [thread:$0]  %s4, 768, %s235, [#allocation5], 192, 192, 12
        $region28: #{bidirectional_gru_forward.4} parent=11 // pred_fallthru
          _
        // Predicated region
        $region29: #{bidirectional_gru_forward.4} parent=11 // pred_check
          %p241 = pneg %p147
        $region30: #{bidirectional_gru_forward.4} parent=11 // pred_check_branch
          %243 = sbr.rel (%p241) target = $region32
        $region31: #{bidirectional_gru_forward.4} parent=11 // pred_region
          %s245 = ssub.s32 48, 48
          %246 = vsyncadd [#allocation5], %s245
          %s248 = sshll.u32 [#allocation6], 4
          %s249 = int_to_ptr.vmem [resolvable:$true] %s248
          %251 = dma.hbm_to_vmem [thread:$0]  %s5, 48, %s249, [#allocation5]
        $region32: #{bidirectional_gru_forward.4} parent=11 // pred_fallthru
          _
        // Predicated region
        $region33: #{bidirectional_gru_forward.4} parent=11 // pred_check
          %p252 = pneg %p168
        $region34: #{bidirectional_gru_forward.4} parent=11 // pred_check_branch
          %254 = sbr.rel (%p252) target = $region36
        $region35: #{bidirectional_gru_forward.4} parent=11 // pred_region
          %s256 = ssub.s32 48, 48
          %257 = vsyncadd [#allocation8], %s256
          %s259 = sshll.u32 [#allocation7], 4
          %s260 = int_to_ptr.vmem [resolvable:$true] %s259
          %262 = dma.hbm_to_vmem [thread:$0]  %s6, 48, %s260, [#allocation8]
        $region36: #{bidirectional_gru_forward.4} parent=11 // pred_fallthru
          _
      $region12: #{bidirectional_gru_forward.4} parent=5 // pred_fallthru
        _
      %p263 = scmp.lt.s32.totalorder %s16, 2
      // Predicated region
      $region37: #{bidirectional_gru_forward.4} parent=5 // pred_check
        %p264 = pneg %p263
      $region38: #{bidirectional_gru_forward.4} parent=5 // pred_check_branch
        %266 = sbr.rel (%p264) target = $region40
      $region39: #{bidirectional_gru_forward.4} parent=5 // pred_region
        // Predicated region
        $region41: #{bidirectional_gru_forward.4} parent=39 // pred_check
          %p267 = pneg %p36
        $region42: #{bidirectional_gru_forward.4} parent=39 // pred_check_branch
          %269 = sbr.rel (%p267) target = $region44
        $region43: #{bidirectional_gru_forward.4} parent=39 // pred_region
          %s270 = smul.u32 4, %s16
          %p271 = scmp.lt.s32.totalorder %s270, 7
          %s272 = scalar_select %p271, %s270, 7
          %s273 = smul.addr %s272, 8
          %s274 = scalar_lea.vmem %s0, %s273
          %s275 = smul.u32 4, %s16
        $region44: #{bidirectional_gru_forward.4} parent=39 // pred_fallthru
          _
      $region40: #{bidirectional_gru_forward.4} parent=5 // pred_fallthru
        _
      %p276 = scmp.le.s32.totalorder 1, %s16
      %p277 = scmp.lt.s32.totalorder %s16, 3
      %p278 = pnand %p276, %p277
      %p279 = pneg %p278
      // Predicated region
      $region45: #{bidirectional_gru_forward.4} parent=5 // pred_check
        _
      $region46: #{bidirectional_gru_forward.4} parent=5 // pred_check_branch
        %281 = sbr.rel (%p278) target = $region48
      $region47: #{bidirectional_gru_forward.4} parent=5 // pred_region
        %s282 = ssub.s32 %s16, 1
        // Predicated region
        $region49: #{bidirectional_gru_forward.4} parent=47 // pred_check
          %p283 = pneg %p105
        $region50: #{bidirectional_gru_forward.4} parent=47 // pred_check_branch
          %285 = sbr.rel (%p283) target = $region52
        $region51: #{bidirectional_gru_forward.4} parent=47 // pred_region
          %286 = dma.done [#allocation3], 768
        $region52: #{bidirectional_gru_forward.4} parent=47 // pred_fallthru
          _
        // Predicated region
        $region53: #{bidirectional_gru_forward.4} parent=47 // pred_check
          %p287 = pneg %p126
        $region54: #{bidirectional_gru_forward.4} parent=47 // pred_check_branch
          %289 = sbr.rel (%p287) target = $region56
        $region55: #{bidirectional_gru_forward.4} parent=47 // pred_region
          %290 = dma.done [#allocation5], 768
        $region56: #{bidirectional_gru_forward.4} parent=47 // pred_fallthru
          _
        // Predicated region
        $region57: #{bidirectional_gru_forward.4} parent=47 // pred_check
          %p291 = pneg %p147
        $region58: #{bidirectional_gru_forward.4} parent=47 // pred_check_branch
          %293 = sbr.rel (%p291) target = $region60
        $region59: #{bidirectional_gru_forward.4} parent=47 // pred_region
          %294 = dma.done [#allocation5], 48
        $region60: #{bidirectional_gru_forward.4} parent=47 // pred_fallthru
          _
        // Predicated region
        $region61: #{bidirectional_gru_forward.4} parent=47 // pred_check
          %p295 = pneg %p168
        $region62: #{bidirectional_gru_forward.4} parent=47 // pred_check_branch
          %297 = sbr.rel (%p295) target = $region64
        $region63: #{bidirectional_gru_forward.4} parent=47 // pred_region
          %298 = dma.done [#allocation8], 48
        $region64: #{bidirectional_gru_forward.4} parent=47 // pred_fallthru
          _
        %s299 = smul.u32 4, %s21
        %p300 = scmp.lt.s32.totalorder %s299, 7
        %s301 = scalar_select %p300, %s299, 7
        %s302 = smul.addr %s301, 8
        %s303 = scalar_lea.vmem %s0, %s302
        %p304 = pneg %p42
        %p305 = pneg %p39
        %p306 = pneg %p63
        %p307 = pneg %p60
        %p308 = pneg %p84
        %p309 = pneg %p81
        %p310 = pneg %p105
        %p311 = pneg %p102
        %p312 = pneg %p126
        %p313 = pneg %p123
        %p314 = pneg %p147
        %p315 = pneg %p144
        %p316 = pneg %p168
        %p317 = pneg %p165
        %p318 = pneg %p194
        %p319 = pneg %p191
        %s320 = sand.u32 %s181, 1
        %s321 = sand.u32 %s181, 1
        %s322 = smul.addr %s321, 96
        %s323 = scalar_lea.vmem [#allocation9], %s322
        %s324 = smul.u32 4, %s21
        %p325 = scmp.lt.s32.totalorder %s324, 7
        %s326 = scalar_select %p325, %s324, 7
        %s327 = smul.addr %s326, 8
        %s328 = scalar_lea.vmem %s0, %s327
        %s329 = smul.u32 4, %s21
        %s330 = smul.u32 4, %s21
        %v332 = vld [vmem:[%s328] sm:$0xff]
        %v333 = vld [vmem:[%s328 + $0x8] sm:$0xff]
        %v334 = vld [vmem:[%s328 + $0x10] sm:$0xff]
        %v335 = vld [vmem:[%s328 + $0x18] sm:$0xff]
        %vm336 = vcmask 261120
        %v337 = vsel %vm336, %v332, 0.0
        %338 = vadd.xlane.f32.xlu0 %v337
        %v339 = vpop.xlane.xlu0 %338
        %v340 = vsel %vm336, %v333, 0.0
        %341 = vadd.xlane.f32.xlu0 %v340
        %v342 = vpop.xlane.xlu0 %341
        %v343 = vsel %vm336, %v334, 0.0
        %344 = vadd.xlane.f32.xlu0 %v343
        %v345 = vpop.xlane.xlu0 %344
        %v346 = vsel %vm336, %v335, 0.0
        %347 = vadd.xlane.f32.xlu0 %v346
        %v348 = vpop.xlane.xlu0 %347
        %v349 = vrcp.pop 32.0
        %v350 = vmul.f32 %v339, %v349
        %v351 = vmul.f32 %v342, %v349
        %v352 = vmul.f32 %v345, %v349
        %v353 = vmul.f32 %v348, %v349
        %v354 = vsub.f32 %v332, %v350
        %v355 = vsub.f32 %v333, %v351
        %v356 = vsub.f32 %v334, %v352
        %v357 = vsub.f32 %v335, %v353
        %v358 = vmul.f32 %v354, %v354
        %v359 = vmul.f32 %v355, %v355
        %v360 = vmul.f32 %v356, %v356
        %v361 = vmul.f32 %v357, %v357
        %v362 = vsel %vm336, %v358, 0.0
        %363 = vadd.xlane.f32.xlu0 %v362
        %v364 = vpop.xlane.xlu0 %363
        %v365 = vsel %vm336, %v359, 0.0
        %366 = vadd.xlane.f32.xlu0 %v365
        %v367 = vpop.xlane.xlu0 %366
        %v368 = vsel %vm336, %v360, 0.0
        %369 = vadd.xlane.f32.xlu0 %v368
        %v370 = vpop.xlane.xlu0 %369
        %v371 = vsel %vm336, %v361, 0.0
        %372 = vadd.xlane.f32.xlu0 %v371
        %v373 = vpop.xlane.xlu0 %372
        %v374 = vmul.f32 %v364, %v349
        %v375 = vmul.f32 %v367, %v349
        %v376 = vmul.f32 %v370, %v349
        %v377 = vmul.f32 %v373, %v349
        %v378 = vadd.f32 %v374, 1e-05
        %v379 = vadd.f32 %v375, 1e-05
        %v380 = vadd.f32 %v376, 1e-05
        %v381 = vadd.f32 %v377, 1e-05
        %v382 = vrsqrt.pop %v378
        %v383 = vrsqrt.pop %v379
        %v384 = vrsqrt.pop %v380
        %v385 = vrsqrt.pop %v381
        %v386 = vmul.f32 %v354, %v382
        %v387 = vmul.f32 %v355, %v383
        %v388 = vmul.f32 %v356, %v384
        %v389 = vmul.f32 %v357, %v385
        %v390 = vld [vmem:[%s1] sm:$0x1]
        %v392 = vlaneseq
        %v393 = vshrl.u32 %v392, 7
        %v394 = vsub.s32 0, %v393
        %v395 = vrot.slane %v390, %v394
        %v397 = vmul.f32 %v386, %v395
        %v398 = vmul.f32 %v387, %v395
        %v399 = vmul.f32 %v388, %v395
        %v400 = vmul.f32 %v389, %v395
        %v401 = vld [vmem:[%s2] sm:$0x1]
        %v403 = vlaneseq
        %v404 = vshrl.u32 %v403, 7
        %v405 = vsub.s32 0, %v404
        %v406 = vrot.slane %v401, %v405
        %v408 = vadd.f32 %v397, %v406
        %v409 = vadd.f32 %v398, %v406
        %v410 = vadd.f32 %v399, %v406
        %v411 = vadd.f32 %v400, %v406
        %v412 = vmul.f32 %v408, 0.5
        %v413 = vmul.f32 %v409, 0.5
        %v414 = vmul.f32 %v410, 0.5
        %v415 = vmul.f32 %v411, 0.5
        %v416 = vmul.f32 %v408, 0.70710677
        %v417 = vmul.f32 %v409, 0.70710677
        %v418 = vmul.f32 %v410, 0.70710677
        %v419 = vmul.f32 %v411, 0.70710677
        %v420 = verf.f32.pop %v416
        %v421 = verf.f32.pop %v417
        %v422 = verf.f32.pop %v418
        %v423 = verf.f32.pop %v419
        %v424 = vadd.f32 %v420, 1.0
        %v425 = vadd.f32 %v421, 1.0
        %v426 = vadd.f32 %v422, 1.0
        %v427 = vadd.f32 %v423, 1.0
        %v428 = vmul.f32 %v412, %v424
        %v429 = vmul.f32 %v413, %v425
        %v430 = vmul.f32 %v414, %v426
        %v431 = vmul.f32 %v415, %v427
        %v432 = vpack.c.bf16 %v429, %v428
        %v433 = vpack.c.bf16 %v431, %v430
        %v434 = vld [vmem:[#allocation2] sm:$0xff]
        %v435 = vld [vmem:[#allocation2 + $0x8] sm:$0xf]
        %v436 = vld [vmem:[#allocation2 + $0xc] sm:$0xff]
        %v437 = vld [vmem:[#allocation2 + $0x14] sm:$0xf]
        %v438 = vld [vmem:[#allocation2 + $0x18] sm:$0xff]
        %v439 = vld [vmem:[#allocation2 + $0x20] sm:$0xf]
        %v440 = vld [vmem:[#allocation2 + $0x24] sm:$0xff]
        %v441 = vld [vmem:[#allocation2 + $0x2c] sm:$0xf]
        %v442 = vld [vmem:[#allocation6] sm:$0x7]
        %v444 = vlaneseq
        %v445 = vshrl.u32 %v444, 7
        %v446 = vsub.s32 0, %v445
        %v447 = vrot.slane %v442, %v446
        %v448 = vlaneseq
        %v449 = vshrl.u32 %v448, 7
        %v450 = vsub.s32 1, %v449
        %v451 = vrot.slane %v442, %v450
        %v452 = vlaneseq
        %v453 = vshrl.u32 %v452, 7
        %v454 = vsub.s32 2, %v453
        %v455 = vrot.slane %v442, %v454
        %v467 = vunpack.c.l.b16 %v434
        %v468 = vunpack.c.h.b16 %v434
        %v469 = vunpack.c.l.b16 %v435
        %v470 = vunpack.c.l.b16 %v436
        %v471 = vunpack.c.h.b16 %v436
        %v472 = vunpack.c.l.b16 %v437
        %v473 = vunpack.c.l.b16 %v438
        %v474 = vunpack.c.h.b16 %v438
        %v475 = vunpack.c.l.b16 %v439
        %v476 = vunpack.c.l.b16 %v440
        %v477 = vunpack.c.h.b16 %v440
        %v478 = vunpack.c.l.b16 %v441
        %v479 = vpack.c.b16 %v470, %v467
        %v480 = vpack.c.b16 %v471, %v468
        %v481 = vpack.c.b16 %v472, %v469
        %v482 = vpack.c.b16 %v476, %v473
        %v483 = vpack.c.b16 %v477, %v474
        %v484 = vpack.c.b16 %v478, %v475
        %v492 = vsel %vm336, %v432, 0
        %v495 = vsel %vm336, %v433, 0
        %497 = vmatprep.subr.bf16.mxu0 %v480
        %498 = vmatpush1.bf16.msra.mxu0 %v479
        %499 = vmatprep.subr.bf16.mxu0 %v483
        %500 = vmatpush1.bf16.msra.mxu0 %v482
        %501 = vmatprep.subr.bf16.mxu0 0
        %502 = vmatpush1.bf16.msra.mxu0 0
        %503 = vmatprep.subr.bf16.mxu0 0
        %504 = vmatpush1.bf16.msra.mxu0 0
        %505 = vmatprep.subr.bf16.mxu0 0
        %506 = vmatpush1.bf16.msra.mxu0 0
        %507 = vmatprep.subr.bf16.mxu0 0
        %508 = vmatpush1.bf16.msra.mxu0 0
        %509 = vmatprep.subr.bf16.mxu0 0
        %510 = vmatpush1.bf16.msra.mxu0 0
        %511 = vmatprep.subr.bf16.mxu0 0
        %512 = vmatpush1.bf16.msra.mxu0 0
        %513 = vmatprep.subr.bf16.mxu0 0
        %514 = vmatpush1.bf16.msra.mxu0 0
        %515 = vmatprep.subr.bf16.mxu0 0
        %516 = vmatpush1.bf16.msra.mxu0 0
        %517 = vmatprep.subr.bf16.mxu0 0
        %518 = vmatpush1.bf16.msra.mxu0 0
        %519 = vmatprep.subr.bf16.mxu0 0
        %520 = vmatpush1.bf16.msra.mxu0 0
        %521 = vmatprep.subr.bf16.mxu0 0
        %522 = vmatpush1.bf16.msra.mxu0 0
        %523 = vmatprep.subr.bf16.mxu0 0
        %524 = vmatpush1.bf16.msra.mxu0 0
        %525 = vmatprep.subr.bf16.mxu0 0
        %526 = vmatpush1.bf16.msra.mxu0 0
        %527 = vmatprep.subr.bf16.mxu0 0
        %528 = vmatpush1.bf16.msra.mxu0 0
        %529 = vmatprep.mubr.bf16.mxu0 0
        %530 = vmatmul.mubr.bf16.gmra.mrb[0].mxu0 %v492
        %v531 = vpop.f32.mrb[0].mxu0
        %v532 = vadd.f32 %v447, %v531
        %v533 = vpop.f32.mrb[0].mxu0
        %v534 = vadd.f32 %v451, %v533
        %v535 = vpop.f32.mrb[0].mxu0
        %v536 = vadd.f32 %v447, %v535
        %v537 = vpop.f32.mrb[0].mxu0
        %v538 = vadd.f32 %v451, %v537
        %539 = vmatprep.mubr.bf16.mxu0 0
        %540 = vmatmul.mubr.bf16.gmra.mrb[0].mxu0 %v495
        %v541 = vpop.f32.mrb[0].mxu0
        %v542 = vadd.f32 %v447, %v541
        %v543 = vpop.f32.mrb[0].mxu0
        %v544 = vadd.f32 %v451, %v543
        %v545 = vpop.f32.mrb[0].mxu0
        %v546 = vadd.f32 %v447, %v545
        %v547 = vpop.f32.mrb[0].mxu0
        %v548 = vadd.f32 %v451, %v547
        %549 = vdwg.mxu0
        %550 = vmatprep.subr.bf16.mxu0 0
        %551 = vmatpush1.bf16.msra.mxu0 %v481
        %552 = vmatprep.subr.bf16.mxu0 0
        %553 = vmatpush1.bf16.msra.mxu0 %v484
        %554 = vmatprep.subr.bf16.mxu0 0
        %555 = vmatpush1.bf16.msra.mxu0 0
        %556 = vmatprep.subr.bf16.mxu0 0
        %557 = vmatpush1.bf16.msra.mxu0 0
        %558 = vmatprep.subr.bf16.mxu0 0
        %559 = vmatpush1.bf16.msra.mxu0 0
        %560 = vmatprep.subr.bf16.mxu0 0
        %561 = vmatpush1.bf16.msra.mxu0 0
        %562 = vmatprep.subr.bf16.mxu0 0
        %563 = vmatpush1.bf16.msra.mxu0 0
        %564 = vmatprep.subr.bf16.mxu0 0
        %565 = vmatpush1.bf16.msra.mxu0 0
        %566 = vmatprep.subr.bf16.mxu0 0
        %567 = vmatpush1.bf16.msra.mxu0 0
        %568 = vmatprep.subr.bf16.mxu0 0
        %569 = vmatpush1.bf16.msra.mxu0 0
        %570 = vmatprep.subr.bf16.mxu0 0
        %571 = vmatpush1.bf16.msra.mxu0 0
        %572 = vmatprep.subr.bf16.mxu0 0
        %573 = vmatpush1.bf16.msra.mxu0 0
        %574 = vmatprep.subr.bf16.mxu0 0
        %575 = vmatpush1.bf16.msra.mxu0 0
        %576 = vmatprep.subr.bf16.mxu0 0
        %577 = vmatpush1.bf16.msra.mxu0 0
        %578 = vmatprep.subr.bf16.mxu0 0
        %579 = vmatpush1.bf16.msra.mxu0 0
        %580 = vmatprep.subr.bf16.mxu0 0
        %581 = vmatpush1.bf16.msra.mxu0 0
        %582 = vmatprep.mubr.bf16.mxu0 0
        %583 = vmatmul.mubr.bf16.gmra.mrb[0].mxu0 %v492
        %v584 = vpop.f32.mrb[0].mxu0
        %v585 = vadd.f32 %v455, %v584
        %v586 = vpop.f32.mrb[0].mxu0
        %v587 = vpop.f32.mrb[0].mxu0
        %v588 = vadd.f32 %v455, %v587
        %v589 = vpop.f32.mrb[0].mxu0
        %590 = vmatprep.mubr.bf16.mxu0 0
        %591 = vmatmul.mubr.bf16.gmra.mrb[0].mxu0 %v495
        %v592 = vpop.f32.mrb[0].mxu0
        %v593 = vadd.f32 %v455, %v592
        %v594 = vpop.f32.mrb[0].mxu0
        %v595 = vpop.f32.mrb[0].mxu0
        %v596 = vadd.f32 %v455, %v595
        %v597 = vpop.f32.mrb[0].mxu0
        %598 = vdwg.mxu0
        %v599 = vpack.c.bf16 %v532, %v532
        %v600 = vpack.c.bf16 %v534, %v534
        %v601 = vpack.c.bf16 %v585, %v585
        %v602 = vpack.c.bf16 %v536, %v536
        %v603 = vpack.c.bf16 %v538, %v538
        %v604 = vpack.c.bf16 %v588, %v588
        %v605 = vpack.c.bf16 %v542, %v542
        %v606 = vpack.c.bf16 %v544, %v544
        %v607 = vpack.c.bf16 %v593, %v593
        %v608 = vpack.c.bf16 %v546, %v546
        %v609 = vpack.c.bf16 %v548, %v548
        %v610 = vpack.c.bf16 %v596, %v596
        %v623 = vunpack.c.l.b16 %v599
        %v624 = vunpack.c.l.b16 %v600
        %v625 = vunpack.c.l.b16 %v601
        %v626 = vunpack.c.l.b16 %v602
        %v627 = vunpack.c.l.b16 %v603
        %v628 = vunpack.c.l.b16 %v604
        %v629 = vunpack.c.l.b16 %v605
        %v630 = vunpack.c.l.b16 %v606
        %v631 = vunpack.c.l.b16 %v607
        %v632 = vunpack.c.l.b16 %v608
        %v633 = vunpack.c.l.b16 %v609
        %v634 = vunpack.c.l.b16 %v610
        %v635 = vpack.c.b16 %v624, %v623
        %v636 = vpack.c.b16 %v625, %v625
        %v637 = vpack.c.b16 %v627, %v626
        %v638 = vpack.c.b16 %v628, %v628
        %v639 = vpack.c.b16 %v630, %v629
        %v640 = vpack.c.b16 %v631, %v631
        %v641 = vpack.c.b16 %v633, %v632
        %v642 = vpack.c.b16 %v634, %v634
        %651 = vst [vmem:[%s323] sm:$0xff] %v635
        %652 = vst [vmem:[%s323 + $0x8] sm:$0xf] %v636
        %653 = vst [vmem:[%s323 + $0xc] sm:$0xff] %v637
        %654 = vst [vmem:[%s323 + $0x14] sm:$0xf] %v638
        %655 = vst [vmem:[%s323 + $0x18] sm:$0xff] %v639
        %656 = vst [vmem:[%s323 + $0x20] sm:$0xf] %v640
        %657 = vst [vmem:[%s323 + $0x24] sm:$0xff] %v641
        %658 = vst [vmem:[%s323 + $0x2c] sm:$0xf] %v642
        %v659 = vld [vmem:[#allocation4] sm:$0xff]
        %v660 = vld [vmem:[#allocation4 + $0x8] sm:$0xf]
        %v661 = vld [vmem:[#allocation4 + $0xc] sm:$0xff]
        %v662 = vld [vmem:[#allocation4 + $0x14] sm:$0xf]
        %v663 = vld [vmem:[#allocation4 + $0x18] sm:$0xff]
        %v664 = vld [vmem:[#allocation4 + $0x20] sm:$0xf]
        %v665 = vld [vmem:[#allocation4 + $0x24] sm:$0xff]
        %v666 = vld [vmem:[#allocation4 + $0x2c] sm:$0xf]
        %v667 = vld [vmem:[#allocation7] sm:$0x7]
        %v669 = vlaneseq
        %v670 = vshrl.u32 %v669, 7
        %v671 = vsub.s32 0, %v670
        %v672 = vrot.slane %v667, %v671
        %v673 = vlaneseq
        %v674 = vshrl.u32 %v673, 7
        %v675 = vsub.s32 1, %v674
        %v676 = vrot.slane %v667, %v675
        %v677 = vlaneseq
        %v678 = vshrl.u32 %v677, 7
        %v679 = vsub.s32 2, %v678
        %v680 = vrot.slane %v667, %v679
        %v692 = vunpack.c.l.b16 %v659
        %v693 = vunpack.c.h.b16 %v659
        %v694 = vunpack.c.l.b16 %v660
        %v695 = vunpack.c.l.b16 %v661
        %v696 = vunpack.c.h.b16 %v661
        %v697 = vunpack.c.l.b16 %v662
        %v698 = vunpack.c.l.b16 %v663
        %v699 = vunpack.c.h.b16 %v663
        %v700 = vunpack.c.l.b16 %v664
        %v701 = vunpack.c.l.b16 %v665
        %v702 = vunpack.c.h.b16 %v665
        %v703 = vunpack.c.l.b16 %v666
        %v704 = vpack.c.b16 %v695, %v692
        %v705 = vpack.c.b16 %v696, %v693
        %v706 = vpack.c.b16 %v697, %v694
        %v707 = vpack.c.b16 %v701, %v698
        %v708 = vpack.c.b16 %v702, %v699
        %v709 = vpack.c.b16 %v703, %v700
        %716 = vmatprep.subr.bf16.mxu0 %v705
        %717 = vmatpush1.bf16.msra.mxu0 %v704
        %718 = vmatprep.subr.bf16.mxu0 %v708
        %719 = vmatpush1.bf16.msra.mxu0 %v707
        %720 = vmatprep.subr.bf16.mxu0 0
        %721 = vmatpush1.bf16.msra.mxu0 0
        %722 = vmatprep.subr.bf16.mxu0 0
        %723 = vmatpush1.bf16.msra.mxu0 0
        %724 = vmatprep.subr.bf16.mxu0 0
        %725 = vmatpush1.bf16.msra.mxu0 0
        %726 = vmatprep.subr.bf16.mxu0 0
        %727 = vmatpush1.bf16.msra.mxu0 0
        %728 = vmatprep.subr.bf16.mxu0 0
        %729 = vmatpush1.bf16.msra.mxu0 0
        %730 = vmatprep.subr.bf16.mxu0 0
        %731 = vmatpush1.bf16.msra.mxu0 0
        %732 = vmatprep.subr.bf16.mxu0 0
        %733 = vmatpush1.bf16.msra.mxu0 0
        %734 = vmatprep.subr.bf16.mxu0 0
        %735 = vmatpush1.bf16.msra.mxu0 0
        %736 = vmatprep.subr.bf16.mxu0 0
        %737 = vmatpush1.bf16.msra.mxu0 0
        %738 = vmatprep.subr.bf16.mxu0 0
        %739 = vmatpush1.bf16.msra.mxu0 0
        %740 = vmatprep.subr.bf16.mxu0 0
        %741 = vmatpush1.bf16.msra.mxu0 0
        %742 = vmatprep.subr.bf16.mxu0 0
        %743 = vmatpush1.bf16.msra.mxu0 0
        %744 = vmatprep.subr.bf16.mxu0 0
        %745 = vmatpush1.bf16.msra.mxu0 0
        %746 = vmatprep.subr.bf16.mxu0 0
        %747 = vmatpush1.bf16.msra.mxu0 0
        %748 = vmatprep.mubr.bf16.mxu0 0
        %749 = vmatmul.mubr.bf16.gmra.mrb[0].mxu0 %v492
        %v750 = vpop.f32.mrb[0].mxu0
        %v751 = vadd.f32 %v672, %v750
        %v752 = vpop.f32.mrb[0].mxu0
        %v753 = vadd.f32 %v676, %v752
        %v754 = vpop.f32.mrb[0].mxu0
        %v755 = vadd.f32 %v672, %v754
        %v756 = vpop.f32.mrb[0].mxu0
        %v757 = vadd.f32 %v676, %v756
        %758 = vmatprep.mubr.bf16.mxu0 0
        %759 = vmatmul.mubr.bf16.gmra.mrb[0].mxu0 %v495
        %v760 = vpop.f32.mrb[0].mxu0
        %v761 = vadd.f32 %v672, %v760
        %v762 = vpop.f32.mrb[0].mxu0
        %v763 = vadd.f32 %v676, %v762
        %v764 = vpop.f32.mrb[0].mxu0
        %v765 = vadd.f32 %v672, %v764
        %v766 = vpop.f32.mrb[0].mxu0
        %v767 = vadd.f32 %v676, %v766
        %768 = vdwg.mxu0
        %769 = vmatprep.subr.bf16.mxu0 0
        %770 = vmatpush1.bf16.msra.mxu0 %v706
        %771 = vmatprep.subr.bf16.mxu0 0
        %772 = vmatpush1.bf16.msra.mxu0 %v709
        %773 = vmatprep.subr.bf16.mxu0 0
        %774 = vmatpush1.bf16.msra.mxu0 0
        %775 = vmatprep.subr.bf16.mxu0 0
        %776 = vmatpush1.bf16.msra.mxu0 0
        %777 = vmatprep.subr.bf16.mxu0 0
        %778 = vmatpush1.bf16.msra.mxu0 0
        %779 = vmatprep.subr.bf16.mxu0 0
        %780 = vmatpush1.bf16.msra.mxu0 0
        %781 = vmatprep.subr.bf16.mxu0 0
        %782 = vmatpush1.bf16.msra.mxu0 0
        %783 = vmatprep.subr.bf16.mxu0 0
        %784 = vmatpush1.bf16.msra.mxu0 0
        %785 = vmatprep.subr.bf16.mxu0 0
        %786 = vmatpush1.bf16.msra.mxu0 0
        %787 = vmatprep.subr.bf16.mxu0 0
        %788 = vmatpush1.bf16.msra.mxu0 0
        %789 = vmatprep.subr.bf16.mxu0 0
        %790 = vmatpush1.bf16.msra.mxu0 0
        %791 = vmatprep.subr.bf16.mxu0 0
        %792 = vmatpush1.bf16.msra.mxu0 0
        %793 = vmatprep.subr.bf16.mxu0 0
        %794 = vmatpush1.bf16.msra.mxu0 0
        %795 = vmatprep.subr.bf16.mxu0 0
        %796 = vmatpush1.bf16.msra.mxu0 0
        %797 = vmatprep.subr.bf16.mxu0 0
        %798 = vmatpush1.bf16.msra.mxu0 0
        %799 = vmatprep.subr.bf16.mxu0 0
        %800 = vmatpush1.bf16.msra.mxu0 0
        %801 = vmatprep.mubr.bf16.mxu0 0
        %802 = vmatmul.mubr.bf16.gmra.mrb[0].mxu0 %v492
        %v803 = vpop.f32.mrb[0].mxu0
        %v804 = vadd.f32 %v680, %v803
        %v805 = vpop.f32.mrb[0].mxu0
        %v806 = vpop.f32.mrb[0].mxu0
        %v807 = vadd.f32 %v680, %v806
        %v808 = vpop.f32.mrb[0].mxu0
        %809 = vmatprep.mubr.bf16.mxu0 0
        %810 = vmatmul.mubr.bf16.gmra.mrb[0].mxu0 %v495
        %v811 = vpop.f32.mrb[0].mxu0
        %v812 = vadd.f32 %v680, %v811
        %v813 = vpop.f32.mrb[0].mxu0
        %v814 = vpop.f32.mrb[0].mxu0
        %v815 = vadd.f32 %v680, %v814
        %v816 = vpop.f32.mrb[0].mxu0
        %817 = vdwg.mxu0
        %v818 = vpack.c.bf16 %v751, %v751
        %v819 = vpack.c.bf16 %v753, %v753
        %v820 = vpack.c.bf16 %v804, %v804
        %v821 = vpack.c.bf16 %v755, %v755
        %v822 = vpack.c.bf16 %v757, %v757
        %v823 = vpack.c.bf16 %v807, %v807
        %v824 = vpack.c.bf16 %v761, %v761
        %v825 = vpack.c.bf16 %v763, %v763
        %v826 = vpack.c.bf16 %v812, %v812
        %v827 = vpack.c.bf16 %v765, %v765
        %v828 = vpack.c.bf16 %v767, %v767
        %v829 = vpack.c.bf16 %v815, %v815
        %v842 = vunpack.c.l.b16 %v818
        %v843 = vunpack.c.l.b16 %v819
        %v844 = vunpack.c.l.b16 %v820
        %v845 = vunpack.c.l.b16 %v821
        %v846 = vunpack.c.l.b16 %v822
        %v847 = vunpack.c.l.b16 %v823
        %v848 = vunpack.c.l.b16 %v824
        %v849 = vunpack.c.l.b16 %v825
        %v850 = vunpack.c.l.b16 %v826
        %v851 = vunpack.c.l.b16 %v827
        %v852 = vunpack.c.l.b16 %v828
        %v853 = vunpack.c.l.b16 %v829
        %v854 = vpack.c.b16 %v843, %v842
        %v855 = vpack.c.b16 %v844, %v844
        %v856 = vpack.c.b16 %v846, %v845
        %v857 = vpack.c.b16 %v847, %v847
        %v858 = vpack.c.b16 %v849, %v848
        %v859 = vpack.c.b16 %v850, %v850
        %v860 = vpack.c.b16 %v852, %v851
        %v861 = vpack.c.b16 %v853, %v853
        %s870 = scalar_lea.vmem %s323, 48 [#allocation9]
        %871 = vst [vmem:[%s870] sm:$0xff] %v854
        %872 = vst [vmem:[%s870 + $0x8] sm:$0xf] %v855
        %873 = vst [vmem:[%s870 + $0xc] sm:$0xff] %v856
        %874 = vst [vmem:[%s870 + $0x14] sm:$0xf] %v857
        %875 = vst [vmem:[%s870 + $0x18] sm:$0xff] %v858
        %876 = vst [vmem:[%s870 + $0x20] sm:$0xf] %v859
        %877 = vst [vmem:[%s870 + $0x24] sm:$0xff] %v860
        %878 = vst [vmem:[%s870 + $0x2c] sm:$0xf] %v861
        %s879 = sand.u32 %s181, 1
        %s880 = sand.u32 %s181, 1
        %s881 = smul.addr %s880, 96
        %s882 = scalar_lea.vmem [#allocation9], %s881
        // Predicated region
        $region65: #{bidirectional_gru_forward.4} parent=47 // pred_check
          %p883 = pneg %p191
        $region66: #{bidirectional_gru_forward.4} parent=47 // pred_check_branch
          %885 = sbr.rel (%p883) target = $region68
        $region67: #{bidirectional_gru_forward.4} parent=47 // pred_region
          %s886 = smul.u32 4, %s21
          %s887 = smul.addr %s886, 3
          %s888 = smul.addr %s887, 4
          %s889 = scalar_lea.vmem %s7, %s888
          // Predicated region
          $region69: #{bidirectional_gru_forward.4} parent=67 // pred_check
            _
          $region70: #{bidirectional_gru_forward.4} parent=67 // pred_check_branch
            %891 = sbr.rel (0) target = $region72
          $region71: #{bidirectional_gru_forward.4} parent=67 // pred_region
            // Predicated region
            $region73: #{bidirectional_gru_forward.4} parent=71 // pred_check
              _
            $region74: #{bidirectional_gru_forward.4} parent=71 // pred_check_branch
              %893 = sbr.rel (0) target = $region76
            $region75: #{bidirectional_gru_forward.4} parent=71 // pred_region
              %s894 = scalar_lea.vmem %s882, 8 [#allocation9]
              %s895 = scalar_lea.vmem %s889, 8
              loop: start=0, step=1, limit=1
              $region77: #{bidirectional_gru_forward.4} parent=75 // loop_pre_header
                _
              $region78: #{bidirectional_gru_forward.4} parent=75 // loop_header
                %s897 = sphi 0, %s901
                %p898 = scmp.ge.s32.totalorder %s897, 1
                %s902 = sphi %s882, %s882
                %s903 = sphi %s889, %s889
              $region79: #{bidirectional_gru_forward.4} parent=75 // loop_header_branch
                %900 = sbr.rel (%p898) target = $region83
              $region80: #{bidirectional_gru_forward.4} parent=75 // loop_body
                %v904 = vld [vmem:[%s902] sm:$0xff]
                %905 = vst [vmem:[%s903] sm:$0xff] %v904
                %v906 = vld [vmem:[%s902 + $0xc] sm:$0xff]
                %907 = vst [vmem:[%s903 + $0xc] sm:$0xff] %v906
                %v908 = vld [vmem:[%s902 + $0x18] sm:$0xff]
                %909 = vst [vmem:[%s903 + $0x18] sm:$0xff] %v908
                %v910 = vld [vmem:[%s902 + $0x24] sm:$0xff]
                %911 = vst [vmem:[%s903 + $0x24] sm:$0xff] %v910
                %v912 = vld [vmem:[%s902 + $0x30] sm:$0xff]
                %913 = vst [vmem:[%s903 + $0x60] sm:$0xff] %v912
                %v914 = vld [vmem:[%s902 + $0x3c] sm:$0xff]
                %915 = vst [vmem:[%s903 + $0x6c] sm:$0xff] %v914
                %v916 = vld [vmem:[%s902 + $0x48] sm:$0xff]
                %917 = vst [vmem:[%s903 + $0x78] sm:$0xff] %v916
                %v918 = vld [vmem:[%s902 + $0x54] sm:$0xff]
                %919 = vst [vmem:[%s903 + $0x84] sm:$0xff] %v918
              $region81: #{bidirectional_gru_forward.4} parent=75 // loop_footer
                %s901 = sadd.s32 1, %s897
              $region82: #{bidirectional_gru_forward.4} parent=75 // loop_footer_branch
                %896 = sbr.rel target = $region78
              $region83: #{bidirectional_gru_forward.4} parent=75 // loop_exit
                _
              loop: start=0, step=1, limit=1
              $region84: #{bidirectional_gru_forward.4} parent=75 // loop_pre_header
                _
              $region85: #{bidirectional_gru_forward.4} parent=75 // loop_header
                %s922 = sphi 0, %s926
                %p923 = scmp.ge.s32.totalorder %s922, 1
                %s927 = sphi %s894, %s894
                %s928 = sphi %s895, %s895
              $region86: #{bidirectional_gru_forward.4} parent=75 // loop_header_branch
                %925 = sbr.rel (%p923) target = $region90
              $region87: #{bidirectional_gru_forward.4} parent=75 // loop_body
                %v929 = vld [vmem:[%s927] sm:$0xf]
                %930 = vst [vmem:[%s928] sm:$0xf] %v929
                %v931 = vld [vmem:[%s927 + $0xc] sm:$0xf]
                %932 = vst [vmem:[%s928 + $0xc] sm:$0xf] %v931
                %v933 = vld [vmem:[%s927 + $0x18] sm:$0xf]
                %934 = vst [vmem:[%s928 + $0x18] sm:$0xf] %v933
                %v935 = vld [vmem:[%s927 + $0x24] sm:$0xf]
                %936 = vst [vmem:[%s928 + $0x24] sm:$0xf] %v935
                %v937 = vld [vmem:[%s927 + $0x30] sm:$0xf]
                %938 = vst [vmem:[%s928 + $0x60] sm:$0xf] %v937
                %v939 = vld [vmem:[%s927 + $0x3c] sm:$0xf]
                %940 = vst [vmem:[%s928 + $0x6c] sm:$0xf] %v939
                %v941 = vld [vmem:[%s927 + $0x48] sm:$0xf]
                %942 = vst [vmem:[%s928 + $0x78] sm:$0xf] %v941
                %v943 = vld [vmem:[%s927 + $0x54] sm:$0xf]
                %944 = vst [vmem:[%s928 + $0x84] sm:$0xf] %v943
              $region88: #{bidirectional_gru_forward.4} parent=75 // loop_footer
                %s926 = sadd.s32 1, %s922
              $region89: #{bidirectional_gru_forward.4} parent=75 // loop_footer_branch
                %921 = sbr.rel target = $region85
              $region90: #{bidirectional_gru_forward.4} parent=75 // loop_exit
                _
            $region76: #{bidirectional_gru_forward.4} parent=71 // pred_fallthru
              _
          $region72: #{bidirectional_gru_forward.4} parent=67 // pred_fallthru
            _
          %945 = vnop
        $region68: #{bidirectional_gru_forward.4} parent=47 // pred_fallthru
          _
      $region48: #{bidirectional_gru_forward.4} parent=5 // pred_fallthru
        _
      %p946 = scmp.le.s32.totalorder 2, %s16
      // Predicated region
      $region91: #{bidirectional_gru_forward.4} parent=5 // pred_check
        %p947 = pneg %p946
      $region92: #{bidirectional_gru_forward.4} parent=5 // pred_check_branch
        %949 = sbr.rel (%p947) target = $region94
      $region93: #{bidirectional_gru_forward.4} parent=5 // pred_region
        %s950 = ssub.s32 %s16, 2
        // Predicated region
        $region95: #{bidirectional_gru_forward.4} parent=93 // pred_check
          %p951 = pneg %p197
        $region96: #{bidirectional_gru_forward.4} parent=93 // pred_check_branch
          %953 = sbr.rel (%p951) target = $region98
        $region97: #{bidirectional_gru_forward.4} parent=93 // pred_region
          %s954 = sand.u32 %s182, 1
          %s955 = sand.u32 %s182, 1
          %s956 = smul.addr %s955, 96
          %s957 = scalar_lea.vmem [#allocation9], %s956
        $region98: #{bidirectional_gru_forward.4} parent=93 // pred_fallthru
          _
      $region94: #{bidirectional_gru_forward.4} parent=5 // pred_fallthru
        _
    $region6: #{bidirectional_gru_forward.4} parent=1 // loop_footer
      %s20 = sadd.s32 1, %s16
    $region7: #{bidirectional_gru_forward.4} parent=1 // loop_footer_branch
      %15 = sbr.rel target = $region3
    $region8: #{bidirectional_gru_forward.4} parent=1 // loop_exit
      _
    %958 = vsyncpa [#allocation3], 1
    %s959 = scalar_lea.sflag [#allocation3], 1
    %960 = vsyncpa %s959, 1
    %961 = vsyncpa [#allocation5], 1
    %962 = vsyncpa [#allocation8], 1

// kernel: bidirectional_gru_forward.5
$region0: #{bidirectional_gru_forward.5}
  #allocation0 [shape = 'u32[]', space=smem, size = 0x4, offset = 0x4, fixed_abs, tag = 'smem constant byte address 0x4 - core index']
  #allocation1 [shape = 'u32[144,128]{1,0:T(1,128)}', space=vmem, size = 0x12000, scoped, tag = 'internal scratch']
  #allocation2 [shape = 'f32[8,128]{1,0:T(8,128)}', space=vmem, size = 0x1000, scoped, tag = 'scratch operand']
  %s0 = inlined_call_operand.vmem [shape: bf16[2,8,8,384], index: 0, kind: input, shape index: {}]
  %s1 = inlined_call_operand.vmem [shape: bf16[2,128,384], index: 1, kind: input, shape index: {}]
  %s2 = inlined_call_operand.vmem [shape: f32[2,1,128], index: 2, kind: input, shape index: {}]
  %s3 = inlined_call_operand.vmem [shape: bf16[2,8,8,128], index: 3, kind: output, shape index: {}]
  %s4 = sld [smem:[#allocation0]]
  $region49: #{bidirectional_gru_forward.5} parent=0
    _
  %s6 = ssub.s32 1, %s4
  %s7 = scalar_select 0, %s6, %s4
  loop: start=0, step=1, limit=4
  $region2: #{bidirectional_gru_forward.5} parent=0 // loop_pre_header
    _
  $region3: #{bidirectional_gru_forward.5} parent=0 // loop_header
    %s9 = sphi 0, %s13
    %p10 = scmp.ge.s32.totalorder %s9, 4
    %s16 = sphi 0, %s28
    %s17 = sphi 0, %s24
    %s18 = sphi 0, %s16
    %s19 = sphi 0, %s17
    %s20 = sphi 0, %s18
    %s21 = sphi 0, %s19
    %s41 = sphi 0, %s43
    %s44 = sphi 0, %s41
    %s45 = sphi 0, %s44
    %s61 = sphi 0, %s45
    %s67 = sphi 0, %s69
    %s70 = sphi 0, %s67
    %s71 = sphi 0, %s70
    %s87 = sphi 0, %s71
    %s93 = sphi 0, %s95
    %s96 = sphi 0, %s93
    %s97 = sphi 0, %s96
    %s113 = sphi 0, %s97
    %s129 = sphi 0, %s131
    %s132 = sphi 0, %s129
    %s133 = sphi 0, %s132
    %s149 = sphi 0, %s133
  $region4: #{bidirectional_gru_forward.5} parent=0 // loop_header_branch
    %12 = sbr.rel (%p10) target = $region8
  $region5: #{bidirectional_gru_forward.5} parent=0 // loop_body
    %s14 = ssub.s32 %s9, 1
    %s15 = ssub.s32 %s9, 2
    %s22 = sadd.s32 1, %s17
    %p23 = scmp.ge.s32.totalorder %s22, 1
    %s24 = scalar_select %p23, 0, %s22
    %s25 = sadd.s32 1, %s16
    %s26 = scalar_select %p23, %s25, %s16
    %p27 = scmp.ge.s32.totalorder %s26, 2
    %s28 = scalar_select %p27, 0, %s26
    %s29 = smul.u32 %s17, 2
    %s30 = ssub.s32 0, %s29
    %s31 = smul.u32 %s16, %s30
    %s32 = sadd.s32 %s17, %s31
    %s33 = smul.u32 %s24, 2
    %s34 = ssub.s32 0, %s33
    %s35 = smul.u32 %s28, %s34
    %s36 = sadd.s32 %s24, %s35
    %s37 = ssub.s32 %s16, %s28
    %s38 = ssub.s32 %s32, %s36
    %s39 = sor.u32 %s37, %s38
    %p40 = scmp.eq.s32.totalorder %s39, 0
    %s42 = sadd.s32 %s41, 1
    %s43 = scalar_select %p40, %s41, %s42
    %p46 = pneg %p40
    %p47 = scmp.eq.s32.totalorder %s9, 1
    %p48 = por %p46, %p47
    %p49 = scmp.ne.s32.totalorder %s41, %s44
    %p50 = scmp.eq.s32.totalorder %s9, 0
    %p51 = por %p49, %p50
    %p52 = scmp.ne.s32.totalorder %s41, %s44
    %p53 = scmp.eq.s32.totalorder %s14, 1
    %p54 = por %p52, %p53
    %p55 = scmp.ne.s32.totalorder %s44, %s45
    %p56 = scmp.eq.s32.totalorder %s14, 0
    %p57 = por %p55, %p56
    %p58 = scmp.ne.s32.totalorder %s44, %s45
    %p59 = scmp.eq.s32.totalorder %s15, 1
    %p60 = por %p58, %p59
    %p62 = scmp.ne.s32.totalorder %s45, %s61
    %p63 = scmp.eq.s32.totalorder %s15, 0
    %p64 = por %p62, %p63
    %s65 = ssub.s32 %s16, %s28
    %p66 = scmp.eq.s32.totalorder %s65, 0
    %s68 = sadd.s32 %s67, 1
    %s69 = scalar_select %p66, %s67, %s68
    %p72 = pneg %p66
    %p73 = scmp.eq.s32.totalorder %s9, 1
    %p74 = por %p72, %p73
    %p75 = scmp.ne.s32.totalorder %s67, %s70
    %p76 = scmp.eq.s32.totalorder %s9, 0
    %p77 = por %p75, %p76
    %p78 = scmp.ne.s32.totalorder %s67, %s70
    %p79 = scmp.eq.s32.totalorder %s14, 1
    %p80 = por %p78, %p79
    %p81 = scmp.ne.s32.totalorder %s70, %s71
    %p82 = scmp.eq.s32.totalorder %s14, 0
    %p83 = por %p81, %p82
    %p84 = scmp.ne.s32.totalorder %s70, %s71
    %p85 = scmp.eq.s32.totalorder %s15, 1
    %p86 = por %p84, %p85
    %p88 = scmp.ne.s32.totalorder %s71, %s87
    %p89 = scmp.eq.s32.totalorder %s15, 0
    %p90 = por %p88, %p89
    %s91 = ssub.s32 %s16, %s28
    %p92 = scmp.eq.s32.totalorder %s91, 0
    %s94 = sadd.s32 %s93, 1
    %s95 = scalar_select %p92, %s93, %s94
    %p98 = pneg %p92
    %p99 = scmp.eq.s32.totalorder %s9, 1
    %p100 = por %p98, %p99
    %p101 = scmp.ne.s32.totalorder %s93, %s96
    %p102 = scmp.eq.s32.totalorder %s9, 0
    %p103 = por %p101, %p102
    %p104 = scmp.ne.s32.totalorder %s93, %s96
    %p105 = scmp.eq.s32.totalorder %s14, 1
    %p106 = por %p104, %p105
    %p107 = scmp.ne.s32.totalorder %s96, %s97
    %p108 = scmp.eq.s32.totalorder %s14, 0
    %p109 = por %p107, %p108
    %p110 = scmp.ne.s32.totalorder %s96, %s97
    %p111 = scmp.eq.s32.totalorder %s15, 1
    %p112 = por %p110, %p111
    %p114 = scmp.ne.s32.totalorder %s97, %s113
    %p115 = scmp.eq.s32.totalorder %s15, 0
    %p116 = por %p114, %p115
    %s117 = smul.u32 %s17, 2
    %s118 = ssub.s32 0, %s117
    %s119 = smul.u32 %s16, %s118
    %s120 = sadd.s32 %s17, %s119
    %s121 = smul.u32 %s24, 2
    %s122 = ssub.s32 0, %s121
    %s123 = smul.u32 %s28, %s122
    %s124 = sadd.s32 %s24, %s123
    %s125 = ssub.s32 %s16, %s28
    %s126 = ssub.s32 %s120, %s124
    %s127 = sor.u32 %s125, %s126
    %p128 = scmp.eq.s32.totalorder %s127, 0
    %s130 = sadd.s32 %s129, 1
    %s131 = scalar_select %p128, %s129, %s130
    %p134 = pneg %p128
    %p135 = scmp.eq.s32.totalorder %s9, 1
    %p136 = por %p134, %p135
    %p137 = scmp.ne.s32.totalorder %s129, %s132
    %p138 = scmp.eq.s32.totalorder %s9, 0
    %p139 = por %p137, %p138
    %p140 = scmp.ne.s32.totalorder %s129, %s132
    %p141 = scmp.eq.s32.totalorder %s14, 1
    %p142 = por %p140, %p141
    %p143 = scmp.ne.s32.totalorder %s132, %s133
    %p144 = scmp.eq.s32.totalorder %s14, 0
    %p145 = por %p143, %p144
    %p146 = scmp.ne.s32.totalorder %s132, %s133
    %p147 = scmp.eq.s32.totalorder %s15, 1
    %p148 = por %p146, %p147
    %p150 = scmp.ne.s32.totalorder %s133, %s149
    %p151 = scmp.eq.s32.totalorder %s15, 0
    %p152 = por %p150, %p151
    %p153 = scmp.le.s32.totalorder 1, %s9
    %p154 = scmp.lt.s32.totalorder %s9, 3
    %p155 = pnand %p153, %p154
    %p156 = pneg %p155
    // Predicated region
    $region9: #{bidirectional_gru_forward.5} parent=5 // pred_check
      _
    $region10: #{bidirectional_gru_forward.5} parent=5 // pred_check_branch
      %158 = sbr.rel (%p155) target = $region12
    $region11: #{bidirectional_gru_forward.5} parent=5 // pred_region
      %s159 = ssub.s32 %s9, 1
    $region12: #{bidirectional_gru_forward.5} parent=5 // pred_fallthru
      _
    %p160 = scmp.lt.s32.totalorder %s9, 2
    // Predicated region
    $region13: #{bidirectional_gru_forward.5} parent=5 // pred_check
      %p161 = pneg %p160
    $region14: #{bidirectional_gru_forward.5} parent=5 // pred_check_branch
      %163 = sbr.rel (%p161) target = $region16
    $region15: #{bidirectional_gru_forward.5} parent=5 // pred_region
      // Predicated region
      $region17: #{bidirectional_gru_forward.5} parent=15 // pred_check
        %p164 = pneg %p51
      $region18: #{bidirectional_gru_forward.5} parent=15 // pred_check_branch
        %166 = sbr.rel (%p164) target = $region20
      $region19: #{bidirectional_gru_forward.5} parent=15 // pred_region
        %s167 = smul.u32 %s17, 2
        %s168 = ssub.s32 0, %s167
        %s169 = smul.u32 %s16, %s168
        %s170 = sadd.s32 %s17, %s169
        %s171 = smul.u32 8, %s170
        %p172 = scmp.lt.s32.totalorder %s16, 1
        %s173 = scalar_select %p172, %s16, 1
        %p174 = scmp.lt.s32.totalorder %s171, 7
        %s175 = scalar_select %p174, %s171, 7
        %s176 = smul.addr %s175, 3
        %s177 = smul.addr %s173, 24
        %s178 = sadd.s32 %s176, %s177
        %s179 = smul.addr %s178, 4
        %s180 = scalar_lea.vmem %s0, %s179
        %s181 = smul.u32 %s17, 2
        %s182 = ssub.s32 0, %s181
        %s183 = smul.u32 %s16, %s182
        %s184 = sadd.s32 %s17, %s183
        %s185 = smul.u32 8, %s184
      $region20: #{bidirectional_gru_forward.5} parent=15 // pred_fallthru
        _
      // Predicated region
      $region21: #{bidirectional_gru_forward.5} parent=15 // pred_check
        %p186 = pneg %p77
      $region22: #{bidirectional_gru_forward.5} parent=15 // pred_check_branch
        %188 = sbr.rel (%p186) target = $region24
      $region23: #{bidirectional_gru_forward.5} parent=15 // pred_region
        %p189 = scmp.lt.s32.totalorder %s16, 1
        %s190 = scalar_select %p189, %s16, 1
        %s191 = smul.addr %s190, 48
        %s192 = smul.addr %s191, 4
        %s193 = scalar_lea.vmem %s1, %s192
      $region24: #{bidirectional_gru_forward.5} parent=15 // pred_fallthru
        _
      // Predicated region
      $region25: #{bidirectional_gru_forward.5} parent=15 // pred_check
        %p194 = pneg %p103
      $region26: #{bidirectional_gru_forward.5} parent=15 // pred_check_branch
        %196 = sbr.rel (%p194) target = $region28
      $region27: #{bidirectional_gru_forward.5} parent=15 // pred_region
        %p197 = scmp.lt.s32.totalorder %s16, 1
        %s198 = scalar_select %p197, %s16, 1
        %s199 = scalar_lea.vmem %s2, %s198
      $region28: #{bidirectional_gru_forward.5} parent=15 // pred_fallthru
        _
    $region16: #{bidirectional_gru_forward.5} parent=5 // pred_fallthru
      _
    %p200 = scmp.le.s32.totalorder 1, %s9
    %p201 = scmp.lt.s32.totalorder %s9, 3
    %p202 = pnand %p200, %p201
    %p203 = pneg %p202
    // Predicated region
    $region29: #{bidirectional_gru_forward.5} parent=5 // pred_check
      _
    $region30: #{bidirectional_gru_forward.5} parent=5 // pred_check_branch
      %205 = sbr.rel (%p202) target = $region32
    $region31: #{bidirectional_gru_forward.5} parent=5 // pred_region
      %s206 = ssub.s32 %s9, 1
      %s207 = smul.u32 %s19, 2
      %s208 = ssub.s32 0, %s207
      %s209 = smul.u32 %s18, %s208
      %s210 = sadd.s32 %s19, %s209
      %s211 = smul.u32 8, %s210
      %p212 = scmp.lt.s32.totalorder %s18, 1
      %s213 = scalar_select %p212, %s18, 1
      %p214 = scmp.lt.s32.totalorder %s211, 7
      %s215 = scalar_select %p214, %s211, 7
      %s216 = smul.addr %s215, 3
      %s217 = smul.addr %s213, 24
      %s218 = sadd.s32 %s216, %s217
      %s219 = smul.addr %s218, 4
      %s220 = scalar_lea.vmem %s0, %s219
      %p221 = pneg %p57
      %p222 = pneg %p54
      %p223 = scmp.lt.s32.totalorder %s18, 1
      %s224 = scalar_select %p223, %s18, 1
      %s225 = smul.addr %s224, 48
      %s226 = smul.addr %s225, 4
      %s227 = scalar_lea.vmem %s1, %s226
      %p228 = pneg %p83
      %p229 = pneg %p80
      %p230 = scmp.lt.s32.totalorder %s18, 1
      %s231 = scalar_select %p230, %s18, 1
      %s232 = scalar_lea.vmem %s2, %s231
      %p233 = pneg %p109
      %p234 = pneg %p106
      %p235 = pneg %p145
      %p236 = pneg %p142
      %s237 = smul.u32 %s19, 2
      %s238 = ssub.s32 0, %s237
      %s239 = smul.u32 %s18, %s238
      %s240 = sadd.s32 %s19, %s239
      %s241 = smul.u32 8, %s240
      %p242 = scmp.lt.s32.totalorder %s18, 1
      %s243 = scalar_select %p242, %s18, 1
      %p244 = scmp.lt.s32.totalorder %s241, 7
      %s245 = scalar_select %p244, %s241, 7
      %s246 = smul.addr %s243, 8
      %s247 = sadd.s32 %s245, %s246
      %s248 = smul.addr %s247, 4
      %s249 = scalar_lea.vmem %s3, %s248
      %s250 = smul.u32 %s19, 2
      %s251 = ssub.s32 0, %s250
      %s252 = smul.u32 %s18, %s251
      %s253 = sadd.s32 %s19, %s252
      %s254 = smul.u32 8, %s253
      %p255 = scmp.lt.s32.totalorder %s18, 1
      %s256 = scalar_select %p255, %s18, 1
      %p257 = scmp.lt.s32.totalorder %s254, 7
      %s258 = scalar_select %p257, %s254, 7
      %s259 = smul.addr %s258, 3
      %s260 = smul.addr %s256, 24
      %s261 = sadd.s32 %s259, %s260
      %s262 = smul.addr %s261, 4
      %s263 = scalar_lea.vmem %s0, %s262
      %s264 = smul.u32 %s19, 2
      %s265 = ssub.s32 0, %s264
      %s266 = smul.u32 %s18, %s265
      %s267 = sadd.s32 %s19, %s266
      %s268 = smul.u32 8, %s267
      %p269 = scmp.lt.s32.totalorder %s18, 1
      %s270 = scalar_select %p269, %s18, 1
      %s271 = smul.addr %s270, 48
      %s272 = smul.addr %s271, 4
      %s273 = scalar_lea.vmem %s1, %s272
      %p274 = scmp.lt.s32.totalorder %s18, 1
      %s275 = scalar_select %p274, %s18, 1
      %s276 = scalar_lea.vmem %s2, %s275
      %s277 = smul.u32 %s19, 2
      %s278 = ssub.s32 0, %s277
      %s279 = smul.u32 %s18, %s278
      %s280 = sadd.s32 %s19, %s279
      %s281 = smul.u32 8, %s280
      %p282 = scmp.lt.s32.totalorder %s18, 1
      %s283 = scalar_select %p282, %s18, 1
      %p284 = scmp.lt.s32.totalorder %s281, 7
      %s285 = scalar_select %p284, %s281, 7
      %s286 = smul.addr %s283, 8
      %s287 = sadd.s32 %s285, %s286
      %s288 = smul.addr %s287, 4
      %s289 = scalar_lea.vmem %s3, %s288
      %s290 = smul.u32 %s19, 2
      %s291 = ssub.s32 0, %s290
      %s292 = smul.u32 %s18, %s291
      %s293 = sadd.s32 %s19, %s292
      %s294 = smul.u32 8, %s293
      %p296 = scmp.eq.s32.totalorder %s18, 0
      %p297 = scmp.eq.s32.totalorder %s19, 0
      // Predicated region
      $region33: #{bidirectional_gru_forward.5} parent=31 // pred_check
        %p298 = pneg %p297
      $region34: #{bidirectional_gru_forward.5} parent=31 // pred_check_branch
        %300 = sbr.rel (%p298) target = $region36
      $region35: #{bidirectional_gru_forward.5} parent=31 // pred_region
        %301 = vst [vmem:[#allocation2] sm:$0xff] 0.0
      $region36: #{bidirectional_gru_forward.5} parent=31 // pred_fallthru
        _
      %v302 = vld [vmem:[%s273] sm:$0xff]
      %v303 = vld [vmem:[%s273 + $0x8] sm:$0xf]
      %v304 = vld [vmem:[%s273 + $0xc] sm:$0xff]
      %v305 = vld [vmem:[%s273 + $0x14] sm:$0xf]
      %v306 = vld [vmem:[%s273 + $0x18] sm:$0xff]
      %v307 = vld [vmem:[%s273 + $0x20] sm:$0xf]
      %v308 = vld [vmem:[%s273 + $0x24] sm:$0xff]
      %v309 = vld [vmem:[%s273 + $0x2c] sm:$0xf]
      %v310 = vld [vmem:[%s273 + $0x30] sm:$0xff]
      %v311 = vld [vmem:[%s273 + $0x38] sm:$0xf]
      %v312 = vld [vmem:[%s273 + $0x3c] sm:$0xff]
      %v313 = vld [vmem:[%s273 + $0x44] sm:$0xf]
      %v314 = vld [vmem:[%s273 + $0x48] sm:$0xff]
      %v315 = vld [vmem:[%s273 + $0x50] sm:$0xf]
      %v316 = vld [vmem:[%s273 + $0x54] sm:$0xff]
      %v317 = vld [vmem:[%s273 + $0x5c] sm:$0xf]
      %v318 = vld [vmem:[%s273 + $0x60] sm:$0xff]
      %v319 = vld [vmem:[%s273 + $0x68] sm:$0xf]
      %v320 = vld [vmem:[%s273 + $0x6c] sm:$0xff]
      %v321 = vld [vmem:[%s273 + $0x74] sm:$0xf]
      %v322 = vld [vmem:[%s273 + $0x78] sm:$0xff]
      %v323 = vld [vmem:[%s273 + $0x80] sm:$0xf]
      %v324 = vld [vmem:[%s273 + $0x84] sm:$0xff]
      %v325 = vld [vmem:[%s273 + $0x8c] sm:$0xf]
      %v326 = vld [vmem:[%s273 + $0x90] sm:$0xff]
      %v327 = vld [vmem:[%s273 + $0x98] sm:$0xf]
      %v328 = vld [vmem:[%s273 + $0x9c] sm:$0xff]
      %v329 = vld [vmem:[%s273 + $0xa4] sm:$0xf]
      %v330 = vld [vmem:[%s273 + $0xa8] sm:$0xff]
      %v331 = vld [vmem:[%s273 + $0xb0] sm:$0xf]
      %v332 = vld [vmem:[%s273 + $0xb4] sm:$0xff]
      %v333 = vld [vmem:[%s273 + $0xbc] sm:$0xf]
      %v334 = vld [vmem:[%s276] sm:$0x1]
      %v336 = vlaneseq
      %v337 = vshrl.u32 %v336, 7
      %v338 = vsub.s32 0, %v337
      %v339 = vrot.slane %v334, %v338
      %v341 = vld [vmem:[#allocation2] sm:$0xff]
      %s342 = scalar_select %p296, 0, 7
      %s343 = smul.u32 %s342, 3
      %s344 = smul.addr %s343, 4
      %s345 = scalar_lea.vmem %s263, %s344
      %v346 = vld [vmem:[%s345] sm:$0xff]
      %v347 = vld [vmem:[%s345 + $0x8] sm:$0xf]
      %v348 = vpack.c.bf16 %v341, %v341
      %v381 = vunpack.c.l.b16 %v302
      %v382 = vunpack.c.h.b16 %v302
      %v383 = vunpack.c.l.b16 %v303
      %v384 = vunpack.c.l.b16 %v304
      %v385 = vunpack.c.h.b16 %v304
      %v386 = vunpack.c.l.b16 %v305
      %v387 = vunpack.c.l.b16 %v306
      %v388 = vunpack.c.h.b16 %v306
      %v389 = vunpack.c.l.b16 %v307
      %v390 = vunpack.c.l.b16 %v308
      %v391 = vunpack.c.h.b16 %v308
      %v392 = vunpack.c.l.b16 %v309
      %v393 = vunpack.c.l.b16 %v310
      %v394 = vunpack.c.h.b16 %v310
      %v395 = vunpack.c.l.b16 %v311
      %v396 = vunpack.c.l.b16 %v312
      %v397 = vunpack.c.h.b16 %v312
      %v398 = vunpack.c.l.b16 %v313
      %v399 = vunpack.c.l.b16 %v314
      %v400 = vunpack.c.h.b16 %v314
      %v401 = vunpack.c.l.b16 %v315
      %v402 = vunpack.c.l.b16 %v316
      %v403 = vunpack.c.h.b16 %v316
      %v404 = vunpack.c.l.b16 %v317
      %v405 = vunpack.c.l.b16 %v318
      %v406 = vunpack.c.h.b16 %v318
      %v407 = vunpack.c.l.b16 %v319
      %v408 = vunpack.c.l.b16 %v320
      %v409 = vunpack.c.h.b16 %v320
      %v410 = vunpack.c.l.b16 %v321
      %v411 = vunpack.c.l.b16 %v322
      %v412 = vunpack.c.h.b16 %v322
      %v413 = vunpack.c.l.b16 %v323
      %v414 = vunpack.c.l.b16 %v324
      %v415 = vunpack.c.h.b16 %v324
      %v416 = vunpack.c.l.b16 %v325
      %v417 = vunpack.c.l.b16 %v326
      %v418 = vunpack.c.h.b16 %v326
      %v419 = vunpack.c.l.b16 %v327
      %v420 = vunpack.c.l.b16 %v328
      %v421 = vunpack.c.h.b16 %v328
      %v422 = vunpack.c.l.b16 %v329
      %v423 = vunpack.c.l.b16 %v330
      %v424 = vunpack.c.h.b16 %v330
      %v425 = vunpack.c.l.b16 %v331
      %v426 = vunpack.c.l.b16 %v332
      %v427 = vunpack.c.h.b16 %v332
      %v428 = vunpack.c.l.b16 %v333
      %v429 = vpack.c.b16 %v384, %v381
      %v430 = vpack.c.b16 %v385, %v382
      %v431 = vpack.c.b16 %v386, %v383
      %v432 = vpack.c.b16 %v390, %v387
      %v433 = vpack.c.b16 %v391, %v388
      %v434 = vpack.c.b16 %v392, %v389
      %v435 = vpack.c.b16 %v396, %v393
      %v436 = vpack.c.b16 %v397, %v394
      %v437 = vpack.c.b16 %v398, %v395
      %v438 = vpack.c.b16 %v402, %v399
      %v439 = vpack.c.b16 %v403, %v400
      %v440 = vpack.c.b16 %v404, %v401
      %v441 = vpack.c.b16 %v408, %v405
      %v442 = vpack.c.b16 %v409, %v406
      %v443 = vpack.c.b16 %v410, %v407
      %v444 = vpack.c.b16 %v414, %v411
      %v445 = vpack.c.b16 %v415, %v412
      %v446 = vpack.c.b16 %v416, %v413
      %v447 = vpack.c.b16 %v420, %v417
      %v448 = vpack.c.b16 %v421, %v418
      %v449 = vpack.c.b16 %v422, %v419
      %v450 = vpack.c.b16 %v426, %v423
      %v451 = vpack.c.b16 %v427, %v424
      %v452 = vpack.c.b16 %v428, %v425
      %477 = vmatprep.subr.bf16.mxu0 %v430
      %478 = vmatpush1.bf16.msra.mxu0 %v429
      %479 = vmatprep.subr.bf16.mxu0 %v433
      %480 = vmatpush1.bf16.msra.mxu0 %v432
      %481 = vmatprep.subr.bf16.mxu0 %v436
      %482 = vmatpush1.bf16.msra.mxu0 %v435
      %483 = vmatprep.subr.bf16.mxu0 %v439
      %484 = vmatpush1.bf16.msra.mxu0 %v438
      %485 = vmatprep.subr.bf16.mxu0 %v442
      %486 = vmatpush1.bf16.msra.mxu0 %v441
      %487 = vmatprep.subr.bf16.mxu0 %v445
      %488 = vmatpush1.bf16.msra.mxu0 %v444
      %489 = vmatprep.subr.bf16.mxu0 %v448
      %490 = vmatpush1.bf16.msra.mxu0 %v447
      %491 = vmatprep.subr.bf16.mxu0 %v451
      %492 = vmatpush1.bf16.msra.mxu0 %v450
      %493 = vmatprep.subr.bf16.mxu0 0
      %494 = vmatpush1.bf16.msra.mxu0 0
      %495 = vmatprep.subr.bf16.mxu0 0
      %496 = vmatpush1.bf16.msra.mxu0 0
      %497 = vmatprep.subr.bf16.mxu0 0
      %498 = vmatpush1.bf16.msra.mxu0 0
      %499 = vmatprep.subr.bf16.mxu0 0
      %500 = vmatpush1.bf16.msra.mxu0 0
      %501 = vmatprep.subr.bf16.mxu0 0
      %502 = vmatpush1.bf16.msra.mxu0 0
      %503 = vmatprep.subr.bf16.mxu0 0
      %504 = vmatpush1.bf16.msra.mxu0 0
      %505 = vmatprep.subr.bf16.mxu0 0
      %506 = vmatpush1.bf16.msra.mxu0 0
      %507 = vmatprep.subr.bf16.mxu0 0
      %508 = vmatpush1.bf16.msra.mxu0 0
      %509 = vmatprep.mubr.bf16.mxu0 0
      %510 = vmatmul.mubr.bf16.gmra.mrb[0].mxu0 %v348
      %v511 = vpop.f32.mrb[0].mxu0
      %v512 = vadd.f32 0.0, %v511
      %v513 = vpop.f32.mrb[0].mxu0
      %v514 = vadd.f32 0.0, %v513
      %v515 = vpop.f32.mrb[0].mxu0
      %v516 = vpop.f32.mrb[0].mxu0
      %517 = vdwg.mxu0
      %518 = vmatprep.subr.bf16.mxu0 0
      %519 = vmatpush1.bf16.msra.mxu0 %v431
      %520 = vmatprep.subr.bf16.mxu0 0
      %521 = vmatpush1.bf16.msra.mxu0 %v434
      %522 = vmatprep.subr.bf16.mxu0 0
      %523 = vmatpush1.bf16.msra.mxu0 %v437
      %524 = vmatprep.subr.bf16.mxu0 0
      %525 = vmatpush1.bf16.msra.mxu0 %v440
      %526 = vmatprep.subr.bf16.mxu0 0
      %527 = vmatpush1.bf16.msra.mxu0 %v443
      %528 = vmatprep.subr.bf16.mxu0 0
      %529 = vmatpush1.bf16.msra.mxu0 %v446
      %530 = vmatprep.subr.bf16.mxu0 0
      %531 = vmatpush1.bf16.msra.mxu0 %v449
      %532 = vmatprep.subr.bf16.mxu0 0
      %533 = vmatpush1.bf16.msra.mxu0 %v452
      %534 = vmatprep.subr.bf16.mxu0 0
      %535 = vmatpush1.bf16.msra.mxu0 0
      %536 = vmatprep.subr.bf16.mxu0 0
      %537 = vmatpush1.bf16.msra.mxu0 0
      %538 = vmatprep.subr.bf16.mxu0 0
      %539 = vmatpush1.bf16.msra.mxu0 0
      %540 = vmatprep.subr.bf16.mxu0 0
      %541 = vmatpush1.bf16.msra.mxu0 0
      %542 = vmatprep.subr.bf16.mxu0 0
      %543 = vmatpush1.bf16.msra.mxu0 0
      %544 = vmatprep.subr.bf16.mxu0 0
      %545 = vmatpush1.bf16.msra.mxu0 0
      %546 = vmatprep.subr.bf16.mxu0 0
      %547 = vmatpush1.bf16.msra.mxu0 0
      %548 = vmatprep.subr.bf16.mxu0 0
      %549 = vmatpush1.bf16.msra.mxu0 0
      %550 = vmatprep.mubr.bf16.mxu0 0
      %551 = vmatmul.mubr.bf16.gmra.mrb[0].mxu0 %v348
      %v552 = vpop.f32.mrb[0].mxu0
      %v553 = vadd.f32 0.0, %v552
      %v554 = vpop.f32.mrb[0].mxu0
      %v555 = vpop.f32.mrb[0].mxu0
      %v556 = vpop.f32.mrb[0].mxu0
      %557 = vdwg.mxu0
      %v558 = vunpack.c.l.bf16 %v346
      %v559 = vunpack.c.h.bf16 %v346
      %v560 = vunpack.c.l.bf16 %v347
      %v561 = vadd.f32 %v558, %v512
      %v562 = vxor.u32 %v561, 2147483648
      %v563 = vmul.f32 %v562, 1.442695
      %v564 = vpow.pop %v563
      %v565 = vadd.f32 %v564, 1.0
      %v566 = vrcp.pop %v565
      %v567 = vmul.f32 1.0, %v566
      %v568 = vadd.f32 %v559, %v514
      %v569 = vxor.u32 %v568, 2147483648
      %v570 = vmul.f32 %v569, 1.442695
      %v571 = vpow.pop %v570
      %v572 = vadd.f32 %v571, 1.0
      %v573 = vrcp.pop %v572
      %v574 = vmul.f32 1.0, %v573
      %v575 = vadd.f32 %v553, %v339
      %v576 = vmul.f32 %v567, %v575
      %v577 = vadd.f32 %v560, %v576
      %v578 = vtanh.pop %v577
      %v579 = vsub.f32 1.0, %v574
      %v580 = vmul.f32 %v579, %v578
      %v581 = vmul.f32 %v574, %v341
      %v582 = vadd.f32 %v580, %v581
      %v583 = vpack.c.bf16 %v582, %v582
      %s584 = smul.addr %s342, 4
      %s585 = scalar_lea.vmem %s289, %s584
      %586 = vst [vmem:[%s585] sm:$0xf] %v583
      %s587 = scalar_select %p296, 1, 6
      %s588 = smul.u32 %s587, 3
      %s589 = smul.addr %s588, 4
      %s590 = scalar_lea.vmem %s263, %s589
      %v591 = vld [vmem:[%s590] sm:$0xff]
      %v592 = vld [vmem:[%s590 + $0x8] sm:$0xf]
      %593 = vmatprep.subr.bf16.mxu0 %v430
      %594 = vmatpush1.bf16.msra.mxu0 %v429
      %595 = vmatprep.subr.bf16.mxu0 %v433
      %596 = vmatpush1.bf16.msra.mxu0 %v432
      %597 = vmatprep.subr.bf16.mxu0 %v436
      %598 = vmatpush1.bf16.msra.mxu0 %v435
      %599 = vmatprep.subr.bf16.mxu0 %v439
      %600 = vmatpush1.bf16.msra.mxu0 %v438
      %601 = vmatprep.subr.bf16.mxu0 %v442
      %602 = vmatpush1.bf16.msra.mxu0 %v441
      %603 = vmatprep.subr.bf16.mxu0 %v445
      %604 = vmatpush1.bf16.msra.mxu0 %v444
      %605 = vmatprep.subr.bf16.mxu0 %v448
      %606 = vmatpush1.bf16.msra.mxu0 %v447
      %607 = vmatprep.subr.bf16.mxu0 %v451
      %608 = vmatpush1.bf16.msra.mxu0 %v450
      %609 = vmatprep.subr.bf16.mxu0 0
      %610 = vmatpush1.bf16.msra.mxu0 0
      %611 = vmatprep.subr.bf16.mxu0 0
      %612 = vmatpush1.bf16.msra.mxu0 0
      %613 = vmatprep.subr.bf16.mxu0 0
      %614 = vmatpush1.bf16.msra.mxu0 0
      %615 = vmatprep.subr.bf16.mxu0 0
      %616 = vmatpush1.bf16.msra.mxu0 0
      %617 = vmatprep.subr.bf16.mxu0 0
      %618 = vmatpush1.bf16.msra.mxu0 0
      %619 = vmatprep.subr.bf16.mxu0 0
      %620 = vmatpush1.bf16.msra.mxu0 0
      %621 = vmatprep.subr.bf16.mxu0 0
      %622 = vmatpush1.bf16.msra.mxu0 0
      %623 = vmatprep.subr.bf16.mxu0 0
      %624 = vmatpush1.bf16.msra.mxu0 0
      %625 = vmatprep.mubr.bf16.mxu0 0
      %626 = vmatmul.mubr.bf16.gmra.mrb[0].mxu0 %v583
      %v627 = vpop.f32.mrb[0].mxu0
      %v628 = vadd.f32 0.0, %v627
      %v629 = vpop.f32.mrb[0].mxu0
      %v630 = vadd.f32 0.0, %v629
      %v631 = vpop.f32.mrb[0].mxu0
      %v632 = vpop.f32.mrb[0].mxu0
      %633 = vdwg.mxu0
      %634 = vmatprep.subr.bf16.mxu0 0
      %635 = vmatpush1.bf16.msra.mxu0 %v431
      %636 = vmatprep.subr.bf16.mxu0 0
      %637 = vmatpush1.bf16.msra.mxu0 %v434
      %638 = vmatprep.subr.bf16.mxu0 0
      %639 = vmatpush1.bf16.msra.mxu0 %v437
      %640 = vmatprep.subr.bf16.mxu0 0
      %641 = vmatpush1.bf16.msra.mxu0 %v440
      %642 = vmatprep.subr.bf16.mxu0 0
      %643 = vmatpush1.bf16.msra.mxu0 %v443
      %644 = vmatprep.subr.bf16.mxu0 0
      %645 = vmatpush1.bf16.msra.mxu0 %v446
      %646 = vmatprep.subr.bf16.mxu0 0
      %647 = vmatpush1.bf16.msra.mxu0 %v449
      %648 = vmatprep.subr.bf16.mxu0 0
      %649 = vmatpush1.bf16.msra.mxu0 %v452
      %650 = vmatprep.subr.bf16.mxu0 0
      %651 = vmatpush1.bf16.msra.mxu0 0
      %652 = vmatprep.subr.bf16.mxu0 0
      %653 = vmatpush1.bf16.msra.mxu0 0
      %654 = vmatprep.subr.bf16.mxu0 0
      %655 = vmatpush1.bf16.msra.mxu0 0
      %656 = vmatprep.subr.bf16.mxu0 0
      %657 = vmatpush1.bf16.msra.mxu0 0
      %658 = vmatprep.subr.bf16.mxu0 0
      %659 = vmatpush1.bf16.msra.mxu0 0
      %660 = vmatprep.subr.bf16.mxu0 0
      %661 = vmatpush1.bf16.msra.mxu0 0
      %662 = vmatprep.subr.bf16.mxu0 0
      %663 = vmatpush1.bf16.msra.mxu0 0
      %664 = vmatprep.subr.bf16.mxu0 0
      %665 = vmatpush1.bf16.msra.mxu0 0
      %666 = vmatprep.mubr.bf16.mxu0 0
      %667 = vmatmul.mubr.bf16.gmra.mrb[0].mxu0 %v583
      %v668 = vpop.f32.mrb[0].mxu0
      %v669 = vadd.f32 0.0, %v668
      %v670 = vpop.f32.mrb[0].mxu0
      %v671 = vpop.f32.mrb[0].mxu0
      %v672 = vpop.f32.mrb[0].mxu0
      %673 = vdwg.mxu0
      %v674 = vunpack.c.l.bf16 %v591
      %v675 = vunpack.c.h.bf16 %v591
      %v676 = vunpack.c.l.bf16 %v592
      %v677 = vadd.f32 %v674, %v628
      %v678 = vxor.u32 %v677, 2147483648
      %v679 = vmul.f32 %v678, 1.442695
      %v680 = vpow.pop %v679
      %v681 = vadd.f32 %v680, 1.0
      %v682 = vrcp.pop %v681
      %v683 = vmul.f32 1.0, %v682
      %v684 = vadd.f32 %v675, %v630
      %v685 = vxor.u32 %v684, 2147483648
      %v686 = vmul.f32 %v685, 1.442695
      %v687 = vpow.pop %v686
      %v688 = vadd.f32 %v687, 1.0
      %v689 = vrcp.pop %v688
      %v690 = vmul.f32 1.0, %v689
      %v691 = vadd.f32 %v669, %v339
      %v692 = vmul.f32 %v683, %v691
      %v693 = vadd.f32 %v676, %v692
      %v694 = vtanh.pop %v693
      %v695 = vsub.f32 1.0, %v690
      %v696 = vmul.f32 %v695, %v694
      %v697 = vmul.f32 %v690, %v582
      %v698 = vadd.f32 %v696, %v697
      %v699 = vpack.c.bf16 %v698, %v698
      %s700 = smul.addr %s587, 4
      %s701 = scalar_lea.vmem %s289, %s700
      %702 = vst [vmem:[%s701] sm:$0xf] %v699
      %s703 = scalar_select %p296, 2, 5
      %s704 = smul.u32 %s703, 3
      %s705 = smul.addr %s704, 4
      %s706 = scalar_lea.vmem %s263, %s705
      %v707 = vld [vmem:[%s706] sm:$0xff]
      %v708 = vld [vmem:[%s706 + $0x8] sm:$0xf]
      %709 = vmatprep.subr.bf16.mxu0 %v430
      %710 = vmatpush1.bf16.msra.mxu0 %v429
      %711 = vmatprep.subr.bf16.mxu0 %v433
      %712 = vmatpush1.bf16.msra.mxu0 %v432
      %713 = vmatprep.subr.bf16.mxu0 %v436
      %714 = vmatpush1.bf16.msra.mxu0 %v435
      %715 = vmatprep.subr.bf16.mxu0 %v439
      %716 = vmatpush1.bf16.msra.mxu0 %v438
      %717 = vmatprep.subr.bf16.mxu0 %v442
      %718 = vmatpush1.bf16.msra.mxu0 %v441
      %719 = vmatprep.subr.bf16.mxu0 %v445
      %720 = vmatpush1.bf16.msra.mxu0 %v444
      %721 = vmatprep.subr.bf16.mxu0 %v448
      %722 = vmatpush1.bf16.msra.mxu0 %v447
      %723 = vmatprep.subr.bf16.mxu0 %v451
      %724 = vmatpush1.bf16.msra.mxu0 %v450
      %725 = vmatprep.subr.bf16.mxu0 0
      %726 = vmatpush1.bf16.msra.mxu0 0
      %727 = vmatprep.subr.bf16.mxu0 0
      %728 = vmatpush1.bf16.msra.mxu0 0
      %729 = vmatprep.subr.bf16.mxu0 0
      %730 = vmatpush1.bf16.msra.mxu0 0
      %731 = vmatprep.subr.bf16.mxu0 0
      %732 = vmatpush1.bf16.msra.mxu0 0
      %733 = vmatprep.subr.bf16.mxu0 0
      %734 = vmatpush1.bf16.msra.mxu0 0
      %735 = vmatprep.subr.bf16.mxu0 0
      %736 = vmatpush1.bf16.msra.mxu0 0
      %737 = vmatprep.subr.bf16.mxu0 0
      %738 = vmatpush1.bf16.msra.mxu0 0
      %739 = vmatprep.subr.bf16.mxu0 0
      %740 = vmatpush1.bf16.msra.mxu0 0
      %741 = vmatprep.mubr.bf16.mxu0 0
      %742 = vmatmul.mubr.bf16.gmra.mrb[0].mxu0 %v699
      %v743 = vpop.f32.mrb[0].mxu0
      %v744 = vadd.f32 0.0, %v743
      %v745 = vpop.f32.mrb[0].mxu0
      %v746 = vadd.f32 0.0, %v745
      %v747 = vpop.f32.mrb[0].mxu0
      %v748 = vpop.f32.mrb[0].mxu0
      %749 = vdwg.mxu0
      %750 = vmatprep.subr.bf16.mxu0 0
      %751 = vmatpush1.bf16.msra.mxu0 %v431
      %752 = vmatprep.subr.bf16.mxu0 0
      %753 = vmatpush1.bf16.msra.mxu0 %v434
      %754 = vmatprep.subr.bf16.mxu0 0
      %755 = vmatpush1.bf16.msra.mxu0 %v437
      %756 = vmatprep.subr.bf16.mxu0 0
      %757 = vmatpush1.bf16.msra.mxu0 %v440
      %758 = vmatprep.subr.bf16.mxu0 0
      %759 = vmatpush1.bf16.msra.mxu0 %v443
      %760 = vmatprep.subr.bf16.mxu0 0
      %761 = vmatpush1.bf16.msra.mxu0 %v446
      %762 = vmatprep.subr.bf16.mxu0 0
      %763 = vmatpush1.bf16.msra.mxu0 %v449
      %764 = vmatprep.subr.bf16.mxu0 0
      %765 = vmatpush1.bf16.msra.mxu0 %v452
      %766 = vmatprep.subr.bf16.mxu0 0
      %767 = vmatpush1.bf16.msra.mxu0 0
      %768 = vmatprep.subr.bf16.mxu0 0
      %769 = vmatpush1.bf16.msra.mxu0 0
      %770 = vmatprep.subr.bf16.mxu0 0
      %771 = vmatpush1.bf16.msra.mxu0 0
      %772 = vmatprep.subr.bf16.mxu0 0
      %773 = vmatpush1.bf16.msra.mxu0 0
      %774 = vmatprep.subr.bf16.mxu0 0
      %775 = vmatpush1.bf16.msra.mxu0 0
      %776 = vmatprep.subr.bf16.mxu0 0
      %777 = vmatpush1.bf16.msra.mxu0 0
      %778 = vmatprep.subr.bf16.mxu0 0
      %779 = vmatpush1.bf16.msra.mxu0 0
      %780 = vmatprep.subr.bf16.mxu0 0
      %781 = vmatpush1.bf16.msra.mxu0 0
      %782 = vmatprep.mubr.bf16.mxu0 0
      %783 = vmatmul.mubr.bf16.gmra.mrb[0].mxu0 %v699
      %v784 = vpop.f32.mrb[0].mxu0
      %v785 = vadd.f32 0.0, %v784
      %v786 = vpop.f32.mrb[0].mxu0
      %v787 = vpop.f32.mrb[0].mxu0
      %v788 = vpop.f32.mrb[0].mxu0
      %789 = vdwg.mxu0
      %v790 = vunpack.c.l.bf16 %v707
      %v791 = vunpack.c.h.bf16 %v707
      %v792 = vunpack.c.l.bf16 %v708
      %v793 = vadd.f32 %v790, %v744
      %v794 = vxor.u32 %v793, 2147483648
      %v795 = vmul.f32 %v794, 1.442695
      %v796 = vpow.pop %v795
      %v797 = vadd.f32 %v796, 1.0
      %v798 = vrcp.pop %v797
      %v799 = vmul.f32 1.0, %v798
      %v800 = vadd.f32 %v791, %v746
      %v801 = vxor.u32 %v800, 2147483648
      %v802 = vmul.f32 %v801, 1.442695
      %v803 = vpow.pop %v802
      %v804 = vadd.f32 %v803, 1.0
      %v805 = vrcp.pop %v804
      %v806 = vmul.f32 1.0, %v805
      %v807 = vadd.f32 %v785, %v339
      %v808 = vmul.f32 %v799, %v807
      %v809 = vadd.f32 %v792, %v808
      %v810 = vtanh.pop %v809
      %v811 = vsub.f32 1.0, %v806
      %v812 = vmul.f32 %v811, %v810
      %v813 = vmul.f32 %v806, %v698
      %v814 = vadd.f32 %v812, %v813
      %v815 = vpack.c.bf16 %v814, %v814
      %s816 = smul.addr %s703, 4
      %s817 = scalar_lea.vmem %s289, %s816
      %818 = vst [vmem:[%s817] sm:$0xf] %v815
      %s819 = scalar_select %p296, 3, 4
      %s820 = smul.u32 %s819, 3
      %s821 = smul.addr %s820, 4
      %s822 = scalar_lea.vmem %s263, %s821
      %v823 = vld [vmem:[%s822] sm:$0xff]
      %v824 = vld [vmem:[%s822 + $0x8] sm:$0xf]
      %825 = vmatprep.subr.bf16.mxu0 %v430
      %826 = vmatpush1.bf16.msra.mxu0 %v429
      %827 = vmatprep.subr.bf16.mxu0 %v433
      %828 = vmatpush1.bf16.msra.mxu0 %v432
      %829 = vmatprep.subr.bf16.mxu0 %v436
      %830 = vmatpush1.bf16.msra.mxu0 %v435
      %831 = vmatprep.subr.bf16.mxu0 %v439
      %832 = vmatpush1.bf16.msra.mxu0 %v438
      %833 = vmatprep.subr.bf16.mxu0 %v442
      %834 = vmatpush1.bf16.msra.mxu0 %v441
      %835 = vmatprep.subr.bf16.mxu0 %v445
      %836 = vmatpush1.bf16.msra.mxu0 %v444
      %837 = vmatprep.subr.bf16.mxu0 %v448
      %838 = vmatpush1.bf16.msra.mxu0 %v447
      %839 = vmatprep.subr.bf16.mxu0 %v451
      %840 = vmatpush1.bf16.msra.mxu0 %v450
      %841 = vmatprep.subr.bf16.mxu0 0
      %842 = vmatpush1.bf16.msra.mxu0 0
      %843 = vmatprep.subr.bf16.mxu0 0
      %844 = vmatpush1.bf16.msra.mxu0 0
      %845 = vmatprep.subr.bf16.mxu0 0
      %846 = vmatpush1.bf16.msra.mxu0 0
      %847 = vmatprep.subr.bf16.mxu0 0
      %848 = vmatpush1.bf16.msra.mxu0 0
      %849 = vmatprep.subr.bf16.mxu0 0
      %850 = vmatpush1.bf16.msra.mxu0 0
      %851 = vmatprep.subr.bf16.mxu0 0
      %852 = vmatpush1.bf16.msra.mxu0 0
      %853 = vmatprep.subr.bf16.mxu0 0
      %854 = vmatpush1.bf16.msra.mxu0 0
      %855 = vmatprep.subr.bf16.mxu0 0
      %856 = vmatpush1.bf16.msra.mxu0 0
      %857 = vmatprep.mubr.bf16.mxu0 0
      %858 = vmatmul.mubr.bf16.gmra.mrb[0].mxu0 %v815
      %v859 = vpop.f32.mrb[0].mxu0
      %v860 = vadd.f32 0.0, %v859
      %v861 = vpop.f32.mrb[0].mxu0
      %v862 = vadd.f32 0.0, %v861
      %v863 = vpop.f32.mrb[0].mxu0
      %v864 = vpop.f32.mrb[0].mxu0
      %865 = vdwg.mxu0
      %866 = vmatprep.subr.bf16.mxu0 0
      %867 = vmatpush1.bf16.msra.mxu0 %v431
      %868 = vmatprep.subr.bf16.mxu0 0
      %869 = vmatpush1.bf16.msra.mxu0 %v434
      %870 = vmatprep.subr.bf16.mxu0 0
      %871 = vmatpush1.bf16.msra.mxu0 %v437
      %872 = vmatprep.subr.bf16.mxu0 0
      %873 = vmatpush1.bf16.msra.mxu0 %v440
      %874 = vmatprep.subr.bf16.mxu0 0
      %875 = vmatpush1.bf16.msra.mxu0 %v443
      %876 = vmatprep.subr.bf16.mxu0 0
      %877 = vmatpush1.bf16.msra.mxu0 %v446
      %878 = vmatprep.subr.bf16.mxu0 0
      %879 = vmatpush1.bf16.msra.mxu0 %v449
      %880 = vmatprep.subr.bf16.mxu0 0
      %881 = vmatpush1.bf16.msra.mxu0 %v452
      %882 = vmatprep.subr.bf16.mxu0 0
      %883 = vmatpush1.bf16.msra.mxu0 0
      %884 = vmatprep.subr.bf16.mxu0 0
      %885 = vmatpush1.bf16.msra.mxu0 0
      %886 = vmatprep.subr.bf16.mxu0 0
      %887 = vmatpush1.bf16.msra.mxu0 0
      %888 = vmatprep.subr.bf16.mxu0 0
      %889 = vmatpush1.bf16.msra.mxu0 0
      %890 = vmatprep.subr.bf16.mxu0 0
      %891 = vmatpush1.bf16.msra.mxu0 0
      %892 = vmatprep.subr.bf16.mxu0 0
      %893 = vmatpush1.bf16.msra.mxu0 0
      %894 = vmatprep.subr.bf16.mxu0 0
      %895 = vmatpush1.bf16.msra.mxu0 0
      %896 = vmatprep.subr.bf16.mxu0 0
      %897 = vmatpush1.bf16.msra.mxu0 0
      %898 = vmatprep.mubr.bf16.mxu0 0
      %899 = vmatmul.mubr.bf16.gmra.mrb[0].mxu0 %v815
      %v900 = vpop.f32.mrb[0].mxu0
      %v901 = vadd.f32 0.0, %v900
      %v902 = vpop.f32.mrb[0].mxu0
      %v903 = vpop.f32.mrb[0].mxu0
      %v904 = vpop.f32.mrb[0].mxu0
      %905 = vdwg.mxu0
      %v906 = vunpack.c.l.bf16 %v823
      %v907 = vunpack.c.h.bf16 %v823
      %v908 = vunpack.c.l.bf16 %v824
      %v909 = vadd.f32 %v906, %v860
      %v910 = vxor.u32 %v909, 2147483648
      %v911 = vmul.f32 %v910, 1.442695
      %v912 = vpow.pop %v911
      %v913 = vadd.f32 %v912, 1.0
      %v914 = vrcp.pop %v913
      %v915 = vmul.f32 1.0, %v914
      %v916 = vadd.f32 %v907, %v862
      %v917 = vxor.u32 %v916, 2147483648
      %v918 = vmul.f32 %v917, 1.442695
      %v919 = vpow.pop %v918
      %v920 = vadd.f32 %v919, 1.0
      %v921 = vrcp.pop %v920
      %v922 = vmul.f32 1.0, %v921
      %v923 = vadd.f32 %v901, %v339
      %v924 = vmul.f32 %v915, %v923
      %v925 = vadd.f32 %v908, %v924
      %v926 = vtanh.pop %v925
      %v927 = vsub.f32 1.0, %v922
      %v928 = vmul.f32 %v927, %v926
      %v929 = vmul.f32 %v922, %v814
      %v930 = vadd.f32 %v928, %v929
      %v931 = vpack.c.bf16 %v930, %v930
      %s932 = smul.addr %s819, 4
      %s933 = scalar_lea.vmem %s289, %s932
      %934 = vst [vmem:[%s933] sm:$0xf] %v931
      %s935 = scalar_select %p296, 4, 3
      %s936 = smul.u32 %s935, 3
      %s937 = smul.addr %s936, 4
      %s938 = scalar_lea.vmem %s263, %s937
      %v939 = vld [vmem:[%s938] sm:$0xff]
      %v940 = vld [vmem:[%s938 + $0x8] sm:$0xf]
      %941 = vmatprep.subr.bf16.mxu0 %v430
      %942 = vmatpush1.bf16.msra.mxu0 %v429
      %943 = vmatprep.subr.bf16.mxu0 %v433
      %944 = vmatpush1.bf16.msra.mxu0 %v432
      %945 = vmatprep.subr.bf16.mxu0 %v436
      %946 = vmatpush1.bf16.msra.mxu0 %v435
      %947 = vmatprep.subr.bf16.mxu0 %v439
      %948 = vmatpush1.bf16.msra.mxu0 %v438
      %949 = vmatprep.subr.bf16.mxu0 %v442
      %950 = vmatpush1.bf16.msra.mxu0 %v441
      %951 = vmatprep.subr.bf16.mxu0 %v445
      %952 = vmatpush1.bf16.msra.mxu0 %v444
      %953 = vmatprep.subr.bf16.mxu0 %v448
      %954 = vmatpush1.bf16.msra.mxu0 %v447
      %955 = vmatprep.subr.bf16.mxu0 %v451
      %956 = vmatpush1.bf16.msra.mxu0 %v450
      %957 = vmatprep.subr.bf16.mxu0 0
      %958 = vmatpush1.bf16.msra.mxu0 0
      %959 = vmatprep.subr.bf16.mxu0 0
      %960 = vmatpush1.bf16.msra.mxu0 0
      %961 = vmatprep.subr.bf16.mxu0 0
      %962 = vmatpush1.bf16.msra.mxu0 0
      %963 = vmatprep.subr.bf16.mxu0 0
      %964 = vmatpush1.bf16.msra.mxu0 0
      %965 = vmatprep.subr.bf16.mxu0 0
      %966 = vmatpush1.bf16.msra.mxu0 0
      %967 = vmatprep.subr.bf16.mxu0 0
      %968 = vmatpush1.bf16.msra.mxu0 0
      %969 = vmatprep.subr.bf16.mxu0 0
      %970 = vmatpush1.bf16.msra.mxu0 0
      %971 = vmatprep.subr.bf16.mxu0 0
      %972 = vmatpush1.bf16.msra.mxu0 0
      %973 = vmatprep.mubr.bf16.mxu0 0
      %974 = vmatmul.mubr.bf16.gmra.mrb[0].mxu0 %v931
      %v975 = vpop.f32.mrb[0].mxu0
      %v976 = vadd.f32 0.0, %v975
      %v977 = vpop.f32.mrb[0].mxu0
      %v978 = vadd.f32 0.0, %v977
      %v979 = vpop.f32.mrb[0].mxu0
      %v980 = vpop.f32.mrb[0].mxu0
      %981 = vdwg.mxu0
      %982 = vmatprep.subr.bf16.mxu0 0
      %983 = vmatpush1.bf16.msra.mxu0 %v431
      %984 = vmatprep.subr.bf16.mxu0 0
      %985 = vmatpush1.bf16.msra.mxu0 %v434
      %986 = vmatprep.subr.bf16.mxu0 0
      %987 = vmatpush1.bf16.msra.mxu0 %v437
      %988 = vmatprep.subr.bf16.mxu0 0
      %989 = vmatpush1.bf16.msra.mxu0 %v440
      %990 = vmatprep.subr.bf16.mxu0 0
      %991 = vmatpush1.bf16.msra.mxu0 %v443
      %992 = vmatprep.subr.bf16.mxu0 0
      %993 = vmatpush1.bf16.msra.mxu0 %v446
      %994 = vmatprep.subr.bf16.mxu0 0
      %995 = vmatpush1.bf16.msra.mxu0 %v449
      %996 = vmatprep.subr.bf16.mxu0 0
      %997 = vmatpush1.bf16.msra.mxu0 %v452
      %998 = vmatprep.subr.bf16.mxu0 0
      %999 = vmatpush1.bf16.msra.mxu0 0
      %1000 = vmatprep.subr.bf16.mxu0 0
      %1001 = vmatpush1.bf16.msra.mxu0 0
      %1002 = vmatprep.subr.bf16.mxu0 0
      %1003 = vmatpush1.bf16.msra.mxu0 0
      %1004 = vmatprep.subr.bf16.mxu0 0
      %1005 = vmatpush1.bf16.msra.mxu0 0
      %1006 = vmatprep.subr.bf16.mxu0 0
      %1007 = vmatpush1.bf16.msra.mxu0 0
      %1008 = vmatprep.subr.bf16.mxu0 0
      %1009 = vmatpush1.bf16.msra.mxu0 0
      %1010 = vmatprep.subr.bf16.mxu0 0
      %1011 = vmatpush1.bf16.msra.mxu0 0
      %1012 = vmatprep.subr.bf16.mxu0 0
      %1013 = vmatpush1.bf16.msra.mxu0 0
      %1014 = vmatprep.mubr.bf16.mxu0 0
      %1015 = vmatmul.mubr.bf16.gmra.mrb[0].mxu0 %v931
      %v1016 = vpop.f32.mrb[0].mxu0
      %v1017 = vadd.f32 0.0, %v1016
      %v1018 = vpop.f32.mrb[0].mxu0
      %v1019 = vpop.f32.mrb[0].mxu0
      %v1020 = vpop.f32.mrb[0].mxu0
      %1021 = vdwg.mxu0
      %v1022 = vunpack.c.l.bf16 %v939
      %v1023 = vunpack.c.h.bf16 %v939
      %v1024 = vunpack.c.l.bf16 %v940
      %v1025 = vadd.f32 %v1022, %v976
      %v1026 = vxor.u32 %v1025, 2147483648
      %v1027 = vmul.f32 %v1026, 1.442695
      %v1028 = vpow.pop %v1027
      %v1029 = vadd.f32 %v1028, 1.0
      %v1030 = vrcp.pop %v1029
      %v1031 = vmul.f32 1.0, %v1030
      %v1032 = vadd.f32 %v1023, %v978
      %v1033 = vxor.u32 %v1032, 2147483648
      %v1034 = vmul.f32 %v1033, 1.442695
      %v1035 = vpow.pop %v1034
      %v1036 = vadd.f32 %v1035, 1.0
      %v1037 = vrcp.pop %v1036
      %v1038 = vmul.f32 1.0, %v1037
      %v1039 = vadd.f32 %v1017, %v339
      %v1040 = vmul.f32 %v1031, %v1039
      %v1041 = vadd.f32 %v1024, %v1040
      %v1042 = vtanh.pop %v1041
      %v1043 = vsub.f32 1.0, %v1038
      %v1044 = vmul.f32 %v1043, %v1042
      %v1045 = vmul.f32 %v1038, %v930
      %v1046 = vadd.f32 %v1044, %v1045
      %v1047 = vpack.c.bf16 %v1046, %v1046
      %s1048 = smul.addr %s935, 4
      %s1049 = scalar_lea.vmem %s289, %s1048
      %1050 = vst [vmem:[%s1049] sm:$0xf] %v1047
      %s1051 = scalar_select %p296, 5, 2
      %s1052 = smul.u32 %s1051, 3
      %s1053 = smul.addr %s1052, 4
      %s1054 = scalar_lea.vmem %s263, %s1053
      %v1055 = vld [vmem:[%s1054] sm:$0xff]
      %v1056 = vld [vmem:[%s1054 + $0x8] sm:$0xf]
      %1057 = vmatprep.subr.bf16.mxu0 %v430
      %1058 = vmatpush1.bf16.msra.mxu0 %v429
      %1059 = vmatprep.subr.bf16.mxu0 %v433
      %1060 = vmatpush1.bf16.msra.mxu0 %v432
      %1061 = vmatprep.subr.bf16.mxu0 %v436
      %1062 = vmatpush1.bf16.msra.mxu0 %v435
      %1063 = vmatprep.subr.bf16.mxu0 %v439
      %1064 = vmatpush1.bf16.msra.mxu0 %v438
      %1065 = vmatprep.subr.bf16.mxu0 %v442
      %1066 = vmatpush1.bf16.msra.mxu0 %v441
      %1067 = vmatprep.subr.bf16.mxu0 %v445
      %1068 = vmatpush1.bf16.msra.mxu0 %v444
      %1069 = vmatprep.subr.bf16.mxu0 %v448
      %1070 = vmatpush1.bf16.msra.mxu0 %v447
      %1071 = vmatprep.subr.bf16.mxu0 %v451
      %1072 = vmatpush1.bf16.msra.mxu0 %v450
      %1073 = vmatprep.subr.bf16.mxu0 0
      %1074 = vmatpush1.bf16.msra.mxu0 0
      %1075 = vmatprep.subr.bf16.mxu0 0
      %1076 = vmatpush1.bf16.msra.mxu0 0
      %1077 = vmatprep.subr.bf16.mxu0 0
      %1078 = vmatpush1.bf16.msra.mxu0 0
      %1079 = vmatprep.subr.bf16.mxu0 0
      %1080 = vmatpush1.bf16.msra.mxu0 0
      %1081 = vmatprep.subr.bf16.mxu0 0
      %1082 = vmatpush1.bf16.msra.mxu0 0
      %1083 = vmatprep.subr.bf16.mxu0 0
      %1084 = vmatpush1.bf16.msra.mxu0 0
      %1085 = vmatprep.subr.bf16.mxu0 0
      %1086 = vmatpush1.bf16.msra.mxu0 0
      %1087 = vmatprep.subr.bf16.mxu0 0
      %1088 = vmatpush1.bf16.msra.mxu0 0
      %1089 = vmatprep.mubr.bf16.mxu0 0
      %1090 = vmatmul.mubr.bf16.gmra.mrb[0].mxu0 %v1047
      %v1091 = vpop.f32.mrb[0].mxu0
      %v1092 = vadd.f32 0.0, %v1091
      %v1093 = vpop.f32.mrb[0].mxu0
      %v1094 = vadd.f32 0.0, %v1093
      %v1095 = vpop.f32.mrb[0].mxu0
      %v1096 = vpop.f32.mrb[0].mxu0
      %1097 = vdwg.mxu0
      %1098 = vmatprep.subr.bf16.mxu0 0
      %1099 = vmatpush1.bf16.msra.mxu0 %v431
      %1100 = vmatprep.subr.bf16.mxu0 0
      %1101 = vmatpush1.bf16.msra.mxu0 %v434
      %1102 = vmatprep.subr.bf16.mxu0 0
      %1103 = vmatpush1.bf16.msra.mxu0 %v437
      %1104 = vmatprep.subr.bf16.mxu0 0
      %1105 = vmatpush1.bf16.msra.mxu0 %v440
      %1106 = vmatprep.subr.bf16.mxu0 0
      %1107 = vmatpush1.bf16.msra.mxu0 %v443
      %1108 = vmatprep.subr.bf16.mxu0 0
      %1109 = vmatpush1.bf16.msra.mxu0 %v446
      %1110 = vmatprep.subr.bf16.mxu0 0
      %1111 = vmatpush1.bf16.msra.mxu0 %v449
      %1112 = vmatprep.subr.bf16.mxu0 0
      %1113 = vmatpush1.bf16.msra.mxu0 %v452
      %1114 = vmatprep.subr.bf16.mxu0 0
      %1115 = vmatpush1.bf16.msra.mxu0 0
      %1116 = vmatprep.subr.bf16.mxu0 0
      %1117 = vmatpush1.bf16.msra.mxu0 0
      %1118 = vmatprep.subr.bf16.mxu0 0
      %1119 = vmatpush1.bf16.msra.mxu0 0
      %1120 = vmatprep.subr.bf16.mxu0 0
      %1121 = vmatpush1.bf16.msra.mxu0 0
      %1122 = vmatprep.subr.bf16.mxu0 0
      %1123 = vmatpush1.bf16.msra.mxu0 0
      %1124 = vmatprep.subr.bf16.mxu0 0
      %1125 = vmatpush1.bf16.msra.mxu0 0
      %1126 = vmatprep.subr.bf16.mxu0 0
      %1127 = vmatpush1.bf16.msra.mxu0 0
      %1128 = vmatprep.subr.bf16.mxu0 0
      %1129 = vmatpush1.bf16.msra.mxu0 0
      %1130 = vmatprep.mubr.bf16.mxu0 0
      %1131 = vmatmul.mubr.bf16.gmra.mrb[0].mxu0 %v1047
      %v1132 = vpop.f32.mrb[0].mxu0
      %v1133 = vadd.f32 0.0, %v1132
      %v1134 = vpop.f32.mrb[0].mxu0
      %v1135 = vpop.f32.mrb[0].mxu0
      %v1136 = vpop.f32.mrb[0].mxu0
      %1137 = vdwg.mxu0
      %v1138 = vunpack.c.l.bf16 %v1055
      %v1139 = vunpack.c.h.bf16 %v1055
      %v1140 = vunpack.c.l.bf16 %v1056
      %v1141 = vadd.f32 %v1138, %v1092
      %v1142 = vxor.u32 %v1141, 2147483648
      %v1143 = vmul.f32 %v1142, 1.442695
      %v1144 = vpow.pop %v1143
      %v1145 = vadd.f32 %v1144, 1.0
      %v1146 = vrcp.pop %v1145
      %v1147 = vmul.f32 1.0, %v1146
      %v1148 = vadd.f32 %v1139, %v1094
      %v1149 = vxor.u32 %v1148, 2147483648
      %v1150 = vmul.f32 %v1149, 1.442695
      %v1151 = vpow.pop %v1150
      %v1152 = vadd.f32 %v1151, 1.0
      %v1153 = vrcp.pop %v1152
      %v1154 = vmul.f32 1.0, %v1153
      %v1155 = vadd.f32 %v1133, %v339
      %v1156 = vmul.f32 %v1147, %v1155
      %v1157 = vadd.f32 %v1140, %v1156
      %v1158 = vtanh.pop %v1157
      %v1159 = vsub.f32 1.0, %v1154
      %v1160 = vmul.f32 %v1159, %v1158
      %v1161 = vmul.f32 %v1154, %v1046
      %v1162 = vadd.f32 %v1160, %v1161
      %v1163 = vpack.c.bf16 %v1162, %v1162
      %s1164 = smul.addr %s1051, 4
      %s1165 = scalar_lea.vmem %s289, %s1164
      %1166 = vst [vmem:[%s1165] sm:$0xf] %v1163
      %s1167 = scalar_select %p296, 6, 1
      %s1168 = smul.u32 %s1167, 3
      %s1169 = smul.addr %s1168, 4
      %s1170 = scalar_lea.vmem %s263, %s1169
      %v1171 = vld [vmem:[%s1170] sm:$0xff]
      %v1172 = vld [vmem:[%s1170 + $0x8] sm:$0xf]
      %1173 = vmatprep.subr.bf16.mxu0 %v430
      %1174 = vmatpush1.bf16.msra.mxu0 %v429
      %1175 = vmatprep.subr.bf16.mxu0 %v433
      %1176 = vmatpush1.bf16.msra.mxu0 %v432
      %1177 = vmatprep.subr.bf16.mxu0 %v436
      %1178 = vmatpush1.bf16.msra.mxu0 %v435
      %1179 = vmatprep.subr.bf16.mxu0 %v439
      %1180 = vmatpush1.bf16.msra.mxu0 %v438
      %1181 = vmatprep.subr.bf16.mxu0 %v442
      %1182 = vmatpush1.bf16.msra.mxu0 %v441
      %1183 = vmatprep.subr.bf16.mxu0 %v445
      %1184 = vmatpush1.bf16.msra.mxu0 %v444
      %1185 = vmatprep.subr.bf16.mxu0 %v448
      %1186 = vmatpush1.bf16.msra.mxu0 %v447
      %1187 = vmatprep.subr.bf16.mxu0 %v451
      %1188 = vmatpush1.bf16.msra.mxu0 %v450
      %1189 = vmatprep.subr.bf16.mxu0 0
      %1190 = vmatpush1.bf16.msra.mxu0 0
      %1191 = vmatprep.subr.bf16.mxu0 0
      %1192 = vmatpush1.bf16.msra.mxu0 0
      %1193 = vmatprep.subr.bf16.mxu0 0
      %1194 = vmatpush1.bf16.msra.mxu0 0
      %1195 = vmatprep.subr.bf16.mxu0 0
      %1196 = vmatpush1.bf16.msra.mxu0 0
      %1197 = vmatprep.subr.bf16.mxu0 0
      %1198 = vmatpush1.bf16.msra.mxu0 0
      %1199 = vmatprep.subr.bf16.mxu0 0
      %1200 = vmatpush1.bf16.msra.mxu0 0
      %1201 = vmatprep.subr.bf16.mxu0 0
      %1202 = vmatpush1.bf16.msra.mxu0 0
      %1203 = vmatprep.subr.bf16.mxu0 0
      %1204 = vmatpush1.bf16.msra.mxu0 0
      %1205 = vmatprep.mubr.bf16.mxu0 0
      %1206 = vmatmul.mubr.bf16.gmra.mrb[0].mxu0 %v1163
      %v1207 = vpop.f32.mrb[0].mxu0
      %v1208 = vadd.f32 0.0, %v1207
      %v1209 = vpop.f32.mrb[0].mxu0
      %v1210 = vadd.f32 0.0, %v1209
      %v1211 = vpop.f32.mrb[0].mxu0
      %v1212 = vpop.f32.mrb[0].mxu0
      %1213 = vdwg.mxu0
      %1214 = vmatprep.subr.bf16.mxu0 0
      %1215 = vmatpush1.bf16.msra.mxu0 %v431
      %1216 = vmatprep.subr.bf16.mxu0 0
      %1217 = vmatpush1.bf16.msra.mxu0 %v434
      %1218 = vmatprep.subr.bf16.mxu0 0
      %1219 = vmatpush1.bf16.msra.mxu0 %v437
      %1220 = vmatprep.subr.bf16.mxu0 0
      %1221 = vmatpush1.bf16.msra.mxu0 %v440
      %1222 = vmatprep.subr.bf16.mxu0 0
      %1223 = vmatpush1.bf16.msra.mxu0 %v443
      %1224 = vmatprep.subr.bf16.mxu0 0
      %1225 = vmatpush1.bf16.msra.mxu0 %v446
      %1226 = vmatprep.subr.bf16.mxu0 0
      %1227 = vmatpush1.bf16.msra.mxu0 %v449
      %1228 = vmatprep.subr.bf16.mxu0 0
      %1229 = vmatpush1.bf16.msra.mxu0 %v452
      %1230 = vmatprep.subr.bf16.mxu0 0
      %1231 = vmatpush1.bf16.msra.mxu0 0
      %1232 = vmatprep.subr.bf16.mxu0 0
      %1233 = vmatpush1.bf16.msra.mxu0 0
      %1234 = vmatprep.subr.bf16.mxu0 0
      %1235 = vmatpush1.bf16.msra.mxu0 0
      %1236 = vmatprep.subr.bf16.mxu0 0
      %1237 = vmatpush1.bf16.msra.mxu0 0
      %1238 = vmatprep.subr.bf16.mxu0 0
      %1239 = vmatpush1.bf16.msra.mxu0 0
      %1240 = vmatprep.subr.bf16.mxu0 0
      %1241 = vmatpush1.bf16.msra.mxu0 0
      %1242 = vmatprep.subr.bf16.mxu0 0
      %1243 = vmatpush1.bf16.msra.mxu0 0
      %1244 = vmatprep.subr.bf16.mxu0 0
      %1245 = vmatpush1.bf16.msra.mxu0 0
      %1246 = vmatprep.mubr.bf16.mxu0 0
      %1247 = vmatmul.mubr.bf16.gmra.mrb[0].mxu0 %v1163
      %v1248 = vpop.f32.mrb[0].mxu0
      %v1249 = vadd.f32 0.0, %v1248
      %v1250 = vpop.f32.mrb[0].mxu0
      %v1251 = vpop.f32.mrb[0].mxu0
      %v1252 = vpop.f32.mrb[0].mxu0
      %1253 = vdwg.mxu0
      %v1254 = vunpack.c.l.bf16 %v1171
      %v1255 = vunpack.c.h.bf16 %v1171
      %v1256 = vunpack.c.l.bf16 %v1172
      %v1257 = vadd.f32 %v1254, %v1208
      %v1258 = vxor.u32 %v1257, 2147483648
      %v1259 = vmul.f32 %v1258, 1.442695
      %v1260 = vpow.pop %v1259
      %v1261 = vadd.f32 %v1260, 1.0
      %v1262 = vrcp.pop %v1261
      %v1263 = vmul.f32 1.0, %v1262
      %v1264 = vadd.f32 %v1255, %v1210
      %v1265 = vxor.u32 %v1264, 2147483648
      %v1266 = vmul.f32 %v1265, 1.442695
      %v1267 = vpow.pop %v1266
      %v1268 = vadd.f32 %v1267, 1.0
      %v1269 = vrcp.pop %v1268
      %v1270 = vmul.f32 1.0, %v1269
      %v1271 = vadd.f32 %v1249, %v339
      %v1272 = vmul.f32 %v1263, %v1271
      %v1273 = vadd.f32 %v1256, %v1272
      %v1274 = vtanh.pop %v1273
      %v1275 = vsub.f32 1.0, %v1270
      %v1276 = vmul.f32 %v1275, %v1274
      %v1277 = vmul.f32 %v1270, %v1162
      %v1278 = vadd.f32 %v1276, %v1277
      %v1279 = vpack.c.bf16 %v1278, %v1278
      %s1280 = smul.addr %s1167, 4
      %s1281 = scalar_lea.vmem %s289, %s1280
      %1282 = vst [vmem:[%s1281] sm:$0xf] %v1279
      %s1283 = scalar_select %p296, 7, 0
      %s1284 = smul.u32 %s1283, 3
      %s1285 = smul.addr %s1284, 4
      %s1286 = scalar_lea.vmem %s263, %s1285
      %v1287 = vld [vmem:[%s1286] sm:$0xff]
      %v1288 = vld [vmem:[%s1286 + $0x8] sm:$0xf]
      %1289 = vmatprep.subr.bf16.mxu0 %v430
      %1290 = vmatpush1.bf16.msra.mxu0 %v429
      %1291 = vmatprep.subr.bf16.mxu0 %v433
      %1292 = vmatpush1.bf16.msra.mxu0 %v432
      %1293 = vmatprep.subr.bf16.mxu0 %v436
      %1294 = vmatpush1.bf16.msra.mxu0 %v435
      %1295 = vmatprep.subr.bf16.mxu0 %v439
      %1296 = vmatpush1.bf16.msra.mxu0 %v438
      %1297 = vmatprep.subr.bf16.mxu0 %v442
      %1298 = vmatpush1.bf16.msra.mxu0 %v441
      %1299 = vmatprep.subr.bf16.mxu0 %v445
      %1300 = vmatpush1.bf16.msra.mxu0 %v444
      %1301 = vmatprep.subr.bf16.mxu0 %v448
      %1302 = vmatpush1.bf16.msra.mxu0 %v447
      %1303 = vmatprep.subr.bf16.mxu0 %v451
      %1304 = vmatpush1.bf16.msra.mxu0 %v450
      %1305 = vmatprep.subr.bf16.mxu0 0
      %1306 = vmatpush1.bf16.msra.mxu0 0
      %1307 = vmatprep.subr.bf16.mxu0 0
      %1308 = vmatpush1.bf16.msra.mxu0 0
      %1309 = vmatprep.subr.bf16.mxu0 0
      %1310 = vmatpush1.bf16.msra.mxu0 0
      %1311 = vmatprep.subr.bf16.mxu0 0
      %1312 = vmatpush1.bf16.msra.mxu0 0
      %1313 = vmatprep.subr.bf16.mxu0 0
      %1314 = vmatpush1.bf16.msra.mxu0 0
      %1315 = vmatprep.subr.bf16.mxu0 0
      %1316 = vmatpush1.bf16.msra.mxu0 0
      %1317 = vmatprep.subr.bf16.mxu0 0
      %1318 = vmatpush1.bf16.msra.mxu0 0
      %1319 = vmatprep.subr.bf16.mxu0 0
      %1320 = vmatpush1.bf16.msra.mxu0 0
      %1321 = vmatprep.mubr.bf16.mxu0 0
      %1322 = vmatmul.mubr.bf16.gmra.mrb[0].mxu0 %v1279
      %v1323 = vpop.f32.mrb[0].mxu0
      %v1324 = vadd.f32 0.0, %v1323
      %v1325 = vpop.f32.mrb[0].mxu0
      %v1326 = vadd.f32 0.0, %v1325
      %v1327 = vpop.f32.mrb[0].mxu0
      %v1328 = vpop.f32.mrb[0].mxu0
      %1329 = vdwg.mxu0
      %1330 = vmatprep.subr.bf16.mxu0 0
      %1331 = vmatpush1.bf16.msra.mxu0 %v431
      %1332 = vmatprep.subr.bf16.mxu0 0
      %1333 = vmatpush1.bf16.msra.mxu0 %v434
      %1334 = vmatprep.subr.bf16.mxu0 0
      %1335 = vmatpush1.bf16.msra.mxu0 %v437
      %1336 = vmatprep.subr.bf16.mxu0 0
      %1337 = vmatpush1.bf16.msra.mxu0 %v440
      %1338 = vmatprep.subr.bf16.mxu0 0
      %1339 = vmatpush1.bf16.msra.mxu0 %v443
      %1340 = vmatprep.subr.bf16.mxu0 0
      %1341 = vmatpush1.bf16.msra.mxu0 %v446
      %1342 = vmatprep.subr.bf16.mxu0 0
      %1343 = vmatpush1.bf16.msra.mxu0 %v449
      %1344 = vmatprep.subr.bf16.mxu0 0
      %1345 = vmatpush1.bf16.msra.mxu0 %v452
      %1346 = vmatprep.subr.bf16.mxu0 0
      %1347 = vmatpush1.bf16.msra.mxu0 0
      %1348 = vmatprep.subr.bf16.mxu0 0
      %1349 = vmatpush1.bf16.msra.mxu0 0
      %1350 = vmatprep.subr.bf16.mxu0 0
      %1351 = vmatpush1.bf16.msra.mxu0 0
      %1352 = vmatprep.subr.bf16.mxu0 0
      %1353 = vmatpush1.bf16.msra.mxu0 0
      %1354 = vmatprep.subr.bf16.mxu0 0
      %1355 = vmatpush1.bf16.msra.mxu0 0
      %1356 = vmatprep.subr.bf16.mxu0 0
      %1357 = vmatpush1.bf16.msra.mxu0 0
      %1358 = vmatprep.subr.bf16.mxu0 0
      %1359 = vmatpush1.bf16.msra.mxu0 0
      %1360 = vmatprep.subr.bf16.mxu0 0
      %1361 = vmatpush1.bf16.msra.mxu0 0
      %1362 = vmatprep.mubr.bf16.mxu0 0
      %1363 = vmatmul.mubr.bf16.gmra.mrb[0].mxu0 %v1279
      %v1364 = vpop.f32.mrb[0].mxu0
      %v1365 = vadd.f32 0.0, %v1364
      %v1366 = vpop.f32.mrb[0].mxu0
      %v1367 = vpop.f32.mrb[0].mxu0
      %v1368 = vpop.f32.mrb[0].mxu0
      %1369 = vdwg.mxu0
      %v1370 = vunpack.c.l.bf16 %v1287
      %v1371 = vunpack.c.h.bf16 %v1287
      %v1372 = vunpack.c.l.bf16 %v1288
      %v1373 = vadd.f32 %v1370, %v1324
      %v1374 = vxor.u32 %v1373, 2147483648
      %v1375 = vmul.f32 %v1374, 1.442695
      %v1376 = vpow.pop %v1375
      %v1377 = vadd.f32 %v1376, 1.0
      %v1378 = vrcp.pop %v1377
      %v1379 = vmul.f32 1.0, %v1378
      %v1380 = vadd.f32 %v1371, %v1326
      %v1381 = vxor.u32 %v1380, 2147483648
      %v1382 = vmul.f32 %v1381, 1.442695
      %v1383 = vpow.pop %v1382
      %v1384 = vadd.f32 %v1383, 1.0
      %v1385 = vrcp.pop %v1384
      %v1386 = vmul.f32 1.0, %v1385
      %v1387 = vadd.f32 %v1365, %v339
      %v1388 = vmul.f32 %v1379, %v1387
      %v1389 = vadd.f32 %v1372, %v1388
      %v1390 = vtanh.pop %v1389
      %v1391 = vsub.f32 1.0, %v1386
      %v1392 = vmul.f32 %v1391, %v1390
      %v1393 = vmul.f32 %v1386, %v1278
      %v1394 = vadd.f32 %v1392, %v1393
      %v1395 = vpack.c.bf16 %v1394, %v1394
      %s1396 = smul.addr %s1283, 4
      %s1397 = scalar_lea.vmem %s289, %s1396
      %1398 = vst [vmem:[%s1397] sm:$0xf] %v1395
      %1399 = vst [vmem:[#allocation2] sm:$0xff] %v1394
      %s1400 = smul.u32 %s19, 2
      %s1401 = ssub.s32 0, %s1400
      %s1402 = smul.u32 %s18, %s1401
      %s1403 = sadd.s32 %s19, %s1402
      %s1404 = smul.u32 8, %s1403
      %p1405 = scmp.lt.s32.totalorder %s18, 1
      %s1406 = scalar_select %p1405, %s18, 1
      %p1407 = scmp.lt.s32.totalorder %s1404, 7
      %s1408 = scalar_select %p1407, %s1404, 7
      %s1409 = smul.addr %s1406, 8
      %s1410 = sadd.s32 %s1408, %s1409
      %s1411 = smul.addr %s1410, 4
      %s1412 = scalar_lea.vmem %s3, %s1411
      // Predicated region
      $region37: #{bidirectional_gru_forward.5} parent=31 // pred_check
        %p1413 = pneg %p142
      $region38: #{bidirectional_gru_forward.5} parent=31 // pred_check_branch
        %1415 = sbr.rel (%p1413) target = $region40
      $region39: #{bidirectional_gru_forward.5} parent=31 // pred_region
        %s1416 = smul.u32 %s19, 2
        %s1417 = ssub.s32 0, %s1416
        %s1418 = smul.u32 %s18, %s1417
        %s1419 = sadd.s32 %s19, %s1418
        %s1420 = smul.u32 8, %s1419
      $region40: #{bidirectional_gru_forward.5} parent=31 // pred_fallthru
        _
    $region32: #{bidirectional_gru_forward.5} parent=5 // pred_fallthru
      _
    %p1421 = scmp.le.s32.totalorder 2, %s9
    // Predicated region
    $region41: #{bidirectional_gru_forward.5} parent=5 // pred_check
      %p1422 = pneg %p1421
    $region42: #{bidirectional_gru_forward.5} parent=5 // pred_check_branch
      %1424 = sbr.rel (%p1422) target = $region44
    $region43: #{bidirectional_gru_forward.5} parent=5 // pred_region
      %s1425 = ssub.s32 %s9, 2
      // Predicated region
      $region45: #{bidirectional_gru_forward.5} parent=43 // pred_check
        %p1426 = pneg %p148
      $region46: #{bidirectional_gru_forward.5} parent=43 // pred_check_branch
        %1428 = sbr.rel (%p1426) target = $region48
      $region47: #{bidirectional_gru_forward.5} parent=43 // pred_region
        %s1429 = smul.u32 %s21, 2
        %s1430 = ssub.s32 0, %s1429
        %s1431 = smul.u32 %s20, %s1430
        %s1432 = sadd.s32 %s21, %s1431
        %s1433 = smul.u32 8, %s1432
        %p1434 = scmp.lt.s32.totalorder %s20, 1
        %s1435 = scalar_select %p1434, %s20, 1
        %p1436 = scmp.lt.s32.totalorder %s1433, 7
        %s1437 = scalar_select %p1436, %s1433, 7
        %s1438 = smul.addr %s1435, 8
        %s1439 = sadd.s32 %s1437, %s1438
        %s1440 = smul.addr %s1439, 4
        %s1441 = scalar_lea.vmem %s3, %s1440
      $region48: #{bidirectional_gru_forward.5} parent=43 // pred_fallthru
        _
    $region44: #{bidirectional_gru_forward.5} parent=5 // pred_fallthru
      _
  $region6: #{bidirectional_gru_forward.5} parent=0 // loop_footer
    %s13 = sadd.s32 1, %s9
  $region7: #{bidirectional_gru_forward.5} parent=0 // loop_footer_branch
    %8 = sbr.rel target = $region3
  $region8: #{bidirectional_gru_forward.5} parent=0 // loop_exit
    _

// kernel: bidirectional_gru_forward.6
$region0: #{bidirectional_gru_forward.6}
  #allocation0 [shape = 'u32[]', space=smem, size = 0x4, offset = 0x4, fixed_abs, tag = 'smem constant byte address 0x4 - core index']
  #allocation1 [shape = 'u32[144,128]{1,0:T(1,128)}', space=vmem, size = 0x12000, scoped, tag = 'internal scratch']
  %s0 = inlined_call_operand.vmem [shape: bf16[2,8,8,128], index: 0, kind: input, shape index: {}]
  %s1 = inlined_call_operand.vmem [shape: bf16[256,384], index: 1, kind: input, shape index: {}]
  %s2 = inlined_call_operand.hbm [shape: bf16[256,384], index: 2, kind: input, shape index: {}]
  %s3 = inlined_call_operand.vmem [shape: f32[1,384], index: 3, kind: input, shape index: {}]
  %s4 = inlined_call_operand.vmem [shape: f32[1,384], index: 4, kind: input, shape index: {}]
  %s5 = inlined_call_operand.vmem [shape: bf16[2,8,8,384], index: 5, kind: output, shape index: {}]
  %s6 = sld [smem:[#allocation0]]
  $region120: #{bidirectional_gru_forward.6} parent=0
    _
  %s8 = ssub.s32 1, %s6
  %s9 = scalar_select 0, %s8, %s6
  $region1: #{bidirectional_gru_forward.6} parent=0
    #allocation2 [shape = 'u8[32768]{0}', space=vmem, size = 0x8000, scoped, tag = 'input window, operand 0']
    #allocation3 [shape = 'u8[196608]{0}', space=vmem, size = 0x30000, scoped, tag = 'input window, operand 2, single buffered']
    #allocation4 [shape = 's32[2]{0}', space=sflag, size = 0x8, scoped, tag = 'scoped memory for bidirectional_gru_forward.6']
    #allocation5 [shape = 'u8[98304]{0}', space=vmem, size = 0x18000, scoped, tag = 'output window, operand 0']
    %10 = vsyncpa [#allocation4], 0
    loop: start=0, step=1, limit=4
    $region2: #{bidirectional_gru_forward.6} parent=1 // loop_pre_header
      _
    $region3: #{bidirectional_gru_forward.6} parent=1 // loop_header
      %s12 = sphi 0, %s16
      %p13 = scmp.ge.s32.totalorder %s12, 4
      %s22 = sphi 0, %s24
      %s25 = sphi 0, %s22
      %s26 = sphi 0, %s25
      %s42 = sphi 0, %s26
      %s46 = sphi 0, %s46
      %s48 = sphi 0, %s46
      %s49 = sphi 0, %s48
      %s63 = sphi 0, %s49
      %s67 = sphi 0, %s67
      %s69 = sphi 0, %s67
      %s70 = sphi 0, %s69
      %s84 = sphi 0, %s70
      %s88 = sphi 0, %s88
      %s90 = sphi 0, %s88
      %s91 = sphi 0, %s90
      %s105 = sphi 0, %s91
      %s109 = sphi 0, %s109
      %s111 = sphi 0, %s109
      %s112 = sphi 0, %s111
      %s126 = sphi 0, %s112
      %s132 = sphi 0, %s134
      %s135 = sphi 0, %s132
      %s136 = sphi 0, %s135
      %s152 = sphi 0, %s136
    $region4: #{bidirectional_gru_forward.6} parent=1 // loop_header_branch
      %15 = sbr.rel (%p13) target = $region8
    $region5: #{bidirectional_gru_forward.6} parent=1 // loop_body
      %s17 = ssub.s32 %s12, 1
      %s18 = ssub.s32 %s12, 2
      %s19 = sadd.s32 %s12, 1
      %s20 = ssub.s32 %s12, %s19
      %p21 = scmp.eq.s32.totalorder %s20, 0
      %s23 = sadd.s32 %s22, 1
      %s24 = scalar_select %p21, %s22, %s23
      %p27 = pneg %p21
      %p28 = scmp.eq.s32.totalorder %s12, 1
      %p29 = por %p27, %p28
      %p30 = scmp.ne.s32.totalorder %s22, %s25
      %p31 = scmp.eq.s32.totalorder %s12, 0
      %p32 = por %p30, %p31
      %p33 = scmp.ne.s32.totalorder %s22, %s25
      %p34 = scmp.eq.s32.totalorder %s17, 1
      %p35 = por %p33, %p34
      %p36 = scmp.ne.s32.totalorder %s25, %s26
      %p37 = scmp.eq.s32.totalorder %s17, 0
      %p38 = por %p36, %p37
      %p39 = scmp.ne.s32.totalorder %s25, %s26
      %p40 = scmp.eq.s32.totalorder %s18, 1
      %p41 = por %p39, %p40
      %p43 = scmp.ne.s32.totalorder %s26, %s42
      %p44 = scmp.eq.s32.totalorder %s18, 0
      %p45 = por %p43, %p44
      %s47 = sadd.s32 %s46, 1
      %p50 = scmp.eq.s32.totalorder %s12, 1
      %p51 = scmp.ne.s32.totalorder %s46, %s48
      %p52 = scmp.eq.s32.totalorder %s12, 0
      %p53 = por %p51, %p52
      %p54 = scmp.ne.s32.totalorder %s46, %s48
      %p55 = scmp.eq.s32.totalorder %s17, 1
      %p56 = por %p54, %p55
      %p57 = scmp.ne.s32.totalorder %s48, %s49
      %p58 = scmp.eq.s32.totalorder %s17, 0
      %p59 = por %p57, %p58
      %p60 = scmp.ne.s32.totalorder %s48, %s49
      %p61 = scmp.eq.s32.totalorder %s18, 1
      %p62 = por %p60, %p61
      %p64 = scmp.ne.s32.totalorder %s49, %s63
      %p65 = scmp.eq.s32.totalorder %s18, 0
      %p66 = por %p64, %p65
      %s68 = sadd.s32 %s67, 1
      %p71 = scmp.eq.s32.totalorder %s12, 1
      %p72 = scmp.ne.s32.totalorder %s67, %s69
      %p73 = scmp.eq.s32.totalorder %s12, 0
      %p74 = por %p72, %p73
      %p75 = scmp.ne.s32.totalorder %s67, %s69
      %p76 = scmp.eq.s32.totalorder %s17, 1
      %p77 = por %p75, %p76
      %p78 = scmp.ne.s32.totalorder %s69, %s70
      %p79 = scmp.eq.s32.totalorder %s17, 0
      %p80 = por %p78, %p79
      %p81 = scmp.ne.s32.totalorder %s69, %s70
      %p82 = scmp.eq.s32.totalorder %s18, 1
      %p83 = por %p81, %p82
      %p85 = scmp.ne.s32.totalorder %s70, %s84
      %p86 = scmp.eq.s32.totalorder %s18, 0
      %p87 = por %p85, %p86
      %s89 = sadd.s32 %s88, 1
      %p92 = scmp.eq.s32.totalorder %s12, 1
      %p93 = scmp.ne.s32.totalorder %s88, %s90
      %p94 = scmp.eq.s32.totalorder %s12, 0
      %p95 = por %p93, %p94
      %p96 = scmp.ne.s32.totalorder %s88, %s90
      %p97 = scmp.eq.s32.totalorder %s17, 1
      %p98 = por %p96, %p97
      %p99 = scmp.ne.s32.totalorder %s90, %s91
      %p100 = scmp.eq.s32.totalorder %s17, 0
      %p101 = por %p99, %p100
      %p102 = scmp.ne.s32.totalorder %s90, %s91
      %p103 = scmp.eq.s32.totalorder %s18, 1
      %p104 = por %p102, %p103
      %p106 = scmp.ne.s32.totalorder %s91, %s105
      %p107 = scmp.eq.s32.totalorder %s18, 0
      %p108 = por %p106, %p107
      %s110 = sadd.s32 %s109, 1
      %p113 = scmp.eq.s32.totalorder %s12, 1
      %p114 = scmp.ne.s32.totalorder %s109, %s111
      %p115 = scmp.eq.s32.totalorder %s12, 0
      %p116 = por %p114, %p115
      %p117 = scmp.ne.s32.totalorder %s109, %s111
      %p118 = scmp.eq.s32.totalorder %s17, 1
      %p119 = por %p117, %p118
      %p120 = scmp.ne.s32.totalorder %s111, %s112
      %p121 = scmp.eq.s32.totalorder %s17, 0
      %p122 = por %p120, %p121
      %p123 = scmp.ne.s32.totalorder %s111, %s112
      %p124 = scmp.eq.s32.totalorder %s18, 1
      %p125 = por %p123, %p124
      %p127 = scmp.ne.s32.totalorder %s112, %s126
      %p128 = scmp.eq.s32.totalorder %s18, 0
      %p129 = por %p127, %p128
      %s130 = ssub.s32 %s12, %s19
      %p131 = scmp.eq.s32.totalorder %s130, 0
      %s133 = sadd.s32 %s132, 1
      %s134 = scalar_select %p131, %s132, %s133
      %p137 = pneg %p131
      %p138 = scmp.eq.s32.totalorder %s12, 1
      %p139 = por %p137, %p138
      %p140 = scmp.ne.s32.totalorder %s132, %s135
      %p141 = scmp.eq.s32.totalorder %s12, 0
      %p142 = por %p140, %p141
      %p143 = scmp.ne.s32.totalorder %s132, %s135
      %p144 = scmp.eq.s32.totalorder %s17, 1
      %p145 = por %p143, %p144
      %p146 = scmp.ne.s32.totalorder %s135, %s136
      %p147 = scmp.eq.s32.totalorder %s17, 0
      %p148 = por %p146, %p147
      %p149 = scmp.ne.s32.totalorder %s135, %s136
      %p150 = scmp.eq.s32.totalorder %s18, 1
      %p151 = por %p149, %p150
      %p153 = scmp.ne.s32.totalorder %s136, %s152
      %p154 = scmp.eq.s32.totalorder %s18, 0
      %p155 = por %p153, %p154
      %p156 = scmp.le.s32.totalorder 1, %s12
      %p157 = scmp.lt.s32.totalorder %s12, 3
      %p158 = pnand %p156, %p157
      %p159 = pneg %p158
      // Predicated region
      $region9: #{bidirectional_gru_forward.6} parent=5 // pred_check
        _
      $region10: #{bidirectional_gru_forward.6} parent=5 // pred_check_branch
        %161 = sbr.rel (%p158) target = $region12
      $region11: #{bidirectional_gru_forward.6} parent=5 // pred_region
        %s162 = ssub.s32 %s12, 1
        // Predicated region
        $region13: #{bidirectional_gru_forward.6} parent=11 // pred_check
          %p163 = pneg %p59
        $region14: #{bidirectional_gru_forward.6} parent=11 // pred_check_branch
          %165 = sbr.rel (%p163) target = $region16
        $region15: #{bidirectional_gru_forward.6} parent=11 // pred_region
          _
        $region16: #{bidirectional_gru_forward.6} parent=11 // pred_fallthru
          _
        // Predicated region
        $region17: #{bidirectional_gru_forward.6} parent=11 // pred_check
          %p166 = pneg %p80
        $region18: #{bidirectional_gru_forward.6} parent=11 // pred_check_branch
          %168 = sbr.rel (%p166) target = $region20
        $region19: #{bidirectional_gru_forward.6} parent=11 // pred_region
          %s170 = ssub.s32 6144, 6144
          %171 = vsyncadd [#allocation4], %s170
          %s172 = sshll.u32 [#allocation3], 4
          %s173 = int_to_ptr.vmem [resolvable:$true] %s172
          %178 = dma.hbm_to_vmem [thread:$0]  %s2, 6144, %s173, [#allocation4], 192, 192, 12
        $region20: #{bidirectional_gru_forward.6} parent=11 // pred_fallthru
          _
        // Predicated region
        $region21: #{bidirectional_gru_forward.6} parent=11 // pred_check
          %p179 = pneg %p101
        $region22: #{bidirectional_gru_forward.6} parent=11 // pred_check_branch
          %181 = sbr.rel (%p179) target = $region24
        $region23: #{bidirectional_gru_forward.6} parent=11 // pred_region
          _
        $region24: #{bidirectional_gru_forward.6} parent=11 // pred_fallthru
          _
        // Predicated region
        $region25: #{bidirectional_gru_forward.6} parent=11 // pred_check
          %p182 = pneg %p122
        $region26: #{bidirectional_gru_forward.6} parent=11 // pred_check_branch
          %184 = sbr.rel (%p182) target = $region28
        $region27: #{bidirectional_gru_forward.6} parent=11 // pred_region
          _
        $region28: #{bidirectional_gru_forward.6} parent=11 // pred_fallthru
          _
      $region12: #{bidirectional_gru_forward.6} parent=5 // pred_fallthru
        _
      %p185 = scmp.lt.s32.totalorder %s12, 2
      // Predicated region
      $region29: #{bidirectional_gru_forward.6} parent=5 // pred_check
        %p186 = pneg %p185
      $region30: #{bidirectional_gru_forward.6} parent=5 // pred_check_branch
        %188 = sbr.rel (%p186) target = $region32
      $region31: #{bidirectional_gru_forward.6} parent=5 // pred_region
        // Predicated region
        $region33: #{bidirectional_gru_forward.6} parent=31 // pred_check
          %p189 = pneg %p32
        $region34: #{bidirectional_gru_forward.6} parent=31 // pred_check_branch
          %191 = sbr.rel (%p189) target = $region36
        $region35: #{bidirectional_gru_forward.6} parent=31 // pred_region
          %s192 = sand.u32 %s22, 1
          %s193 = sand.u32 %s22, 1
          %s194 = smul.addr %s193, 32
          %s195 = scalar_lea.vmem [#allocation2], %s194
          %s196 = smul.u32 4, %s12
          %s197 = smul.addr %s196, 4
          %s198 = scalar_lea.vmem %s0, %s197
          // Predicated region
          $region37: #{bidirectional_gru_forward.6} parent=35 // pred_check
            _
          $region38: #{bidirectional_gru_forward.6} parent=35 // pred_check_branch
            %200 = sbr.rel (0) target = $region40
          $region39: #{bidirectional_gru_forward.6} parent=35 // pred_region
            // Predicated region
            $region41: #{bidirectional_gru_forward.6} parent=39 // pred_check
              _
            $region42: #{bidirectional_gru_forward.6} parent=39 // pred_check_branch
              %202 = sbr.rel target = $region44
            $region43: #{bidirectional_gru_forward.6} parent=39 // pred_region
              // Predicated region
              $region56: #{bidirectional_gru_forward.6} parent=43 // pred_check
                _
              $region57: #{bidirectional_gru_forward.6} parent=43 // pred_check_branch
                %231 = sbr.rel (0) target = $region59
              $region58: #{bidirectional_gru_forward.6} parent=43 // pred_region
                loop: start=0, step=1, limit=1
                $region60: #{bidirectional_gru_forward.6} parent=58 // loop_pre_header
                  _
                $region61: #{bidirectional_gru_forward.6} parent=58 // loop_header
                  %s233 = sphi 0, %s237
                  %p234 = scmp.ge.s32.totalorder %s233, 1
                  %s238 = sphi %s198, %s198
                  %s239 = sphi %s195, %s195
                $region62: #{bidirectional_gru_forward.6} parent=58 // loop_header_branch
                  %236 = sbr.rel (%p234) target = $region66
                $region63: #{bidirectional_gru_forward.6} parent=58 // loop_body
                  _
                $region64: #{bidirectional_gru_forward.6} parent=58 // loop_footer
                  %s237 = sadd.s32 1, %s233
                $region65: #{bidirectional_gru_forward.6} parent=58 // loop_footer_branch
                  %232 = sbr.rel target = $region61
                $region66: #{bidirectional_gru_forward.6} parent=58 // loop_exit
                  _
                loop: start=0, step=1, limit=1
                $region67: #{bidirectional_gru_forward.6} parent=58 // loop_pre_header
                  _
                $region68: #{bidirectional_gru_forward.6} parent=58 // loop_header
                  %s242 = sphi 0, %s246
                  %p243 = scmp.ge.s32.totalorder %s242, 1
                  %s247 = sphi %s198, %s198
                  %s248 = sphi %s195, %s195
                $region69: #{bidirectional_gru_forward.6} parent=58 // loop_header_branch
                  %245 = sbr.rel (%p243) target = $region73
                $region70: #{bidirectional_gru_forward.6} parent=58 // loop_body
                  %v249 = vld [vmem:[%s247] sm:$0xf]
                  %250 = vst [vmem:[%s248] sm:$0xf] %v249
                  %v251 = vld [vmem:[%s247 + $0x4] sm:$0xf]
                  %252 = vst [vmem:[%s248 + $0x4] sm:$0xf] %v251
                  %v253 = vld [vmem:[%s247 + $0x8] sm:$0xf]
                  %254 = vst [vmem:[%s248 + $0x8] sm:$0xf] %v253
                  %v255 = vld [vmem:[%s247 + $0xc] sm:$0xf]
                  %256 = vst [vmem:[%s248 + $0xc] sm:$0xf] %v255
                  %v257 = vld [vmem:[%s247 + $0x20] sm:$0xf]
                  %258 = vst [vmem:[%s248 + $0x10] sm:$0xf] %v257
                  %v259 = vld [vmem:[%s247 + $0x24] sm:$0xf]
                  %260 = vst [vmem:[%s248 + $0x14] sm:$0xf] %v259
                  %v261 = vld [vmem:[%s247 + $0x28] sm:$0xf]
                  %262 = vst [vmem:[%s248 + $0x18] sm:$0xf] %v261
                  %v263 = vld [vmem:[%s247 + $0x2c] sm:$0xf]
                  %264 = vst [vmem:[%s248 + $0x1c] sm:$0xf] %v263
                $region71: #{bidirectional_gru_forward.6} parent=58 // loop_footer
                  %s246 = sadd.s32 1, %s242
                $region72: #{bidirectional_gru_forward.6} parent=58 // loop_footer_branch
                  %241 = sbr.rel target = $region68
                $region73: #{bidirectional_gru_forward.6} parent=58 // loop_exit
                  _
              $region59: #{bidirectional_gru_forward.6} parent=43 // pred_fallthru
                _
            $region44: #{bidirectional_gru_forward.6} parent=39 // pred_fallthru
              _
            // Predicated region
            $region45: #{bidirectional_gru_forward.6} parent=39 // pred_check
              _
            $region46: #{bidirectional_gru_forward.6} parent=39 // pred_check_branch
              %204 = sbr.rel (0) target = $region48
            $region47: #{bidirectional_gru_forward.6} parent=39 // pred_region
              loop: start=0, step=1, limit=1
              $region49: #{bidirectional_gru_forward.6} parent=47 // loop_pre_header
                _
              $region50: #{bidirectional_gru_forward.6} parent=47 // loop_header
                %s207 = sphi 0, %s211
                %p208 = scmp.ge.s32.totalorder %s207, 1
                %s212 = sphi %s198, %s198
                %s213 = sphi %s195, %s195
              $region51: #{bidirectional_gru_forward.6} parent=47 // loop_header_branch
                %210 = sbr.rel (%p208) target = $region55
              $region52: #{bidirectional_gru_forward.6} parent=47 // loop_body
                %v214 = vld [vmem:[%s212] sm:$0xf]
                %215 = vst [vmem:[%s213] sm:$0xf] %v214
                %v216 = vld [vmem:[%s212 + $0x4] sm:$0xf]
                %217 = vst [vmem:[%s213 + $0x4] sm:$0xf] %v216
                %v218 = vld [vmem:[%s212 + $0x8] sm:$0xf]
                %219 = vst [vmem:[%s213 + $0x8] sm:$0xf] %v218
                %v220 = vld [vmem:[%s212 + $0xc] sm:$0xf]
                %221 = vst [vmem:[%s213 + $0xc] sm:$0xf] %v220
                %v222 = vld [vmem:[%s212 + $0x20] sm:$0xf]
                %223 = vst [vmem:[%s213 + $0x10] sm:$0xf] %v222
                %v224 = vld [vmem:[%s212 + $0x24] sm:$0xf]
                %225 = vst [vmem:[%s213 + $0x14] sm:$0xf] %v224
                %v226 = vld [vmem:[%s212 + $0x28] sm:$0xf]
                %227 = vst [vmem:[%s213 + $0x18] sm:$0xf] %v226
                %v228 = vld [vmem:[%s212 + $0x2c] sm:$0xf]
                %229 = vst [vmem:[%s213 + $0x1c] sm:$0xf] %v228
              $region53: #{bidirectional_gru_forward.6} parent=47 // loop_footer
                %s211 = sadd.s32 1, %s207
              $region54: #{bidirectional_gru_forward.6} parent=47 // loop_footer_branch
                %206 = sbr.rel target = $region50
              $region55: #{bidirectional_gru_forward.6} parent=47 // loop_exit
                _
            $region48: #{bidirectional_gru_forward.6} parent=39 // pred_fallthru
              _
          $region40: #{bidirectional_gru_forward.6} parent=35 // pred_fallthru
            _
          %265 = vnop
        $region36: #{bidirectional_gru_forward.6} parent=31 // pred_fallthru
          _
      $region32: #{bidirectional_gru_forward.6} parent=5 // pred_fallthru
        _
      %p266 = scmp.le.s32.totalorder 1, %s12
      %p267 = scmp.lt.s32.totalorder %s12, 3
      %p268 = pnand %p266, %p267
      %p269 = pneg %p268
      // Predicated region
      $region74: #{bidirectional_gru_forward.6} parent=5 // pred_check
        _
      $region75: #{bidirectional_gru_forward.6} parent=5 // pred_check_branch
        %271 = sbr.rel (%p268) target = $region77
      $region76: #{bidirectional_gru_forward.6} parent=5 // pred_region
        %s272 = ssub.s32 %s12, 1
        %s273 = sand.u32 %s25, 1
        %s274 = sand.u32 %s25, 1
        %s275 = smul.addr %s274, 32
        %s276 = scalar_lea.vmem [#allocation2], %s275
        // Predicated region
        $region78: #{bidirectional_gru_forward.6} parent=76 // pred_check
          %p277 = pneg %p38
        $region79: #{bidirectional_gru_forward.6} parent=76 // pred_check_branch
          %279 = sbr.rel (%p277) target = $region81
        $region80: #{bidirectional_gru_forward.6} parent=76 // pred_region
          _
        $region81: #{bidirectional_gru_forward.6} parent=76 // pred_fallthru
          _
        // Predicated region
        $region82: #{bidirectional_gru_forward.6} parent=76 // pred_check
          %p280 = pneg %p80
        $region83: #{bidirectional_gru_forward.6} parent=76 // pred_check_branch
          %282 = sbr.rel (%p280) target = $region85
        $region84: #{bidirectional_gru_forward.6} parent=76 // pred_region
          %283 = dma.done [#allocation4], 6144
        $region85: #{bidirectional_gru_forward.6} parent=76 // pred_fallthru
          _
        %s284 = sand.u32 %s25, 1
        %s285 = sand.u32 %s25, 1
        %s286 = smul.addr %s285, 32
        %s287 = scalar_lea.vmem [#allocation2], %s286
        %p288 = pneg %p38
        %p289 = pneg %p35
        %p290 = pneg %p59
        %p291 = pneg %p56
        %p292 = pneg %p80
        %p293 = pneg %p77
        %p294 = pneg %p101
        %p295 = pneg %p98
        %p296 = pneg %p122
        %p297 = pneg %p119
        %p298 = pneg %p148
        %p299 = pneg %p145
        %s300 = sand.u32 %s135, 1
        %s301 = sand.u32 %s135, 1
        %s302 = smul.addr %s301, 96
        %s303 = scalar_lea.vmem [#allocation5], %s302
        %s304 = smul.u32 4, %s17
        %s305 = smul.u32 4, %s17
        %v307 = vld [vmem:[%s276] sm:$0xf]
        %v308 = vld [vmem:[%s276 + $0x4] sm:$0xf]
        %v309 = vld [vmem:[%s276 + $0x8] sm:$0xf]
        %v310 = vld [vmem:[%s276 + $0xc] sm:$0xf]
        %s311 = scalar_lea.vmem %s276, 16 [#allocation2]
        %v312 = vld [vmem:[%s311] sm:$0xf]
        %v313 = vld [vmem:[%s311 + $0x4] sm:$0xf]
        %v314 = vld [vmem:[%s311 + $0x8] sm:$0xf]
        %v315 = vld [vmem:[%s311 + $0xc] sm:$0xf]
        %v320 = vunpack.c.l.b16 %v307
        %v321 = vunpack.c.l.b16 %v308
        %v322 = vunpack.c.l.b16 %v309
        %v323 = vunpack.c.l.b16 %v310
        %v324 = vpack.c.b16 %v321, %v320
        %v325 = vpack.c.b16 %v323, %v322
        %v332 = vunpack.c.l.b16 %v312
        %v333 = vunpack.c.l.b16 %v313
        %v334 = vunpack.c.l.b16 %v314
        %v335 = vunpack.c.l.b16 %v315
        %v336 = vpack.c.b16 %v333, %v332
        %v337 = vpack.c.b16 %v335, %v334
        %v340 = vld [vmem:[%s1] sm:$0xff]
        %v341 = vld [vmem:[%s1 + $0x8] sm:$0xf]
        %v342 = vld [vmem:[%s1 + $0xc] sm:$0xff]
        %v343 = vld [vmem:[%s1 + $0x14] sm:$0xf]
        %v344 = vld [vmem:[%s1 + $0x18] sm:$0xff]
        %v345 = vld [vmem:[%s1 + $0x20] sm:$0xf]
        %v346 = vld [vmem:[%s1 + $0x24] sm:$0xff]
        %v347 = vld [vmem:[%s1 + $0x2c] sm:$0xf]
        %v348 = vld [vmem:[%s1 + $0x30] sm:$0xff]
        %v349 = vld [vmem:[%s1 + $0x38] sm:$0xf]
        %v350 = vld [vmem:[%s1 + $0x3c] sm:$0xff]
        %v351 = vld [vmem:[%s1 + $0x44] sm:$0xf]
        %v352 = vld [vmem:[%s1 + $0x48] sm:$0xff]
        %v353 = vld [vmem:[%s1 + $0x50] sm:$0xf]
        %v354 = vld [vmem:[%s1 + $0x54] sm:$0xff]
        %v355 = vld [vmem:[%s1 + $0x5c] sm:$0xf]
        %v356 = vld [vmem:[%s1 + $0x60] sm:$0xff]
        %v357 = vld [vmem:[%s1 + $0x68] sm:$0xf]
        %v358 = vld [vmem:[%s1 + $0x6c] sm:$0xff]
        %v359 = vld [vmem:[%s1 + $0x74] sm:$0xf]
        %v360 = vld [vmem:[%s1 + $0x78] sm:$0xff]
        %v361 = vld [vmem:[%s1 + $0x80] sm:$0xf]
        %v362 = vld [vmem:[%s1 + $0x84] sm:$0xff]
        %v363 = vld [vmem:[%s1 + $0x8c] sm:$0xf]
        %v364 = vld [vmem:[%s1 + $0x90] sm:$0xff]
        %v365 = vld [vmem:[%s1 + $0x98] sm:$0xf]
        %v366 = vld [vmem:[%s1 + $0x9c] sm:$0xff]
        %v367 = vld [vmem:[%s1 + $0xa4] sm:$0xf]
        %v368 = vld [vmem:[%s1 + $0xa8] sm:$0xff]
        %v369 = vld [vmem:[%s1 + $0xb0] sm:$0xf]
        %v370 = vld [vmem:[%s1 + $0xb4] sm:$0xff]
        %v371 = vld [vmem:[%s1 + $0xbc] sm:$0xf]
        %v372 = vld [vmem:[%s1 + $0xc0] sm:$0xff]
        %v373 = vld [vmem:[%s1 + $0xc8] sm:$0xf]
        %v374 = vld [vmem:[%s1 + $0xcc] sm:$0xff]
        %v375 = vld [vmem:[%s1 + $0xd4] sm:$0xf]
        %v376 = vld [vmem:[%s1 + $0xd8] sm:$0xff]
        %v377 = vld [vmem:[%s1 + $0xe0] sm:$0xf]
        %v378 = vld [vmem:[%s1 + $0xe4] sm:$0xff]
        %v379 = vld [vmem:[%s1 + $0xec] sm:$0xf]
        %v380 = vld [vmem:[%s1 + $0xf0] sm:$0xff]
        %v381 = vld [vmem:[%s1 + $0xf8] sm:$0xf]
        %v382 = vld [vmem:[%s1 + $0xfc] sm:$0xff]
        %v383 = vld [vmem:[%s1 + $0x104] sm:$0xf]
        %v384 = vld [vmem:[%s1 + $0x108] sm:$0xff]
        %v385 = vld [vmem:[%s1 + $0x110] sm:$0xf]
        %v386 = vld [vmem:[%s1 + $0x114] sm:$0xff]
        %v387 = vld [vmem:[%s1 + $0x11c] sm:$0xf]
        %v388 = vld [vmem:[%s1 + $0x120] sm:$0xff]
        %v389 = vld [vmem:[%s1 + $0x128] sm:$0xf]
        %v390 = vld [vmem:[%s1 + $0x12c] sm:$0xff]
        %v391 = vld [vmem:[%s1 + $0x134] sm:$0xf]
        %v392 = vld [vmem:[%s1 + $0x138] sm:$0xff]
        %v393 = vld [vmem:[%s1 + $0x140] sm:$0xf]
        %v394 = vld [vmem:[%s1 + $0x144] sm:$0xff]
        %v395 = vld [vmem:[%s1 + $0x14c] sm:$0xf]
        %v396 = vld [vmem:[%s1 + $0x150] sm:$0xff]
        %v397 = vld [vmem:[%s1 + $0x158] sm:$0xf]
        %v398 = vld [vmem:[%s1 + $0x15c] sm:$0xff]
        %v399 = vld [vmem:[%s1 + $0x164] sm:$0xf]
        %v400 = vld [vmem:[%s1 + $0x168] sm:$0xff]
        %v401 = vld [vmem:[%s1 + $0x170] sm:$0xf]
        %v402 = vld [vmem:[%s1 + $0x174] sm:$0xff]
        %v403 = vld [vmem:[%s1 + $0x17c] sm:$0xf]
        %v404 = vld [vmem:[%s3] sm:$0x7]
        %v406 = vlaneseq
        %v407 = vshrl.u32 %v406, 7
        %v408 = vsub.s32 0, %v407
        %v409 = vrot.slane %v404, %v408
        %v410 = vlaneseq
        %v411 = vshrl.u32 %v410, 7
        %v412 = vsub.s32 1, %v411
        %v413 = vrot.slane %v404, %v412
        %v414 = vlaneseq
        %v415 = vshrl.u32 %v414, 7
        %v416 = vsub.s32 2, %v415
        %v417 = vrot.slane %v404, %v416
        %v485 = vunpack.c.l.b16 %v340
        %v486 = vunpack.c.h.b16 %v340
        %v487 = vunpack.c.l.b16 %v341
        %v488 = vunpack.c.l.b16 %v342
        %v489 = vunpack.c.h.b16 %v342
        %v490 = vunpack.c.l.b16 %v343
        %v491 = vunpack.c.l.b16 %v344
        %v492 = vunpack.c.h.b16 %v344
        %v493 = vunpack.c.l.b16 %v345
        %v494 = vunpack.c.l.b16 %v346
        %v495 = vunpack.c.h.b16 %v346
        %v496 = vunpack.c.l.b16 %v347
        %v497 = vunpack.c.l.b16 %v348
        %v498 = vunpack.c.h.b16 %v348
        %v499 = vunpack.c.l.b16 %v349
        %v500 = vunpack.c.l.b16 %v350
        %v501 = vunpack.c.h.b16 %v350
        %v502 = vunpack.c.l.b16 %v351
        %v503 = vunpack.c.l.b16 %v352
        %v504 = vunpack.c.h.b16 %v352
        %v505 = vunpack.c.l.b16 %v353
        %v506 = vunpack.c.l.b16 %v354
        %v507 = vunpack.c.h.b16 %v354
        %v508 = vunpack.c.l.b16 %v355
        %v509 = vunpack.c.l.b16 %v356
        %v510 = vunpack.c.h.b16 %v356
        %v511 = vunpack.c.l.b16 %v357
        %v512 = vunpack.c.l.b16 %v358
        %v513 = vunpack.c.h.b16 %v358
        %v514 = vunpack.c.l.b16 %v359
        %v515 = vunpack.c.l.b16 %v360
        %v516 = vunpack.c.h.b16 %v360
        %v517 = vunpack.c.l.b16 %v361
        %v518 = vunpack.c.l.b16 %v362
        %v519 = vunpack.c.h.b16 %v362
        %v520 = vunpack.c.l.b16 %v363
        %v521 = vunpack.c.l.b16 %v364
        %v522 = vunpack.c.h.b16 %v364
        %v523 = vunpack.c.l.b16 %v365
        %v524 = vunpack.c.l.b16 %v366
        %v525 = vunpack.c.h.b16 %v366
        %v526 = vunpack.c.l.b16 %v367
        %v527 = vunpack.c.l.b16 %v368
        %v528 = vunpack.c.h.b16 %v368
        %v529 = vunpack.c.l.b16 %v369
        %v530 = vunpack.c.l.b16 %v370
        %v531 = vunpack.c.h.b16 %v370
        %v532 = vunpack.c.l.b16 %v371
        %v533 = vunpack.c.l.b16 %v372
        %v534 = vunpack.c.h.b16 %v372
        %v535 = vunpack.c.l.b16 %v373
        %v536 = vunpack.c.l.b16 %v374
        %v537 = vunpack.c.h.b16 %v374
        %v538 = vunpack.c.l.b16 %v375
        %v539 = vunpack.c.l.b16 %v376
        %v540 = vunpack.c.h.b16 %v376
        %v541 = vunpack.c.l.b16 %v377
        %v542 = vunpack.c.l.b16 %v378
        %v543 = vunpack.c.h.b16 %v378
        %v544 = vunpack.c.l.b16 %v379
        %v545 = vunpack.c.l.b16 %v380
        %v546 = vunpack.c.h.b16 %v380
        %v547 = vunpack.c.l.b16 %v381
        %v548 = vunpack.c.l.b16 %v382
        %v549 = vunpack.c.h.b16 %v382
        %v550 = vunpack.c.l.b16 %v383
        %v551 = vunpack.c.l.b16 %v384
        %v552 = vunpack.c.h.b16 %v384
        %v553 = vunpack.c.l.b16 %v385
        %v554 = vunpack.c.l.b16 %v386
        %v555 = vunpack.c.h.b16 %v386
        %v556 = vunpack.c.l.b16 %v387
        %v557 = vunpack.c.l.b16 %v388
        %v558 = vunpack.c.h.b16 %v388
        %v559 = vunpack.c.l.b16 %v389
        %v560 = vunpack.c.l.b16 %v390
        %v561 = vunpack.c.h.b16 %v390
        %v562 = vunpack.c.l.b16 %v391
        %v563 = vunpack.c.l.b16 %v392
        %v564 = vunpack.c.h.b16 %v392
        %v565 = vunpack.c.l.b16 %v393
        %v566 = vunpack.c.l.b16 %v394
        %v567 = vunpack.c.h.b16 %v394
        %v568 = vunpack.c.l.b16 %v395
        %v569 = vunpack.c.l.b16 %v396
        %v570 = vunpack.c.h.b16 %v396
        %v571 = vunpack.c.l.b16 %v397
        %v572 = vunpack.c.l.b16 %v398
        %v573 = vunpack.c.h.b16 %v398
        %v574 = vunpack.c.l.b16 %v399
        %v575 = vunpack.c.l.b16 %v400
        %v576 = vunpack.c.h.b16 %v400
        %v577 = vunpack.c.l.b16 %v401
        %v578 = vunpack.c.l.b16 %v402
        %v579 = vunpack.c.h.b16 %v402
        %v580 = vunpack.c.l.b16 %v403
        %v581 = vpack.c.b16 %v488, %v485
        %v582 = vpack.c.b16 %v489, %v486
        %v583 = vpack.c.b16 %v490, %v487
        %v584 = vpack.c.b16 %v494, %v491
        %v585 = vpack.c.b16 %v495, %v492
        %v586 = vpack.c.b16 %v496, %v493
        %v587 = vpack.c.b16 %v500, %v497
        %v588 = vpack.c.b16 %v501, %v498
        %v589 = vpack.c.b16 %v502, %v499
        %v590 = vpack.c.b16 %v506, %v503
        %v591 = vpack.c.b16 %v507, %v504
        %v592 = vpack.c.b16 %v508, %v505
        %v593 = vpack.c.b16 %v512, %v509
        %v594 = vpack.c.b16 %v513, %v510
        %v595 = vpack.c.b16 %v514, %v511
        %v596 = vpack.c.b16 %v518, %v515
        %v597 = vpack.c.b16 %v519, %v516
        %v598 = vpack.c.b16 %v520, %v517
        %v599 = vpack.c.b16 %v524, %v521
        %v600 = vpack.c.b16 %v525, %v522
        %v601 = vpack.c.b16 %v526, %v523
        %v602 = vpack.c.b16 %v530, %v527
        %v603 = vpack.c.b16 %v531, %v528
        %v604 = vpack.c.b16 %v532, %v529
        %v605 = vpack.c.b16 %v536, %v533
        %v606 = vpack.c.b16 %v537, %v534
        %v607 = vpack.c.b16 %v538, %v535
        %v608 = vpack.c.b16 %v542, %v539
        %v609 = vpack.c.b16 %v543, %v540
        %v610 = vpack.c.b16 %v544, %v541
        %v611 = vpack.c.b16 %v548, %v545
        %v612 = vpack.c.b16 %v549, %v546
        %v613 = vpack.c.b16 %v550, %v547
        %v614 = vpack.c.b16 %v554, %v551
        %v615 = vpack.c.b16 %v555, %v552
        %v616 = vpack.c.b16 %v556, %v553
        %v617 = vpack.c.b16 %v560, %v557
        %v618 = vpack.c.b16 %v561, %v558
        %v619 = vpack.c.b16 %v562, %v559
        %v620 = vpack.c.b16 %v566, %v563
        %v621 = vpack.c.b16 %v567, %v564
        %v622 = vpack.c.b16 %v568, %v565
        %v623 = vpack.c.b16 %v572, %v569
        %v624 = vpack.c.b16 %v573, %v570
        %v625 = vpack.c.b16 %v574, %v571
        %v626 = vpack.c.b16 %v578, %v575
        %v627 = vpack.c.b16 %v579, %v576
        %v628 = vpack.c.b16 %v580, %v577
        %677 = vmatprep.subr.bf16.mxu0 %v582
        %678 = vmatpush1.bf16.msra.mxu0 %v581
        %679 = vmatprep.subr.bf16.mxu0 %v585
        %680 = vmatpush1.bf16.msra.mxu0 %v584
        %681 = vmatprep.subr.bf16.mxu0 %v588
        %682 = vmatpush1.bf16.msra.mxu0 %v587
        %683 = vmatprep.subr.bf16.mxu0 %v591
        %684 = vmatpush1.bf16.msra.mxu0 %v590
        %685 = vmatprep.subr.bf16.mxu0 %v594
        %686 = vmatpush1.bf16.msra.mxu0 %v593
        %687 = vmatprep.subr.bf16.mxu0 %v597
        %688 = vmatpush1.bf16.msra.mxu0 %v596
        %689 = vmatprep.subr.bf16.mxu0 %v600
        %690 = vmatpush1.bf16.msra.mxu0 %v599
        %691 = vmatprep.subr.bf16.mxu0 %v603
        %692 = vmatpush1.bf16.msra.mxu0 %v602
        %693 = vmatprep.subr.bf16.mxu0 %v606
        %694 = vmatpush1.bf16.msra.mxu0 %v605
        %695 = vmatprep.subr.bf16.mxu0 %v609
        %696 = vmatpush1.bf16.msra.mxu0 %v608
        %697 = vmatprep.subr.bf16.mxu0 %v612
        %698 = vmatpush1.bf16.msra.mxu0 %v611
        %699 = vmatprep.subr.bf16.mxu0 %v615
        %700 = vmatpush1.bf16.msra.mxu0 %v614
        %701 = vmatprep.subr.bf16.mxu0 %v618
        %702 = vmatpush1.bf16.msra.mxu0 %v617
        %703 = vmatprep.subr.bf16.mxu0 %v621
        %704 = vmatpush1.bf16.msra.mxu0 %v620
        %705 = vmatprep.subr.bf16.mxu0 %v624
        %706 = vmatpush1.bf16.msra.mxu0 %v623
        %707 = vmatprep.subr.bf16.mxu0 %v627
        %708 = vmatpush1.bf16.msra.mxu0 %v626
        %709 = vmatprep.mubr.bf16.mxu0 %v336
        %710 = vmatmul.mubr.bf16.gmra.mrb[0].mxu0 %v324
        %v711 = vpop.f32.mrb[0].mxu0
        %v712 = vadd.f32 %v409, %v711
        %v713 = vpop.f32.mrb[0].mxu0
        %v714 = vadd.f32 %v413, %v713
        %v715 = vpop.f32.mrb[0].mxu0
        %v716 = vadd.f32 %v409, %v715
        %v717 = vpop.f32.mrb[0].mxu0
        %v718 = vadd.f32 %v413, %v717
        %719 = vmatprep.mubr.bf16.mxu0 %v337
        %720 = vmatmul.mubr.bf16.gmra.mrb[0].mxu0 %v325
        %v721 = vpop.f32.mrb[0].mxu0
        %v722 = vadd.f32 %v409, %v721
        %v723 = vpop.f32.mrb[0].mxu0
        %v724 = vadd.f32 %v413, %v723
        %v725 = vpop.f32.mrb[0].mxu0
        %v726 = vadd.f32 %v409, %v725
        %v727 = vpop.f32.mrb[0].mxu0
        %v728 = vadd.f32 %v413, %v727
        %729 = vdwg.mxu0
        %730 = vmatprep.subr.bf16.mxu0 0
        %731 = vmatpush1.bf16.msra.mxu0 %v583
        %732 = vmatprep.subr.bf16.mxu0 0
        %733 = vmatpush1.bf16.msra.mxu0 %v586
        %734 = vmatprep.subr.bf16.mxu0 0
        %735 = vmatpush1.bf16.msra.mxu0 %v589
        %736 = vmatprep.subr.bf16.mxu0 0
        %737 = vmatpush1.bf16.msra.mxu0 %v592
        %738 = vmatprep.subr.bf16.mxu0 0
        %739 = vmatpush1.bf16.msra.mxu0 %v595
        %740 = vmatprep.subr.bf16.mxu0 0
        %741 = vmatpush1.bf16.msra.mxu0 %v598
        %742 = vmatprep.subr.bf16.mxu0 0
        %743 = vmatpush1.bf16.msra.mxu0 %v601
        %744 = vmatprep.subr.bf16.mxu0 0
        %745 = vmatpush1.bf16.msra.mxu0 %v604
        %746 = vmatprep.subr.bf16.mxu0 0
        %747 = vmatpush1.bf16.msra.mxu0 %v607
        %748 = vmatprep.subr.bf16.mxu0 0
        %749 = vmatpush1.bf16.msra.mxu0 %v610
        %750 = vmatprep.subr.bf16.mxu0 0
        %751 = vmatpush1.bf16.msra.mxu0 %v613
        %752 = vmatprep.subr.bf16.mxu0 0
        %753 = vmatpush1.bf16.msra.mxu0 %v616
        %754 = vmatprep.subr.bf16.mxu0 0
        %755 = vmatpush1.bf16.msra.mxu0 %v619
        %756 = vmatprep.subr.bf16.mxu0 0
        %757 = vmatpush1.bf16.msra.mxu0 %v622
        %758 = vmatprep.subr.bf16.mxu0 0
        %759 = vmatpush1.bf16.msra.mxu0 %v625
        %760 = vmatprep.subr.bf16.mxu0 0
        %761 = vmatpush1.bf16.msra.mxu0 %v628
        %762 = vmatprep.mubr.bf16.mxu0 %v336
        %763 = vmatmul.mubr.bf16.gmra.mrb[0].mxu0 %v324
        %v764 = vpop.f32.mrb[0].mxu0
        %v765 = vadd.f32 %v417, %v764
        %v766 = vpop.f32.mrb[0].mxu0
        %v767 = vpop.f32.mrb[0].mxu0
        %v768 = vadd.f32 %v417, %v767
        %v769 = vpop.f32.mrb[0].mxu0
        %770 = vmatprep.mubr.bf16.mxu0 %v337
        %771 = vmatmul.mubr.bf16.gmra.mrb[0].mxu0 %v325
        %v772 = vpop.f32.mrb[0].mxu0
        %v773 = vadd.f32 %v417, %v772
        %v774 = vpop.f32.mrb[0].mxu0
        %v775 = vpop.f32.mrb[0].mxu0
        %v776 = vadd.f32 %v417, %v775
        %v777 = vpop.f32.mrb[0].mxu0
        %778 = vdwg.mxu0
        %v779 = vpack.c.bf16 %v712, %v712
        %v780 = vpack.c.bf16 %v714, %v714
        %v781 = vpack.c.bf16 %v765, %v765
        %v782 = vpack.c.bf16 %v716, %v716
        %v783 = vpack.c.bf16 %v718, %v718
        %v784 = vpack.c.bf16 %v768, %v768
        %v785 = vpack.c.bf16 %v722, %v722
        %v786 = vpack.c.bf16 %v724, %v724
        %v787 = vpack.c.bf16 %v773, %v773
        %v788 = vpack.c.bf16 %v726, %v726
        %v789 = vpack.c.bf16 %v728, %v728
        %v790 = vpack.c.bf16 %v776, %v776
        %v803 = vunpack.c.l.b16 %v779
        %v804 = vunpack.c.l.b16 %v780
        %v805 = vunpack.c.l.b16 %v781
        %v806 = vunpack.c.l.b16 %v782
        %v807 = vunpack.c.l.b16 %v783
        %v808 = vunpack.c.l.b16 %v784
        %v809 = vunpack.c.l.b16 %v785
        %v810 = vunpack.c.l.b16 %v786
        %v811 = vunpack.c.l.b16 %v787
        %v812 = vunpack.c.l.b16 %v788
        %v813 = vunpack.c.l.b16 %v789
        %v814 = vunpack.c.l.b16 %v790
        %v815 = vpack.c.b16 %v804, %v803
        %v816 = vpack.c.b16 %v805, %v805
        %v817 = vpack.c.b16 %v807, %v806
        %v818 = vpack.c.b16 %v808, %v808
        %v819 = vpack.c.b16 %v810, %v809
        %v820 = vpack.c.b16 %v811, %v811
        %v821 = vpack.c.b16 %v813, %v812
        %v822 = vpack.c.b16 %v814, %v814
        %831 = vst [vmem:[%s303] sm:$0xff] %v815
        %832 = vst [vmem:[%s303 + $0x8] sm:$0xf] %v816
        %833 = vst [vmem:[%s303 + $0xc] sm:$0xff] %v817
        %834 = vst [vmem:[%s303 + $0x14] sm:$0xf] %v818
        %835 = vst [vmem:[%s303 + $0x18] sm:$0xff] %v819
        %836 = vst [vmem:[%s303 + $0x20] sm:$0xf] %v820
        %837 = vst [vmem:[%s303 + $0x24] sm:$0xff] %v821
        %838 = vst [vmem:[%s303 + $0x2c] sm:$0xf] %v822
        %v839 = vld [vmem:[#allocation3] sm:$0xff]
        %v840 = vld [vmem:[#allocation3 + $0x8] sm:$0xf]
        %v841 = vld [vmem:[#allocation3 + $0xc] sm:$0xff]
        %v842 = vld [vmem:[#allocation3 + $0x14] sm:$0xf]
        %v843 = vld [vmem:[#allocation3 + $0x18] sm:$0xff]
        %v844 = vld [vmem:[#allocation3 + $0x20] sm:$0xf]
        %v845 = vld [vmem:[#allocation3 + $0x24] sm:$0xff]
        %v846 = vld [vmem:[#allocation3 + $0x2c] sm:$0xf]
        %v847 = vld [vmem:[#allocation3 + $0x30] sm:$0xff]
        %v848 = vld [vmem:[#allocation3 + $0x38] sm:$0xf]
        %v849 = vld [vmem:[#allocation3 + $0x3c] sm:$0xff]
        %v850 = vld [vmem:[#allocation3 + $0x44] sm:$0xf]
        %v851 = vld [vmem:[#allocation3 + $0x48] sm:$0xff]
        %v852 = vld [vmem:[#allocation3 + $0x50] sm:$0xf]
        %v853 = vld [vmem:[#allocation3 + $0x54] sm:$0xff]
        %v854 = vld [vmem:[#allocation3 + $0x5c] sm:$0xf]
        %v855 = vld [vmem:[#allocation3 + $0x60] sm:$0xff]
        %v856 = vld [vmem:[#allocation3 + $0x68] sm:$0xf]
        %v857 = vld [vmem:[#allocation3 + $0x6c] sm:$0xff]
        %v858 = vld [vmem:[#allocation3 + $0x74] sm:$0xf]
        %v859 = vld [vmem:[#allocation3 + $0x78] sm:$0xff]
        %v860 = vld [vmem:[#allocation3 + $0x80] sm:$0xf]
        %v861 = vld [vmem:[#allocation3 + $0x84] sm:$0xff]
        %v862 = vld [vmem:[#allocation3 + $0x8c] sm:$0xf]
        %v863 = vld [vmem:[#allocation3 + $0x90] sm:$0xff]
        %v864 = vld [vmem:[#allocation3 + $0x98] sm:$0xf]
        %v865 = vld [vmem:[#allocation3 + $0x9c] sm:$0xff]
        %v866 = vld [vmem:[#allocation3 + $0xa4] sm:$0xf]
        %v867 = vld [vmem:[#allocation3 + $0xa8] sm:$0xff]
        %v868 = vld [vmem:[#allocation3 + $0xb0] sm:$0xf]
        %v869 = vld [vmem:[#allocation3 + $0xb4] sm:$0xff]
        %v870 = vld [vmem:[#allocation3 + $0xbc] sm:$0xf]
        %v871 = vld [vmem:[#allocation3 + $0xc0] sm:$0xff]
        %v872 = vld [vmem:[#allocation3 + $0xc8] sm:$0xf]
        %v873 = vld [vmem:[#allocation3 + $0xcc] sm:$0xff]
        %v874 = vld [vmem:[#allocation3 + $0xd4] sm:$0xf]
        %v875 = vld [vmem:[#allocation3 + $0xd8] sm:$0xff]
        %v876 = vld [vmem:[#allocation3 + $0xe0] sm:$0xf]
        %v877 = vld [vmem:[#allocation3 + $0xe4] sm:$0xff]
        %v878 = vld [vmem:[#allocation3 + $0xec] sm:$0xf]
        %v879 = vld [vmem:[#allocation3 + $0xf0] sm:$0xff]
        %v880 = vld [vmem:[#allocation3 + $0xf8] sm:$0xf]
        %v881 = vld [vmem:[#allocation3 + $0xfc] sm:$0xff]
        %v882 = vld [vmem:[#allocation3 + $0x104] sm:$0xf]
        %v883 = vld [vmem:[#allocation3 + $0x108] sm:$0xff]
        %v884 = vld [vmem:[#allocation3 + $0x110] sm:$0xf]
        %v885 = vld [vmem:[#allocation3 + $0x114] sm:$0xff]
        %v886 = vld [vmem:[#allocation3 + $0x11c] sm:$0xf]
        %v887 = vld [vmem:[#allocation3 + $0x120] sm:$0xff]
        %v888 = vld [vmem:[#allocation3 + $0x128] sm:$0xf]
        %v889 = vld [vmem:[#allocation3 + $0x12c] sm:$0xff]
        %v890 = vld [vmem:[#allocation3 + $0x134] sm:$0xf]
        %v891 = vld [vmem:[#allocation3 + $0x138] sm:$0xff]
        %v892 = vld [vmem:[#allocation3 + $0x140] sm:$0xf]
        %v893 = vld [vmem:[#allocation3 + $0x144] sm:$0xff]
        %v894 = vld [vmem:[#allocation3 + $0x14c] sm:$0xf]
        %v895 = vld [vmem:[#allocation3 + $0x150] sm:$0xff]
        %v896 = vld [vmem:[#allocation3 + $0x158] sm:$0xf]
        %v897 = vld [vmem:[#allocation3 + $0x15c] sm:$0xff]
        %v898 = vld [vmem:[#allocation3 + $0x164] sm:$0xf]
        %v899 = vld [vmem:[#allocation3 + $0x168] sm:$0xff]
        %v900 = vld [vmem:[#allocation3 + $0x170] sm:$0xf]
        %v901 = vld [vmem:[#allocation3 + $0x174] sm:$0xff]
        %v902 = vld [vmem:[#allocation3 + $0x17c] sm:$0xf]
        %v903 = vld [vmem:[%s4] sm:$0x7]
        %v905 = vlaneseq
        %v906 = vshrl.u32 %v905, 7
        %v907 = vsub.s32 0, %v906
        %v908 = vrot.slane %v903, %v907
        %v909 = vlaneseq
        %v910 = vshrl.u32 %v909, 7
        %v911 = vsub.s32 1, %v910
        %v912 = vrot.slane %v903, %v911
        %v913 = vlaneseq
        %v914 = vshrl.u32 %v913, 7
        %v915 = vsub.s32 2, %v914
        %v916 = vrot.slane %v903, %v915
        %v984 = vunpack.c.l.b16 %v839
        %v985 = vunpack.c.h.b16 %v839
        %v986 = vunpack.c.l.b16 %v840
        %v987 = vunpack.c.l.b16 %v841
        %v988 = vunpack.c.h.b16 %v841
        %v989 = vunpack.c.l.b16 %v842
        %v990 = vunpack.c.l.b16 %v843
        %v991 = vunpack.c.h.b16 %v843
        %v992 = vunpack.c.l.b16 %v844
        %v993 = vunpack.c.l.b16 %v845
        %v994 = vunpack.c.h.b16 %v845
        %v995 = vunpack.c.l.b16 %v846
        %v996 = vunpack.c.l.b16 %v847
        %v997 = vunpack.c.h.b16 %v847
        %v998 = vunpack.c.l.b16 %v848
        %v999 = vunpack.c.l.b16 %v849
        %v1000 = vunpack.c.h.b16 %v849
        %v1001 = vunpack.c.l.b16 %v850
        %v1002 = vunpack.c.l.b16 %v851
        %v1003 = vunpack.c.h.b16 %v851
        %v1004 = vunpack.c.l.b16 %v852
        %v1005 = vunpack.c.l.b16 %v853
        %v1006 = vunpack.c.h.b16 %v853
        %v1007 = vunpack.c.l.b16 %v854
        %v1008 = vunpack.c.l.b16 %v855
        %v1009 = vunpack.c.h.b16 %v855
        %v1010 = vunpack.c.l.b16 %v856
        %v1011 = vunpack.c.l.b16 %v857
        %v1012 = vunpack.c.h.b16 %v857
        %v1013 = vunpack.c.l.b16 %v858
        %v1014 = vunpack.c.l.b16 %v859
        %v1015 = vunpack.c.h.b16 %v859
        %v1016 = vunpack.c.l.b16 %v860
        %v1017 = vunpack.c.l.b16 %v861
        %v1018 = vunpack.c.h.b16 %v861
        %v1019 = vunpack.c.l.b16 %v862
        %v1020 = vunpack.c.l.b16 %v863
        %v1021 = vunpack.c.h.b16 %v863
        %v1022 = vunpack.c.l.b16 %v864
        %v1023 = vunpack.c.l.b16 %v865
        %v1024 = vunpack.c.h.b16 %v865
        %v1025 = vunpack.c.l.b16 %v866
        %v1026 = vunpack.c.l.b16 %v867
        %v1027 = vunpack.c.h.b16 %v867
        %v1028 = vunpack.c.l.b16 %v868
        %v1029 = vunpack.c.l.b16 %v869
        %v1030 = vunpack.c.h.b16 %v869
        %v1031 = vunpack.c.l.b16 %v870
        %v1032 = vunpack.c.l.b16 %v871
        %v1033 = vunpack.c.h.b16 %v871
        %v1034 = vunpack.c.l.b16 %v872
        %v1035 = vunpack.c.l.b16 %v873
        %v1036 = vunpack.c.h.b16 %v873
        %v1037 = vunpack.c.l.b16 %v874
        %v1038 = vunpack.c.l.b16 %v875
        %v1039 = vunpack.c.h.b16 %v875
        %v1040 = vunpack.c.l.b16 %v876
        %v1041 = vunpack.c.l.b16 %v877
        %v1042 = vunpack.c.h.b16 %v877
        %v1043 = vunpack.c.l.b16 %v878
        %v1044 = vunpack.c.l.b16 %v879
        %v1045 = vunpack.c.h.b16 %v879
        %v1046 = vunpack.c.l.b16 %v880
        %v1047 = vunpack.c.l.b16 %v881
        %v1048 = vunpack.c.h.b16 %v881
        %v1049 = vunpack.c.l.b16 %v882
        %v1050 = vunpack.c.l.b16 %v883
        %v1051 = vunpack.c.h.b16 %v883
        %v1052 = vunpack.c.l.b16 %v884
        %v1053 = vunpack.c.l.b16 %v885
        %v1054 = vunpack.c.h.b16 %v885
        %v1055 = vunpack.c.l.b16 %v886
        %v1056 = vunpack.c.l.b16 %v887
        %v1057 = vunpack.c.h.b16 %v887
        %v1058 = vunpack.c.l.b16 %v888
        %v1059 = vunpack.c.l.b16 %v889
        %v1060 = vunpack.c.h.b16 %v889
        %v1061 = vunpack.c.l.b16 %v890
        %v1062 = vunpack.c.l.b16 %v891
        %v1063 = vunpack.c.h.b16 %v891
        %v1064 = vunpack.c.l.b16 %v892
        %v1065 = vunpack.c.l.b16 %v893
        %v1066 = vunpack.c.h.b16 %v893
        %v1067 = vunpack.c.l.b16 %v894
        %v1068 = vunpack.c.l.b16 %v895
        %v1069 = vunpack.c.h.b16 %v895
        %v1070 = vunpack.c.l.b16 %v896
        %v1071 = vunpack.c.l.b16 %v897
        %v1072 = vunpack.c.h.b16 %v897
        %v1073 = vunpack.c.l.b16 %v898
        %v1074 = vunpack.c.l.b16 %v899
        %v1075 = vunpack.c.h.b16 %v899
        %v1076 = vunpack.c.l.b16 %v900
        %v1077 = vunpack.c.l.b16 %v901
        %v1078 = vunpack.c.h.b16 %v901
        %v1079 = vunpack.c.l.b16 %v902
        %v1080 = vpack.c.b16 %v987, %v984
        %v1081 = vpack.c.b16 %v988, %v985
        %v1082 = vpack.c.b16 %v989, %v986
        %v1083 = vpack.c.b16 %v993, %v990
        %v1084 = vpack.c.b16 %v994, %v991
        %v1085 = vpack.c.b16 %v995, %v992
        %v1086 = vpack.c.b16 %v999, %v996
        %v1087 = vpack.c.b16 %v1000, %v997
        %v1088 = vpack.c.b16 %v1001, %v998
        %v1089 = vpack.c.b16 %v1005, %v1002
        %v1090 = vpack.c.b16 %v1006, %v1003
        %v1091 = vpack.c.b16 %v1007, %v1004
        %v1092 = vpack.c.b16 %v1011, %v1008
        %v1093 = vpack.c.b16 %v1012, %v1009
        %v1094 = vpack.c.b16 %v1013, %v1010
        %v1095 = vpack.c.b16 %v1017, %v1014
        %v1096 = vpack.c.b16 %v1018, %v1015
        %v1097 = vpack.c.b16 %v1019, %v1016
        %v1098 = vpack.c.b16 %v1023, %v1020
        %v1099 = vpack.c.b16 %v1024, %v1021
        %v1100 = vpack.c.b16 %v1025, %v1022
        %v1101 = vpack.c.b16 %v1029, %v1026
        %v1102 = vpack.c.b16 %v1030, %v1027
        %v1103 = vpack.c.b16 %v1031, %v1028
        %v1104 = vpack.c.b16 %v1035, %v1032
        %v1105 = vpack.c.b16 %v1036, %v1033
        %v1106 = vpack.c.b16 %v1037, %v1034
        %v1107 = vpack.c.b16 %v1041, %v1038
        %v1108 = vpack.c.b16 %v1042, %v1039
        %v1109 = vpack.c.b16 %v1043, %v1040
        %v1110 = vpack.c.b16 %v1047, %v1044
        %v1111 = vpack.c.b16 %v1048, %v1045
        %v1112 = vpack.c.b16 %v1049, %v1046
        %v1113 = vpack.c.b16 %v1053, %v1050
        %v1114 = vpack.c.b16 %v1054, %v1051
        %v1115 = vpack.c.b16 %v1055, %v1052
        %v1116 = vpack.c.b16 %v1059, %v1056
        %v1117 = vpack.c.b16 %v1060, %v1057
        %v1118 = vpack.c.b16 %v1061, %v1058
        %v1119 = vpack.c.b16 %v1065, %v1062
        %v1120 = vpack.c.b16 %v1066, %v1063
        %v1121 = vpack.c.b16 %v1067, %v1064
        %v1122 = vpack.c.b16 %v1071, %v1068
        %v1123 = vpack.c.b16 %v1072, %v1069
        %v1124 = vpack.c.b16 %v1073, %v1070
        %v1125 = vpack.c.b16 %v1077, %v1074
        %v1126 = vpack.c.b16 %v1078, %v1075
        %v1127 = vpack.c.b16 %v1079, %v1076
        %1176 = vmatprep.subr.bf16.mxu0 %v1081
        %1177 = vmatpush1.bf16.msra.mxu0 %v1080
        %1178 = vmatprep.subr.bf16.mxu0 %v1084
        %1179 = vmatpush1.bf16.msra.mxu0 %v1083
        %1180 = vmatprep.subr.bf16.mxu0 %v1087
        %1181 = vmatpush1.bf16.msra.mxu0 %v1086
        %1182 = vmatprep.subr.bf16.mxu0 %v1090
        %1183 = vmatpush1.bf16.msra.mxu0 %v1089
        %1184 = vmatprep.subr.bf16.mxu0 %v1093
        %1185 = vmatpush1.bf16.msra.mxu0 %v1092
        %1186 = vmatprep.subr.bf16.mxu0 %v1096
        %1187 = vmatpush1.bf16.msra.mxu0 %v1095
        %1188 = vmatprep.subr.bf16.mxu0 %v1099
        %1189 = vmatpush1.bf16.msra.mxu0 %v1098
        %1190 = vmatprep.subr.bf16.mxu0 %v1102
        %1191 = vmatpush1.bf16.msra.mxu0 %v1101
        %1192 = vmatprep.subr.bf16.mxu0 %v1105
        %1193 = vmatpush1.bf16.msra.mxu0 %v1104
        %1194 = vmatprep.subr.bf16.mxu0 %v1108
        %1195 = vmatpush1.bf16.msra.mxu0 %v1107
        %1196 = vmatprep.subr.bf16.mxu0 %v1111
        %1197 = vmatpush1.bf16.msra.mxu0 %v1110
        %1198 = vmatprep.subr.bf16.mxu0 %v1114
        %1199 = vmatpush1.bf16.msra.mxu0 %v1113
        %1200 = vmatprep.subr.bf16.mxu0 %v1117
        %1201 = vmatpush1.bf16.msra.mxu0 %v1116
        %1202 = vmatprep.subr.bf16.mxu0 %v1120
        %1203 = vmatpush1.bf16.msra.mxu0 %v1119
        %1204 = vmatprep.subr.bf16.mxu0 %v1123
        %1205 = vmatpush1.bf16.msra.mxu0 %v1122
        %1206 = vmatprep.subr.bf16.mxu0 %v1126
        %1207 = vmatpush1.bf16.msra.mxu0 %v1125
        %1208 = vmatprep.mubr.bf16.mxu0 %v336
        %1209 = vmatmul.mubr.bf16.gmra.mrb[0].mxu0 %v324
        %v1210 = vpop.f32.mrb[0].mxu0
        %v1211 = vadd.f32 %v908, %v1210
        %v1212 = vpop.f32.mrb[0].mxu0
        %v1213 = vadd.f32 %v912, %v1212
        %v1214 = vpop.f32.mrb[0].mxu0
        %v1215 = vadd.f32 %v908, %v1214
        %v1216 = vpop.f32.mrb[0].mxu0
        %v1217 = vadd.f32 %v912, %v1216
        %1218 = vmatprep.mubr.bf16.mxu0 %v337
        %1219 = vmatmul.mubr.bf16.gmra.mrb[0].mxu0 %v325
        %v1220 = vpop.f32.mrb[0].mxu0
        %v1221 = vadd.f32 %v908, %v1220
        %v1222 = vpop.f32.mrb[0].mxu0
        %v1223 = vadd.f32 %v912, %v1222
        %v1224 = vpop.f32.mrb[0].mxu0
        %v1225 = vadd.f32 %v908, %v1224
        %v1226 = vpop.f32.mrb[0].mxu0
        %v1227 = vadd.f32 %v912, %v1226
        %1228 = vdwg.mxu0
        %1229 = vmatprep.subr.bf16.mxu0 0
        %1230 = vmatpush1.bf16.msra.mxu0 %v1082
        %1231 = vmatprep.subr.bf16.mxu0 0
        %1232 = vmatpush1.bf16.msra.mxu0 %v1085
        %1233 = vmatprep.subr.bf16.mxu0 0
        %1234 = vmatpush1.bf16.msra.mxu0 %v1088
        %1235 = vmatprep.subr.bf16.mxu0 0
        %1236 = vmatpush1.bf16.msra.mxu0 %v1091
        %1237 = vmatprep.subr.bf16.mxu0 0
        %1238 = vmatpush1.bf16.msra.mxu0 %v1094
        %1239 = vmatprep.subr.bf16.mxu0 0
        %1240 = vmatpush1.bf16.msra.mxu0 %v1097
        %1241 = vmatprep.subr.bf16.mxu0 0
        %1242 = vmatpush1.bf16.msra.mxu0 %v1100
        %1243 = vmatprep.subr.bf16.mxu0 0
        %1244 = vmatpush1.bf16.msra.mxu0 %v1103
        %1245 = vmatprep.subr.bf16.mxu0 0
        %1246 = vmatpush1.bf16.msra.mxu0 %v1106
        %1247 = vmatprep.subr.bf16.mxu0 0
        %1248 = vmatpush1.bf16.msra.mxu0 %v1109
        %1249 = vmatprep.subr.bf16.mxu0 0
        %1250 = vmatpush1.bf16.msra.mxu0 %v1112
        %1251 = vmatprep.subr.bf16.mxu0 0
        %1252 = vmatpush1.bf16.msra.mxu0 %v1115
        %1253 = vmatprep.subr.bf16.mxu0 0
        %1254 = vmatpush1.bf16.msra.mxu0 %v1118
        %1255 = vmatprep.subr.bf16.mxu0 0
        %1256 = vmatpush1.bf16.msra.mxu0 %v1121
        %1257 = vmatprep.subr.bf16.mxu0 0
        %1258 = vmatpush1.bf16.msra.mxu0 %v1124
        %1259 = vmatprep.subr.bf16.mxu0 0
        %1260 = vmatpush1.bf16.msra.mxu0 %v1127
        %1261 = vmatprep.mubr.bf16.mxu0 %v336
        %1262 = vmatmul.mubr.bf16.gmra.mrb[0].mxu0 %v324
        %v1263 = vpop.f32.mrb[0].mxu0
        %v1264 = vadd.f32 %v916, %v1263
        %v1265 = vpop.f32.mrb[0].mxu0
        %v1266 = vpop.f32.mrb[0].mxu0
        %v1267 = vadd.f32 %v916, %v1266
        %v1268 = vpop.f32.mrb[0].mxu0
        %1269 = vmatprep.mubr.bf16.mxu0 %v337
        %1270 = vmatmul.mubr.bf16.gmra.mrb[0].mxu0 %v325
        %v1271 = vpop.f32.mrb[0].mxu0
        %v1272 = vadd.f32 %v916, %v1271
        %v1273 = vpop.f32.mrb[0].mxu0
        %v1274 = vpop.f32.mrb[0].mxu0
        %v1275 = vadd.f32 %v916, %v1274
        %v1276 = vpop.f32.mrb[0].mxu0
        %1277 = vdwg.mxu0
        %v1278 = vpack.c.bf16 %v1211, %v1211
        %v1279 = vpack.c.bf16 %v1213, %v1213
        %v1280 = vpack.c.bf16 %v1264, %v1264
        %v1281 = vpack.c.bf16 %v1215, %v1215
        %v1282 = vpack.c.bf16 %v1217, %v1217
        %v1283 = vpack.c.bf16 %v1267, %v1267
        %v1284 = vpack.c.bf16 %v1221, %v1221
        %v1285 = vpack.c.bf16 %v1223, %v1223
        %v1286 = vpack.c.bf16 %v1272, %v1272
        %v1287 = vpack.c.bf16 %v1225, %v1225
        %v1288 = vpack.c.bf16 %v1227, %v1227
        %v1289 = vpack.c.bf16 %v1275, %v1275
        %v1302 = vunpack.c.l.b16 %v1278
        %v1303 = vunpack.c.l.b16 %v1279
        %v1304 = vunpack.c.l.b16 %v1280
        %v1305 = vunpack.c.l.b16 %v1281
        %v1306 = vunpack.c.l.b16 %v1282
        %v1307 = vunpack.c.l.b16 %v1283
        %v1308 = vunpack.c.l.b16 %v1284
        %v1309 = vunpack.c.l.b16 %v1285
        %v1310 = vunpack.c.l.b16 %v1286
        %v1311 = vunpack.c.l.b16 %v1287
        %v1312 = vunpack.c.l.b16 %v1288
        %v1313 = vunpack.c.l.b16 %v1289
        %v1314 = vpack.c.b16 %v1303, %v1302
        %v1315 = vpack.c.b16 %v1304, %v1304
        %v1316 = vpack.c.b16 %v1306, %v1305
        %v1317 = vpack.c.b16 %v1307, %v1307
        %v1318 = vpack.c.b16 %v1309, %v1308
        %v1319 = vpack.c.b16 %v1310, %v1310
        %v1320 = vpack.c.b16 %v1312, %v1311
        %v1321 = vpack.c.b16 %v1313, %v1313
        %s1330 = scalar_lea.vmem %s303, 48 [#allocation5]
        %1331 = vst [vmem:[%s1330] sm:$0xff] %v1314
        %1332 = vst [vmem:[%s1330 + $0x8] sm:$0xf] %v1315
        %1333 = vst [vmem:[%s1330 + $0xc] sm:$0xff] %v1316
        %1334 = vst [vmem:[%s1330 + $0x14] sm:$0xf] %v1317
        %1335 = vst [vmem:[%s1330 + $0x18] sm:$0xff] %v1318
        %1336 = vst [vmem:[%s1330 + $0x20] sm:$0xf] %v1319
        %1337 = vst [vmem:[%s1330 + $0x24] sm:$0xff] %v1320
        %1338 = vst [vmem:[%s1330 + $0x2c] sm:$0xf] %v1321
        %s1339 = sand.u32 %s135, 1
        %s1340 = sand.u32 %s135, 1
        %s1341 = smul.addr %s1340, 96
        %s1342 = scalar_lea.vmem [#allocation5], %s1341
        // Predicated region
        $region86: #{bidirectional_gru_forward.6} parent=76 // pred_check
          %p1343 = pneg %p145
        $region87: #{bidirectional_gru_forward.6} parent=76 // pred_check_branch
          %1345 = sbr.rel (%p1343) target = $region89
        $region88: #{bidirectional_gru_forward.6} parent=76 // pred_region
          %s1346 = smul.u32 4, %s17
          %s1347 = smul.addr %s1346, 3
          %s1348 = smul.addr %s1347, 4
          %s1349 = scalar_lea.vmem %s5, %s1348
          // Predicated region
          $region90: #{bidirectional_gru_forward.6} parent=88 // pred_check
            _
          $region91: #{bidirectional_gru_forward.6} parent=88 // pred_check_branch
            %1351 = sbr.rel (0) target = $region93
          $region92: #{bidirectional_gru_forward.6} parent=88 // pred_region
            // Predicated region
            $region94: #{bidirectional_gru_forward.6} parent=92 // pred_check
              _
            $region95: #{bidirectional_gru_forward.6} parent=92 // pred_check_branch
              %1353 = sbr.rel (0) target = $region97
            $region96: #{bidirectional_gru_forward.6} parent=92 // pred_region
              %s1354 = scalar_lea.vmem %s1342, 8 [#allocation5]
              %s1355 = scalar_lea.vmem %s1349, 8
              loop: start=0, step=1, limit=1
              $region98: #{bidirectional_gru_forward.6} parent=96 // loop_pre_header
                _
              $region99: #{bidirectional_gru_forward.6} parent=96 // loop_header
                %s1357 = sphi 0, %s1361
                %p1358 = scmp.ge.s32.totalorder %s1357, 1
                %s1362 = sphi %s1342, %s1342
                %s1363 = sphi %s1349, %s1349
              $region100: #{bidirectional_gru_forward.6} parent=96 // loop_header_branch
                %1360 = sbr.rel (%p1358) target = $region104
              $region101: #{bidirectional_gru_forward.6} parent=96 // loop_body
                %v1364 = vld [vmem:[%s1362] sm:$0xff]
                %1365 = vst [vmem:[%s1363] sm:$0xff] %v1364
                %v1366 = vld [vmem:[%s1362 + $0xc] sm:$0xff]
                %1367 = vst [vmem:[%s1363 + $0xc] sm:$0xff] %v1366
                %v1368 = vld [vmem:[%s1362 + $0x18] sm:$0xff]
                %1369 = vst [vmem:[%s1363 + $0x18] sm:$0xff] %v1368
                %v1370 = vld [vmem:[%s1362 + $0x24] sm:$0xff]
                %1371 = vst [vmem:[%s1363 + $0x24] sm:$0xff] %v1370
                %v1372 = vld [vmem:[%s1362 + $0x30] sm:$0xff]
                %1373 = vst [vmem:[%s1363 + $0x60] sm:$0xff] %v1372
                %v1374 = vld [vmem:[%s1362 + $0x3c] sm:$0xff]
                %1375 = vst [vmem:[%s1363 + $0x6c] sm:$0xff] %v1374
                %v1376 = vld [vmem:[%s1362 + $0x48] sm:$0xff]
                %1377 = vst [vmem:[%s1363 + $0x78] sm:$0xff] %v1376
                %v1378 = vld [vmem:[%s1362 + $0x54] sm:$0xff]
                %1379 = vst [vmem:[%s1363 + $0x84] sm:$0xff] %v1378
              $region102: #{bidirectional_gru_forward.6} parent=96 // loop_footer
                %s1361 = sadd.s32 1, %s1357
              $region103: #{bidirectional_gru_forward.6} parent=96 // loop_footer_branch
                %1356 = sbr.rel target = $region99
              $region104: #{bidirectional_gru_forward.6} parent=96 // loop_exit
                _
              loop: start=0, step=1, limit=1
              $region105: #{bidirectional_gru_forward.6} parent=96 // loop_pre_header
                _
              $region106: #{bidirectional_gru_forward.6} parent=96 // loop_header
                %s1382 = sphi 0, %s1386
                %p1383 = scmp.ge.s32.totalorder %s1382, 1
                %s1387 = sphi %s1354, %s1354
                %s1388 = sphi %s1355, %s1355
              $region107: #{bidirectional_gru_forward.6} parent=96 // loop_header_branch
                %1385 = sbr.rel (%p1383) target = $region111
              $region108: #{bidirectional_gru_forward.6} parent=96 // loop_body
                %v1389 = vld [vmem:[%s1387] sm:$0xf]
                %1390 = vst [vmem:[%s1388] sm:$0xf] %v1389
                %v1391 = vld [vmem:[%s1387 + $0xc] sm:$0xf]
                %1392 = vst [vmem:[%s1388 + $0xc] sm:$0xf] %v1391
                %v1393 = vld [vmem:[%s1387 + $0x18] sm:$0xf]
                %1394 = vst [vmem:[%s1388 + $0x18] sm:$0xf] %v1393
                %v1395 = vld [vmem:[%s1387 + $0x24] sm:$0xf]
                %1396 = vst [vmem:[%s1388 + $0x24] sm:$0xf] %v1395
                %v1397 = vld [vmem:[%s1387 + $0x30] sm:$0xf]
                %1398 = vst [vmem:[%s1388 + $0x60] sm:$0xf] %v1397
                %v1399 = vld [vmem:[%s1387 + $0x3c] sm:$0xf]
                %1400 = vst [vmem:[%s1388 + $0x6c] sm:$0xf] %v1399
                %v1401 = vld [vmem:[%s1387 + $0x48] sm:$0xf]
                %1402 = vst [vmem:[%s1388 + $0x78] sm:$0xf] %v1401
                %v1403 = vld [vmem:[%s1387 + $0x54] sm:$0xf]
                %1404 = vst [vmem:[%s1388 + $0x84] sm:$0xf] %v1403
              $region109: #{bidirectional_gru_forward.6} parent=96 // loop_footer
                %s1386 = sadd.s32 1, %s1382
              $region110: #{bidirectional_gru_forward.6} parent=96 // loop_footer_branch
                %1381 = sbr.rel target = $region106
              $region111: #{bidirectional_gru_forward.6} parent=96 // loop_exit
                _
            $region97: #{bidirectional_gru_forward.6} parent=92 // pred_fallthru
              _
          $region93: #{bidirectional_gru_forward.6} parent=88 // pred_fallthru
            _
          %1405 = vnop
        $region89: #{bidirectional_gru_forward.6} parent=76 // pred_fallthru
          _
      $region77: #{bidirectional_gru_forward.6} parent=5 // pred_fallthru
        _
      %p1406 = scmp.le.s32.totalorder 2, %s12
      // Predicated region
      $region112: #{bidirectional_gru_forward.6} parent=5 // pred_check
        %p1407 = pneg %p1406
      $region113: #{bidirectional_gru_forward.6} parent=5 // pred_check_branch
        %1409 = sbr.rel (%p1407) target = $region115
      $region114: #{bidirectional_gru_forward.6} parent=5 // pred_region
        %s1410 = ssub.s32 %s12, 2
        // Predicated region
        $region116: #{bidirectional_gru_forward.6} parent=114 // pred_check
          %p1411 = pneg %p151
        $region117: #{bidirectional_gru_forward.6} parent=114 // pred_check_branch
          %1413 = sbr.rel (%p1411) target = $region119
        $region118: #{bidirectional_gru_forward.6} parent=114 // pred_region
          %s1414 = sand.u32 %s136, 1
          %s1415 = sand.u32 %s136, 1
          %s1416 = smul.addr %s1415, 96
          %s1417 = scalar_lea.vmem [#allocation5], %s1416
        $region119: #{bidirectional_gru_forward.6} parent=114 // pred_fallthru
          _
      $region115: #{bidirectional_gru_forward.6} parent=5 // pred_fallthru
        _
    $region6: #{bidirectional_gru_forward.6} parent=1 // loop_footer
      %s16 = sadd.s32 1, %s12
    $region7: #{bidirectional_gru_forward.6} parent=1 // loop_footer_branch
      %11 = sbr.rel target = $region3
    $region8: #{bidirectional_gru_forward.6} parent=1 // loop_exit
      _
    %1418 = vsyncpa [#allocation4], 1
    %s1419 = scalar_lea.sflag [#allocation4], 1
    %1420 = vsyncpa %s1419, 1

</llo_original>
